<compile_context>
chip_gen: v5e
topology: v5e:2x2
jax: 0.10.0
libtpu: 0.0.40
codegen_flags: <defaults>
</compile_context>

<pallas_src>
import functools

import jax
import jax.numpy as jnp
from jax.experimental import pallas as pl
from jax.experimental.pallas import tpu as pltpu


# ---------------------------------------------------------------------------
# math helpers (shared by the kernels and the matched pure-JAX reference)
# ---------------------------------------------------------------------------
_SQRT_2_OVER_PI = 0.7978845608028654


def _gelu_tanh(x):
    # tanh-based GELU: tanh lowers to the (otherwise idle) EUP slot on TPU.
    return 0.5 * x * (1.0 + jnp.tanh(_SQRT_2_OVER_PI * (x + 0.044715 * x * x * x)))


def _layernorm(x, w, b, eps=1e-5):
    mu = jnp.mean(x, axis=-1, keepdims=True)
    var = jnp.mean((x - mu) ** 2, axis=-1, keepdims=True)
    return (x - mu) * jax.lax.rsqrt(var + eps) * w + b


def _vmem_capacity_bytes():
    try:
        return int(pltpu.get_tpu_info().vmem_capacity_bytes)
    except Exception:                       # pragma: no cover
        return 64 * 1024 * 1024             # conservative (v7x-sized) fallback


# ---------------------------------------------------------------------------
# Prologue kernel: K/V projection for one (batch, seq-tile) step.
# Outputs: K head-major & pre-transposed (nh, hd, N), V head-major (nh, N, hd),
# both bf16.  One-time transpose cost, amortized over all query tiles.
# ---------------------------------------------------------------------------
def kv_kernel(x_ref, ln1w_ref, ln1b_ref, wkv_ref, bkv_ref, k_ref, v_ref,
              *, num_heads):
    bf16, f32 = jnp.bfloat16, jnp.float32
    C = x_ref.shape[-1]
    hd = C // num_heads

    xn = _layernorm(x_ref[...], ln1w_ref[...], ln1b_ref[...])        # f32
    kv = jnp.dot(xn.astype(bf16), wkv_ref[...],
                 preferred_element_type=f32) + bkv_ref[...]           # (TK, 2C)
    for h in range(num_heads):
        # K half -> pre-transposed (hd, TK); V half -> (TK, hd)
        k_ref[h] = kv[:, h * hd:(h + 1) * hd].T.astype(bf16)
        v_ref[h] = kv[:, C + h * hd:C + (h + 1) * hd].astype(bf16)


# ---------------------------------------------------------------------------
# Main kernel: one (batch, query-tile) step of the transformer block.
# ---------------------------------------------------------------------------
def block_kernel(x_ref, k_ref, v_ref,
                 ln1w_ref, ln1b_ref, wq_ref, bq_ref,
                 projw_ref, projb_ref, ln2w_ref, ln2b_ref,
                 fc1w_ref, fc1b_ref, fc2w_ref, fc2b_ref,
                 o_ref, attn_scr, *, num_heads, kv_chunk):
    bf16, f32 = jnp.bfloat16, jnp.float32
    TQ, C = x_ref.shape
    hd = C // num_heads
    N = v_ref.shape[1]
    num_kv_chunks = N // kv_chunk

    x = x_ref[...]                                                    # (TQ, C) f32 residual
    xn = _layernorm(x, ln1w_ref[...], ln1b_ref[...])
    # attention scale already folded into wq / bq on the host
    q = (jnp.dot(xn.astype(bf16), wq_ref[...],
                 preferred_element_type=f32) + bq_ref[...]).astype(bf16)

    # Per-head flash-style attention; each head's output goes straight into a
    # bf16 scratch slice so nothing large stays live across heads.
    for h in range(num_heads):
        sl = slice(h * hd, (h + 1) * hd)
        q_h = q[:, sl]                                                # (TQ, hd) bf16

        def kv_step(c, carry, _h=h, _q=q_h):
            m, l, acc = carry
            start = c * kv_chunk
            if not isinstance(start, int):
                start = pl.multiple_of(start, kv_chunk)
            k_c = k_ref[_h, :, pl.ds(start, kv_chunk)]                # (hd, TK) bf16
            v_c = v_ref[_h, pl.ds(start, kv_chunk), :]                # (TK, hd) bf16
            s = jnp.dot(_q, k_c, preferred_element_type=f32)          # (TQ, TK) f32
            m_new = jnp.maximum(m, jnp.max(s, axis=-1, keepdims=True))
            alpha = jnp.exp(m - m_new)
            p = jnp.exp(s - m_new)
            l_new = alpha * l + jnp.sum(p, axis=-1, keepdims=True)
            acc_new = alpha * acc + jnp.dot(p.astype(bf16), v_c,
                                            preferred_element_type=f32)
            return m_new, l_new, acc_new

        m0 = jnp.full((TQ, 1), -jnp.inf, f32)
        l0 = jnp.zeros((TQ, 1), f32)
        a0 = jnp.zeros((TQ, hd), f32)
        if num_kv_chunks == 1:
            _, l_i, acc = kv_step(0, (m0, l0, a0))
        else:
            _, l_i, acc = jax.lax.fori_loop(0, num_kv_chunks, kv_step,
                                            (m0, l0, a0))
        o_h = acc * pl.reciprocal(l_i, approx=True)                   # EUP slot
        attn_scr[:, sl] = o_h.astype(bf16)

    # single full-depth output projection (K = C, not K = hd)
    attn = jnp.dot(attn_scr[...], projw_ref[...],
                   preferred_element_type=f32) + projb_ref[...]
    x1 = x + attn                                                     # residual 1 (f32)

    xn2 = _layernorm(x1, ln2w_ref[...], ln2b_ref[...])
    h1 = _gelu_tanh(jnp.dot(xn2.astype(bf16), fc1w_ref[...],
                            preferred_element_type=f32) + fc1b_ref[...])
    mlp = jnp.dot(h1.astype(bf16), fc2w_ref[...],                     # bf16 LHS (fixed)
                  preferred_element_type=f32) + fc2b_ref[...]
    o_ref[...] = x1 + mlp                                             # residual 2 (f32)


# ---------------------------------------------------------------------------
# host-side parameter preparation (dtype casts, scale folding)
# ---------------------------------------------------------------------------
def prepare_params(params, num_heads):
    C = params["proj_w"].shape[0]
    hidden = params["fc1_w"].shape[1]
    hd = C // num_heads
    scale = hd ** (-0.5)
    f32, bf16 = jnp.float32, jnp.bfloat16

    qkv_w = params["qkv_w"].astype(f32)
    qkv_b = params["qkv_b"].astype(f32)
    return {
        "ln1_w": params["ln1_w"].reshape(1, C).astype(f32),
        "ln1_b": params["ln1_b"].reshape(1, C).astype(f32),
        # fold attention scale into the Q projection (compile-time constant)
        "wq": (qkv_w[:, :C] * scale).astype(bf16),
        "bq": (qkv_b[:C] * scale).reshape(1, C).astype(f32),
        "wkv": qkv_w[:, C:].astype(bf16),
        "bkv": qkv_b[C:].reshape(1, 2 * C).astype(f32),
        "projw": params["proj_w"].astype(bf16),
        "projb": params["proj_b"].reshape(1, C).astype(f32),
        "ln2_w": params["ln2_w"].reshape(1, C).astype(f32),
        "ln2_b": params["ln2_b"].reshape(1, C).astype(f32),
        "fc1_w": params["fc1_w"].astype(bf16),
        "fc1_b": params["fc1_b"].reshape(1, hidden).astype(f32),
        "fc2_w": params["fc2_w"].astype(bf16),
        "fc2_b": params["fc2_b"].reshape(1, C).astype(f32),
    }


# ---------------------------------------------------------------------------
# wrapper
# ---------------------------------------------------------------------------
def vit_block_forward(x, params, num_heads, *, tq=None, kv_chunk=512):
    B, H, W, C = x.shape
    N = H * W
    assert C % num_heads == 0
    hd = C // num_heads

    vmem_cap = _vmem_capacity_bytes()
    # per-generation VMEM budget: ~56 MiB on v7x (64 MiB/TC), ~110 MiB on v5e/v6e
    vmem_limit = int(min(vmem_cap - 8 * 1024 * 1024, 110 * 1024 * 1024))
    if tq is None:
        # larger query tiles amortize grid-step / MXU weight-load overhead when
        # VMEM allows (v5e/v6e: 128 MiB); stay at 128 on v7x (64 MiB).
        tq = 256 if vmem_cap >= 128 * 1024 * 1024 else 128
    TQ = min(tq, N)
    TK = min(kv_chunk, N)
    assert N % TQ == 0 and N % TK == 0

    kp = prepare_params(params, num_heads)
    xf = x.reshape(B, N, C).astype(jnp.float32)

    def run(single_buffer_weights):
        def const_spec(shape):
            nd = len(shape)
            idx = lambda b, j, _n=nd: (0,) * _n          # constant block index
            if single_buffer_weights:
                return pl.BlockSpec(shape, idx, pipeline_mode=pl.Buffered(1))
            return pl.BlockSpec(shape, idx)

        cparams = pltpu.CompilerParams(
            dimension_semantics=("parallel", "parallel"),
            vmem_limit_bytes=vmem_limit)

        # ---- prologue: bf16 K (head-major, pre-transposed) and V ------------
        kv_weights = [kp["ln1_w"], kp["ln1_b"], kp["wkv"], kp["bkv"]]
        k, v = pl.pallas_call(
            functools.partial(kv_kernel, num_heads=num_heads),
            out_shape=(jax.ShapeDtypeStruct((B, num_heads, hd, N), jnp.bfloat16),
                       jax.ShapeDtypeStruct((B, num_heads, N, hd), jnp.bfloat16)),
            grid=(B, N // TK),
            in_specs=[pl.BlockSpec((pl.Squeezed(), TK, C), lambda b, n: (b, n, 0))]
                     + [const_spec(w.shape) for w in kv_weights],
            out_specs=(pl.BlockSpec((pl.Squeezed(), num_heads, hd, TK),
                                    lambda b, n: (b, 0, 0, n)),
                       pl.BlockSpec((pl.Squeezed(), num_heads, TK, hd),
                                    lambda b, n: (b, 0, n, 0))),
            compiler_params=cparams,
        )(xf, *kv_weights)

        # ---- main: attention + MLP per (batch, query-tile) ------------------
        plist = [kp["ln1_w"], kp["ln1_b"], kp["wq"], kp["bq"],
                 kp["projw"], kp["projb"], kp["ln2_w"], kp["ln2_b"],
                 kp["fc1_w"], kp["fc1_b"], kp["fc2_w"], kp["fc2_b"]]
        in_specs = [
            pl.BlockSpec((pl.Squeezed(), TQ, C), lambda b, j: (b, j, 0)),
            pl.BlockSpec((pl.Squeezed(), num_heads, hd, N), lambda b, j: (b, 0, 0, 0)),
            pl.BlockSpec((pl.Squeezed(), num_heads, N, hd), lambda b, j: (b, 0, 0, 0)),
        ] + [const_spec(p.shape) for p in plist]

        return pl.pallas_call(
            functools.partial(block_kernel, num_heads=num_heads, kv_chunk=TK),
            out_shape=jax.ShapeDtypeStruct((B, N, C), jnp.float32),
            grid=(B, N // TQ),
            in_specs=in_specs,
            out_specs=pl.BlockSpec((pl.Squeezed(), TQ, C), lambda b, j: (b, j, 0)),
            scratch_shapes=[pltpu.VMEM((TQ, C), jnp.bfloat16)],   # concat'd heads
            compiler_params=cparams,
        )(xf, k, v, *plist)

    try:
        out = run(single_buffer_weights=True)
    except Exception:
        # compatibility fallback for jax versions without Buffered(1) support
        out = run(single_buffer_weights=False)
    return out.reshape(B, H, W, C)


# ---------------------------------------------------------------------------
# pure-JAX references
# ---------------------------------------------------------------------------
def reference_matched(x, kp, num_heads):
    """Same numeric recipe as the kernel (bf16 MXU operands, tanh GELU)."""
    B, H, W, C = x.shape
    N = H * W
    hd = C // num_heads
    f32, bf16 = jnp.float32, jnp.bfloat16
    xf = x.reshape(B, N, C).astype(f32)

    xn = _layernorm(xf, kp["ln1_w"], kp["ln1_b"])
    q = jnp.einsum("bnc,cd->bnd", xn.astype(bf16), kp["wq"],
                   preferred_element_type=f32) + kp["bq"]
    kv = jnp.einsum("bnc,cd->bnd", xn.astype(bf16), kp["wkv"],
                    preferred_element_type=f32) + kp["bkv"]
    q = q.astype(bf16)
    k = kv[..., :C].astype(bf16)
    v = kv[..., C:].astype(bf16)
    qh = q.reshape(B, N, num_heads, hd)
    kh = k.reshape(B, N, num_heads, hd)
    vh = v.reshape(B, N, num_heads, hd)
    s = jnp.einsum("bqhd,bkhd->bhqk", qh, kh, preferred_element_type=f32)
    m = s.max(-1, keepdims=True)
    e = jnp.exp(s - m)
    p = e / e.sum(-1, keepdims=True)
    o = jnp.einsum("bhqk,bkhd->bqhd", p.astype(bf16), vh,
                   preferred_element_type=f32)
    attn = jnp.einsum("bqc,cd->bqd", o.reshape(B, N, C).astype(bf16),
                      kp["projw"], preferred_element_type=f32) + kp["projb"]
    x1 = xf + attn
    xn2 = _layernorm(x1, kp["ln2_w"], kp["ln2_b"])
    h1 = _gelu_tanh(jnp.einsum("bnc,ch->bnh", xn2.astype(bf16), kp["fc1_w"],
                               preferred_element_type=f32) + kp["fc1_b"])
    mlp = jnp.einsum("bnh,hc->bnc", h1.astype(bf16), kp["fc2_w"],
                     preferred_element_type=f32) + kp["fc2_b"]
    return (x1 + mlp).reshape(B, H, W, C)


def reference_f32(x, p, num_heads):
    """Exact f32 / erf-GELU reference mirroring the PyTorch forward."""
    B, H, W, C = x.shape
    N = H * W
    hd = C // num_heads
    scale = hd ** (-0.5)
    xf = x.reshape(B, N, C).astype(jnp.float32)
    xn = _layernorm(xf, p["ln1_w"], p["ln1_b"])
    qkv = xn @ p["qkv_w"] + p["qkv_b"]
    qkv = qkv.reshape(B, N, 3, num_heads, hd).transpose(2, 0, 3, 1, 4)
    q, k, v = qkv[0], qkv[1], qkv[2]
    s = jnp.einsum("bhnd,bhmd->bhnm", q * scale, k)
    a = jax.nn.softmax(s, axis=-1)
    o = jnp.einsum("bhnm,bhmd->bhnd", a, v)
    o = o.transpose(0, 2, 1, 3).reshape(B, N, C)
    o = o @ p["proj_w"] + p["proj_b"]
    x1 = xf + o
    xn2 = _layernorm(x1, p["ln2_w"], p["ln2_b"])
    h1 = jax.nn.gelu(xn2 @ p["fc1_w"] + p["fc1_b"], approximate=False)
    mlp = h1 @ p["fc2_w"] + p["fc2_b"]
    return (x1 + mlp).reshape(B, H, W, C)


# ---------------------------------------------------------------------------
if __name__ == "__main__":
    B, H, W, C = 2, 16, 16, 32
    num_heads = 4
    mlp_ratio = 4.0
    hidden = int(C * mlp_ratio)

    key = jax.random.PRNGKey(0)
    keys = jax.random.split(key, 10)

    def nrm(k, shape, std=0.02):
        return (std * jax.random.normal(k, shape)).astype(jnp.float32)

    # Deterministic synthetic parameters (shapes follow the module's __init__).
    params = {
        "ln1_w": jnp.ones((C,), jnp.float32),
        "ln1_b": jnp.zeros((C,), jnp.float32),
        "qkv_w": nrm(keys[1], (C, 3 * C)),
        "qkv_b": nrm(keys[2], (3 * C,)),
        "proj_w": nrm(keys[3], (C, C)),
        "proj_b": nrm(keys[4], (C,)),
        "ln2_w": jnp.ones((C,), jnp.float32),
        "ln2_b": jnp.zeros((C,), jnp.float32),
        "fc1_w": nrm(keys[5], (C, hidden)),
        "fc1_b": nrm(keys[6], (hidden,)),
        "fc2_w": nrm(keys[7], (hidden, C)),
        "fc2_b": nrm(keys[8], (C,)),
    }

    x = jax.random.normal(keys[0], (B, H, W, C), dtype=jnp.float32)

    # tq=128 -> 2 query tiles/batch; kv_chunk=128 -> 2 KV chunks per head,
    # exercising both grid axes and the online-softmax fori_loop path.
    out = vit_block_forward(x, params, num_heads, tq=128, kv_chunk=128)
    jax.block_until_ready(out)
    assert out.shape == (B, H, W, C)

    kp = prepare_params(params, num_heads)
    ref_m = reference_matched(x, kp, num_heads)   # same bf16 recipe
    ref_f = reference_f32(x, params, num_heads)   # exact f32 / erf GELU
    err_m = float(jnp.max(jnp.abs(out - ref_m)))
    err_f = float(jnp.max(jnp.abs(out - ref_f)))
    assert jnp.allclose(out, ref_m, atol=5e-3, rtol=5e-3), f"matched-ref err {err_m}"
    assert jnp.allclose(out, ref_f, atol=3e-2, rtol=3e-2), f"f32-ref err {err_f}"

    print("KERNEL_OK")
</pallas_src>

<mosaic_0001>
module attributes {stable_mosaic.version = 11 : i64} {
  func.func @kv_kernel(%arg0: i32, %arg1: i32, %arg2: memref<1x128x32xf32, #tpu.memory_space<vmem>>, %arg3: memref<1x32xf32, #tpu.memory_space<vmem>>, %arg4: memref<1x32xf32, #tpu.memory_space<vmem>>, %arg5: memref<32x64xbf16, #tpu.memory_space<vmem>>, %arg6: memref<1x64xf32, #tpu.memory_space<vmem>>, %arg7: memref<1x4x8x128xbf16, #tpu.memory_space<vmem>>, %arg8: memref<1x4x128x8xbf16, #tpu.memory_space<vmem>>) attributes {dimension_semantics = [#tpu.dimension_semantics<parallel>, #tpu.dimension_semantics<parallel>], iteration_bounds = array<i64: 2, 2>, scalar_prefetch = 0 : i64, scratch_operands = 0 : i64, tpu.core_type = #tpu.core_type<tc>, window_params = [{transform_indices = @transform_0, window_bounds = array<i64: 1, 128, 32>}, {pipeline_mode = #tpu.pipeline_mode<synchronous>, transform_indices = @transform_1, window_bounds = array<i64: 1, 32>}, {pipeline_mode = #tpu.pipeline_mode<synchronous>, transform_indices = @transform_2, window_bounds = array<i64: 1, 32>}, {pipeline_mode = #tpu.pipeline_mode<synchronous>, transform_indices = @transform_3, window_bounds = array<i64: 32, 64>}, {pipeline_mode = #tpu.pipeline_mode<synchronous>, transform_indices = @transform_4, window_bounds = array<i64: 1, 64>}, {transform_indices = @transform_5, window_bounds = array<i64: 1, 4, 8, 128>}, {transform_indices = @transform_6, window_bounds = array<i64: 1, 4, 128, 8>}]} {
    %c0 = arith.constant 0 : index
    %c0_0 = arith.constant 0 : index
    %c0_1 = arith.constant 0 : index
    %0 = vector.load %arg2[%c0, %c0_0, %c0_1] : memref<1x128x32xf32, #tpu.memory_space<vmem>>, vector<1x128x32xf32>
    %1 = vector.shape_cast %0 : vector<1x128x32xf32> to vector<128x32xf32>
    %c0_2 = arith.constant 0 : index
    %c0_3 = arith.constant 0 : index
    %2 = vector.load %arg3[%c0_2, %c0_3] : memref<1x32xf32, #tpu.memory_space<vmem>>, vector<1x32xf32>
    %c0_4 = arith.constant 0 : index
    %c0_5 = arith.constant 0 : index
    %3 = vector.load %arg4[%c0_4, %c0_5] : memref<1x32xf32, #tpu.memory_space<vmem>>, vector<1x32xf32>
    %cst = arith.constant dense<0.000000e+00> : vector<128xf32>
    %4 = vector.multi_reduction <add>, %1, %cst [1] : vector<128x32xf32> to vector<128xf32>
    %5 = vector.shape_cast %4 : vector<128xf32> to vector<128x1xf32>
    %cst_6 = arith.constant 3.200000e+01 : f32
    %6 = vector.broadcast %cst_6 : f32 to vector<128x1xf32>
    %7 = arith.divf %5, %6 : vector<128x1xf32>
    %8 = vector.broadcast %7 : vector<128x1xf32> to vector<128x32xf32>
    %9 = arith.subf %1, %8 : vector<128x32xf32>
    %10 = arith.mulf %9, %9 : vector<128x32xf32>
    %cst_7 = arith.constant dense<0.000000e+00> : vector<128xf32>
    %11 = vector.multi_reduction <add>, %10, %cst_7 [1] : vector<128x32xf32> to vector<128xf32>
    %12 = vector.shape_cast %11 : vector<128xf32> to vector<128x1xf32>
    %cst_8 = arith.constant 3.200000e+01 : f32
    %13 = vector.broadcast %cst_8 : f32 to vector<128x1xf32>
    %14 = arith.divf %12, %13 : vector<128x1xf32>
    %15 = vector.broadcast %7 : vector<128x1xf32> to vector<128x32xf32>
    %16 = arith.subf %1, %15 : vector<128x32xf32>
    %cst_9 = arith.constant 9.99999974E-6 : f32
    %17 = vector.broadcast %cst_9 : f32 to vector<128x1xf32>
    %18 = arith.addf %14, %17 : vector<128x1xf32>
    %19 = math.rsqrt %18 : vector<128x1xf32>
    %20 = vector.broadcast %19 : vector<128x1xf32> to vector<128x32xf32>
    %21 = arith.mulf %16, %20 : vector<128x32xf32>
    %22 = vector.broadcast %2 : vector<1x32xf32> to vector<128x32xf32>
    %23 = arith.mulf %21, %22 : vector<128x32xf32>
    %24 = vector.broadcast %3 : vector<1x32xf32> to vector<128x32xf32>
    %25 = arith.addf %23, %24 : vector<128x32xf32>
    %26 = arith.truncf %25 : vector<128x32xf32> to vector<128x32xbf16>
    %c0_10 = arith.constant 0 : index
    %c0_11 = arith.constant 0 : index
    %27 = vector.load %arg5[%c0_10, %c0_11] : memref<32x64xbf16, #tpu.memory_space<vmem>>, vector<32x64xbf16>
    %cst_12 = arith.constant dense<0.000000e+00> : vector<128x64xf32>
    %28 = tpu.matmul %26, %27, %cst_12 {dimension_numbers = #tpu.dot_dimension_numbers<[1], [0], [0], [1], [0, 0, 1, 1], [], []>} : vector<128x32xbf16>, vector<32x64xbf16>, vector<128x64xf32> -> vector<128x64xf32>
    %c0_13 = arith.constant 0 : index
    %c0_14 = arith.constant 0 : index
    %29 = vector.load %arg6[%c0_13, %c0_14] : memref<1x64xf32, #tpu.memory_space<vmem>>, vector<1x64xf32>
    %30 = vector.broadcast %29 : vector<1x64xf32> to vector<128x64xf32>
    %31 = arith.addf %28, %30 : vector<128x64xf32>
    %32 = vector.extract_strided_slice %31 {offsets = [0, 0], sizes = [128, 8], strides = [1, 1]} : vector<128x64xf32> to vector<128x8xf32>
    %33 = tpu.transpose %32, [1, 0] : vector<128x8xf32> -> vector<8x128xf32>
    %34 = arith.truncf %33 : vector<8x128xf32> to vector<8x128xbf16>
    %c0_15 = arith.constant 0 : index
    %c0_16 = arith.constant 0 : index
    %c0_17 = arith.constant 0 : index
    %c0_18 = arith.constant 0 : index
    %35 = vector.load %arg7[%c0_15, %c0_16, %c0_17, %c0_18] : memref<1x4x8x128xbf16, #tpu.memory_space<vmem>>, vector<1x1x8x128xbf16>
    %36 = vector.shape_cast %35 : vector<1x1x8x128xbf16> to vector<8x128xbf16>
    %37 = vector.shape_cast %34 : vector<8x128xbf16> to vector<1x1x8x128xbf16>
    tpu.vector_store %arg7[%c0_15, %c0_16, %c0_17, %c0_18], %37 {strides = array<i32>} : memref<1x4x8x128xbf16, #tpu.memory_space<vmem>>, vector<1x1x8x128xbf16>,
    %38 = vector.extract_strided_slice %31 {offsets = [0, 32], sizes = [128, 8], strides = [1, 1]} : vector<128x64xf32> to vector<128x8xf32>
    %39 = arith.truncf %38 : vector<128x8xf32> to vector<128x8xbf16>
    %c0_19 = arith.constant 0 : index
    %c0_20 = arith.constant 0 : index
    %c0_21 = arith.constant 0 : index
    %c0_22 = arith.constant 0 : index
    %40 = vector.load %arg8[%c0_19, %c0_20, %c0_21, %c0_22] : memref<1x4x128x8xbf16, #tpu.memory_space<vmem>>, vector<1x1x128x8xbf16>
    %41 = vector.shape_cast %40 : vector<1x1x128x8xbf16> to vector<128x8xbf16>
    %42 = vector.shape_cast %39 : vector<128x8xbf16> to vector<1x1x128x8xbf16>
    tpu.vector_store %arg8[%c0_19, %c0_20, %c0_21, %c0_22], %42 {strides = array<i32>} : memref<1x4x128x8xbf16, #tpu.memory_space<vmem>>, vector<1x1x128x8xbf16>,
    %43 = vector.extract_strided_slice %31 {offsets = [0, 8], sizes = [128, 8], strides = [1, 1]} : vector<128x64xf32> to vector<128x8xf32>
    %44 = tpu.transpose %43, [1, 0] : vector<128x8xf32> -> vector<8x128xf32>
    %45 = arith.truncf %44 : vector<8x128xf32> to vector<8x128xbf16>
    %c0_23 = arith.constant 0 : index
    %c1 = arith.constant 1 : index
    %c0_24 = arith.constant 0 : index
    %c0_25 = arith.constant 0 : index
    %46 = vector.load %arg7[%c0_23, %c1, %c0_24, %c0_25] : memref<1x4x8x128xbf16, #tpu.memory_space<vmem>>, vector<1x1x8x128xbf16>
    %47 = vector.shape_cast %46 : vector<1x1x8x128xbf16> to vector<8x128xbf16>
    %48 = vector.shape_cast %45 : vector<8x128xbf16> to vector<1x1x8x128xbf16>
    tpu.vector_store %arg7[%c0_23, %c1, %c0_24, %c0_25], %48 {strides = array<i32>} : memref<1x4x8x128xbf16, #tpu.memory_space<vmem>>, vector<1x1x8x128xbf16>,
    %49 = vector.extract_strided_slice %31 {offsets = [0, 40], sizes = [128, 8], strides = [1, 1]} : vector<128x64xf32> to vector<128x8xf32>
    %50 = arith.truncf %49 : vector<128x8xf32> to vector<128x8xbf16>
    %c0_26 = arith.constant 0 : index
    %c1_27 = arith.constant 1 : index
    %c0_28 = arith.constant 0 : index
    %c0_29 = arith.constant 0 : index
    %51 = vector.load %arg8[%c0_26, %c1_27, %c0_28, %c0_29] : memref<1x4x128x8xbf16, #tpu.memory_space<vmem>>, vector<1x1x128x8xbf16>
    %52 = vector.shape_cast %51 : vector<1x1x128x8xbf16> to vector<128x8xbf16>
    %53 = vector.shape_cast %50 : vector<128x8xbf16> to vector<1x1x128x8xbf16>
    tpu.vector_store %arg8[%c0_26, %c1_27, %c0_28, %c0_29], %53 {strides = array<i32>} : memref<1x4x128x8xbf16, #tpu.memory_space<vmem>>, vector<1x1x128x8xbf16>,
    %54 = vector.extract_strided_slice %31 {offsets = [0, 16], sizes = [128, 8], strides = [1, 1]} : vector<128x64xf32> to vector<128x8xf32>
    %55 = tpu.transpose %54, [1, 0] : vector<128x8xf32> -> vector<8x128xf32>
    %56 = arith.truncf %55 : vector<8x128xf32> to vector<8x128xbf16>
    %c0_30 = arith.constant 0 : index
    %c2 = arith.constant 2 : index
    %c0_31 = arith.constant 0 : index
    %c0_32 = arith.constant 0 : index
    %57 = vector.load %arg7[%c0_30, %c2, %c0_31, %c0_32] : memref<1x4x8x128xbf16, #tpu.memory_space<vmem>>, vector<1x1x8x128xbf16>
    %58 = vector.shape_cast %57 : vector<1x1x8x128xbf16> to vector<8x128xbf16>
    %59 = vector.shape_cast %56 : vector<8x128xbf16> to vector<1x1x8x128xbf16>
    tpu.vector_store %arg7[%c0_30, %c2, %c0_31, %c0_32], %59 {strides = array<i32>} : memref<1x4x8x128xbf16, #tpu.memory_space<vmem>>, vector<1x1x8x128xbf16>,
    %60 = vector.extract_strided_slice %31 {offsets = [0, 48], sizes = [128, 8], strides = [1, 1]} : vector<128x64xf32> to vector<128x8xf32>
    %61 = arith.truncf %60 : vector<128x8xf32> to vector<128x8xbf16>
    %c0_33 = arith.constant 0 : index
    %c2_34 = arith.constant 2 : index
    %c0_35 = arith.constant 0 : index
    %c0_36 = arith.constant 0 : index
    %62 = vector.load %arg8[%c0_33, %c2_34, %c0_35, %c0_36] : memref<1x4x128x8xbf16, #tpu.memory_space<vmem>>, vector<1x1x128x8xbf16>
    %63 = vector.shape_cast %62 : vector<1x1x128x8xbf16> to vector<128x8xbf16>
    %64 = vector.shape_cast %61 : vector<128x8xbf16> to vector<1x1x128x8xbf16>
    tpu.vector_store %arg8[%c0_33, %c2_34, %c0_35, %c0_36], %64 {strides = array<i32>} : memref<1x4x128x8xbf16, #tpu.memory_space<vmem>>, vector<1x1x128x8xbf16>,
    %65 = vector.extract_strided_slice %31 {offsets = [0, 24], sizes = [128, 8], strides = [1, 1]} : vector<128x64xf32> to vector<128x8xf32>
    %66 = tpu.transpose %65, [1, 0] : vector<128x8xf32> -> vector<8x128xf32>
    %67 = arith.truncf %66 : vector<8x128xf32> to vector<8x128xbf16>
    %c0_37 = arith.constant 0 : index
    %c3 = arith.constant 3 : index
    %c0_38 = arith.constant 0 : index
    %c0_39 = arith.constant 0 : index
    %68 = vector.load %arg7[%c0_37, %c3, %c0_38, %c0_39] : memref<1x4x8x128xbf16, #tpu.memory_space<vmem>>, vector<1x1x8x128xbf16>
    %69 = vector.shape_cast %68 : vector<1x1x8x128xbf16> to vector<8x128xbf16>
    %70 = vector.shape_cast %67 : vector<8x128xbf16> to vector<1x1x8x128xbf16>
    tpu.vector_store %arg7[%c0_37, %c3, %c0_38, %c0_39], %70 {strides = array<i32>} : memref<1x4x8x128xbf16, #tpu.memory_space<vmem>>, vector<1x1x8x128xbf16>,
    %71 = vector.extract_strided_slice %31 {offsets = [0, 56], sizes = [128, 8], strides = [1, 1]} : vector<128x64xf32> to vector<128x8xf32>
    %72 = arith.truncf %71 : vector<128x8xf32> to vector<128x8xbf16>
    %c0_40 = arith.constant 0 : index
    %c3_41 = arith.constant 3 : index
    %c0_42 = arith.constant 0 : index
    %c0_43 = arith.constant 0 : index
    %73 = vector.load %arg8[%c0_40, %c3_41, %c0_42, %c0_43] : memref<1x4x128x8xbf16, #tpu.memory_space<vmem>>, vector<1x1x128x8xbf16>
    %74 = vector.shape_cast %73 : vector<1x1x128x8xbf16> to vector<128x8xbf16>
    %75 = vector.shape_cast %72 : vector<128x8xbf16> to vector<1x1x128x8xbf16>
    tpu.vector_store %arg8[%c0_40, %c3_41, %c0_42, %c0_43], %75 {strides = array<i32>} : memref<1x4x128x8xbf16, #tpu.memory_space<vmem>>, vector<1x1x128x8xbf16>,
    return
  }
  func.func @transform_0(%arg0: i32, %arg1: i32) -> (i32, i32, i32) {
    %c0_i32 = arith.constant 0 : i32
    %c0_i32_0 = arith.constant 0 : i32
    return %arg0, %arg1, %c0_i32 : i32, i32, i32
  }
  func.func @transform_1(%arg0: i32, %arg1: i32) -> (i32, i32) {
    %c0_i32 = arith.constant 0 : i32
    %c0_i32_0 = arith.constant 0 : i32
    %c0_i32_1 = arith.constant 0 : i32
    return %c0_i32, %c0_i32_0 : i32, i32
  }
  func.func @transform_2(%arg0: i32, %arg1: i32) -> (i32, i32) {
    %c0_i32 = arith.constant 0 : i32
    %c0_i32_0 = arith.constant 0 : i32
    %c0_i32_1 = arith.constant 0 : i32
    return %c0_i32, %c0_i32_0 : i32, i32
  }
  func.func @transform_3(%arg0: i32, %arg1: i32) -> (i32, i32) {
    %c0_i32 = arith.constant 0 : i32
    %c0_i32_0 = arith.constant 0 : i32
    %c0_i32_1 = arith.constant 0 : i32
    return %c0_i32, %c0_i32_0 : i32, i32
  }
  func.func @transform_4(%arg0: i32, %arg1: i32) -> (i32, i32) {
    %c0_i32 = arith.constant 0 : i32
    %c0_i32_0 = arith.constant 0 : i32
    %c0_i32_1 = arith.constant 0 : i32
    return %c0_i32, %c0_i32_0 : i32, i32
  }
  func.func @transform_5(%arg0: i32, %arg1: i32) -> (i32, i32, i32, i32) {
    %c0_i32 = arith.constant 0 : i32
    %c0_i32_0 = arith.constant 0 : i32
    %c0_i32_1 = arith.constant 0 : i32
    return %arg0, %c0_i32, %c0_i32_0, %arg1 : i32, i32, i32, i32
  }
  func.func @transform_6(%arg0: i32, %arg1: i32) -> (i32, i32, i32, i32) {
    %c0_i32 = arith.constant 0 : i32
    %c0_i32_0 = arith.constant 0 : i32
    %c0_i32_1 = arith.constant 0 : i32
    return %arg0, %c0_i32, %arg1, %c0_i32_0 : i32, i32, i32, i32
  }
}

module attributes {stable_mosaic.version = 11 : i64} {
  func.func @kv_kernel(%arg0: i32, %arg1: i32, %arg2: memref<1x128x32xf32, #tpu.memory_space<vmem>>, %arg3: memref<1x32xf32, #tpu.memory_space<vmem>>, %arg4: memref<1x32xf32, #tpu.memory_space<vmem>>, %arg5: memref<32x64xbf16, #tpu.memory_space<vmem>>, %arg6: memref<1x64xf32, #tpu.memory_space<vmem>>, %arg7: memref<1x4x8x128xbf16, #tpu.memory_space<vmem>>, %arg8: memref<1x4x128x8xbf16, #tpu.memory_space<vmem>>) attributes {dimension_semantics = [#tpu.dimension_semantics<parallel>, #tpu.dimension_semantics<parallel>], iteration_bounds = array<i64: 2, 2>, scalar_prefetch = 0 : i64, scratch_operands = 0 : i64, tpu.core_type = #tpu.core_type<tc>, window_params = [{transform_indices = @transform_0, window_bounds = array<i64: 1, 128, 32>}, {pipeline_mode = #tpu.pipeline_mode<synchronous>, transform_indices = @transform_1, window_bounds = array<i64: 1, 32>}, {pipeline_mode = #tpu.pipeline_mode<synchronous>, transform_indices = @transform_2, window_bounds = array<i64: 1, 32>}, {pipeline_mode = #tpu.pipeline_mode<synchronous>, transform_indices = @transform_3, window_bounds = array<i64: 32, 64>}, {pipeline_mode = #tpu.pipeline_mode<synchronous>, transform_indices = @transform_4, window_bounds = array<i64: 1, 64>}, {transform_indices = @transform_5, window_bounds = array<i64: 1, 4, 8, 128>}, {transform_indices = @transform_6, window_bounds = array<i64: 1, 4, 128, 8>}]} {
    %c0 = arith.constant 0 : index
    %c0_0 = arith.constant 0 : index
    %c0_1 = arith.constant 0 : index
    %0 = vector.load %arg2[%c0, %c0_0, %c0_1] : memref<1x128x32xf32, #tpu.memory_space<vmem>>, vector<1x128x32xf32>
    %1 = vector.shape_cast %0 : vector<1x128x32xf32> to vector<128x32xf32>
    %c0_2 = arith.constant 0 : index
    %c0_3 = arith.constant 0 : index
    %2 = vector.load %arg3[%c0_2, %c0_3] : memref<1x32xf32, #tpu.memory_space<vmem>>, vector<1x32xf32>
    %c0_4 = arith.constant 0 : index
    %c0_5 = arith.constant 0 : index
    %3 = vector.load %arg4[%c0_4, %c0_5] : memref<1x32xf32, #tpu.memory_space<vmem>>, vector<1x32xf32>
    %cst = arith.constant dense<0.000000e+00> : vector<128xf32>
    %4 = vector.multi_reduction <add>, %1, %cst [1] : vector<128x32xf32> to vector<128xf32>
    %5 = vector.shape_cast %4 : vector<128xf32> to vector<128x1xf32>
    %cst_6 = arith.constant 3.200000e+01 : f32
    %6 = vector.broadcast %cst_6 : f32 to vector<128x1xf32>
    %7 = arith.divf %5, %6 : vector<128x1xf32>
    %8 = vector.broadcast %7 : vector<128x1xf32> to vector<128x32xf32>
    %9 = arith.subf %1, %8 : vector<128x32xf32>
    %10 = arith.mulf %9, %9 : vector<128x32xf32>
    %cst_7 = arith.constant dense<0.000000e+00> : vector<128xf32>
    %11 = vector.multi_reduction <add>, %10, %cst_7 [1] : vector<128x32xf32> to vector<128xf32>
    %12 = vector.shape_cast %11 : vector<128xf32> to vector<128x1xf32>
    %cst_8 = arith.constant 3.200000e+01 : f32
    %13 = vector.broadcast %cst_8 : f32 to vector<128x1xf32>
    %14 = arith.divf %12, %13 : vector<128x1xf32>
    %15 = vector.broadcast %7 : vector<128x1xf32> to vector<128x32xf32>
    %16 = arith.subf %1, %15 : vector<128x32xf32>
    %cst_9 = arith.constant 9.99999974E-6 : f32
    %17 = vector.broadcast %cst_9 : f32 to vector<128x1xf32>
    %18 = arith.addf %14, %17 : vector<128x1xf32>
    %19 = math.rsqrt %18 : vector<128x1xf32>
    %20 = vector.broadcast %19 : vector<128x1xf32> to vector<128x32xf32>
    %21 = arith.mulf %16, %20 : vector<128x32xf32>
    %22 = vector.broadcast %2 : vector<1x32xf32> to vector<128x32xf32>
    %23 = arith.mulf %21, %22 : vector<128x32xf32>
    %24 = vector.broadcast %3 : vector<1x32xf32> to vector<128x32xf32>
    %25 = arith.addf %23, %24 : vector<128x32xf32>
    %26 = arith.truncf %25 : vector<128x32xf32> to vector<128x32xbf16>
    %c0_10 = arith.constant 0 : index
    %c0_11 = arith.constant 0 : index
    %27 = vector.load %arg5[%c0_10, %c0_11] : memref<32x64xbf16, #tpu.memory_space<vmem>>, vector<32x64xbf16>
    %cst_12 = arith.constant dense<0.000000e+00> : vector<128x64xf32>
    %28 = tpu.matmul %26, %27, %cst_12 {dimension_numbers = #tpu.dot_dimension_numbers<[1], [0], [0], [1], [0, 0, 1, 1], [], []>} : vector<128x32xbf16>, vector<32x64xbf16>, vector<128x64xf32> -> vector<128x64xf32>
    %c0_13 = arith.constant 0 : index
    %c0_14 = arith.constant 0 : index
    %29 = vector.load %arg6[%c0_13, %c0_14] : memref<1x64xf32, #tpu.memory_space<vmem>>, vector<1x64xf32>
    %30 = vector.broadcast %29 : vector<1x64xf32> to vector<128x64xf32>
    %31 = arith.addf %28, %30 : vector<128x64xf32>
    %32 = vector.extract_strided_slice %31 {offsets = [0, 0], sizes = [128, 8], strides = [1, 1]} : vector<128x64xf32> to vector<128x8xf32>
    %33 = tpu.transpose %32, [1, 0] : vector<128x8xf32> -> vector<8x128xf32>
    %34 = arith.truncf %33 : vector<8x128xf32> to vector<8x128xbf16>
    %c0_15 = arith.constant 0 : index
    %c0_16 = arith.constant 0 : index
    %c0_17 = arith.constant 0 : index
    %c0_18 = arith.constant 0 : index
    %35 = vector.load %arg7[%c0_15, %c0_16, %c0_17, %c0_18] : memref<1x4x8x128xbf16, #tpu.memory_space<vmem>>, vector<1x1x8x128xbf16>
    %36 = vector.shape_cast %35 : vector<1x1x8x128xbf16> to vector<8x128xbf16>
    %37 = vector.shape_cast %34 : vector<8x128xbf16> to vector<1x1x8x128xbf16>
    tpu.vector_store %arg7[%c0_15, %c0_16, %c0_17, %c0_18], %37 {strides = array<i32>} : memref<1x4x8x128xbf16, #tpu.memory_space<vmem>>, vector<1x1x8x128xbf16>,
    %38 = vector.extract_strided_slice %31 {offsets = [0, 32], sizes = [128, 8], strides = [1, 1]} : vector<128x64xf32> to vector<128x8xf32>
    %39 = arith.truncf %38 : vector<128x8xf32> to vector<128x8xbf16>
    %c0_19 = arith.constant 0 : index
    %c0_20 = arith.constant 0 : index
    %c0_21 = arith.constant 0 : index
    %c0_22 = arith.constant 0 : index
    %40 = vector.load %arg8[%c0_19, %c0_20, %c0_21, %c0_22] : memref<1x4x128x8xbf16, #tpu.memory_space<vmem>>, vector<1x1x128x8xbf16>
    %41 = vector.shape_cast %40 : vector<1x1x128x8xbf16> to vector<128x8xbf16>
    %42 = vector.shape_cast %39 : vector<128x8xbf16> to vector<1x1x128x8xbf16>
    tpu.vector_store %arg8[%c0_19, %c0_20, %c0_21, %c0_22], %42 {strides = array<i32>} : memref<1x4x128x8xbf16, #tpu.memory_space<vmem>>, vector<1x1x128x8xbf16>,
    %43 = vector.extract_strided_slice %31 {offsets = [0, 8], sizes = [128, 8], strides = [1, 1]} : vector<128x64xf32> to vector<128x8xf32>
    %44 = tpu.transpose %43, [1, 0] : vector<128x8xf32> -> vector<8x128xf32>
    %45 = arith.truncf %44 : vector<8x128xf32> to vector<8x128xbf16>
    %c0_23 = arith.constant 0 : index
    %c1 = arith.constant 1 : index
    %c0_24 = arith.constant 0 : index
    %c0_25 = arith.constant 0 : index
    %46 = vector.load %arg7[%c0_23, %c1, %c0_24, %c0_25] : memref<1x4x8x128xbf16, #tpu.memory_space<vmem>>, vector<1x1x8x128xbf16>
    %47 = vector.shape_cast %46 : vector<1x1x8x128xbf16> to vector<8x128xbf16>
    %48 = vector.shape_cast %45 : vector<8x128xbf16> to vector<1x1x8x128xbf16>
    tpu.vector_store %arg7[%c0_23, %c1, %c0_24, %c0_25], %48 {strides = array<i32>} : memref<1x4x8x128xbf16, #tpu.memory_space<vmem>>, vector<1x1x8x128xbf16>,
    %49 = vector.extract_strided_slice %31 {offsets = [0, 40], sizes = [128, 8], strides = [1, 1]} : vector<128x64xf32> to vector<128x8xf32>
    %50 = arith.truncf %49 : vector<128x8xf32> to vector<128x8xbf16>
    %c0_26 = arith.constant 0 : index
    %c1_27 = arith.constant 1 : index
    %c0_28 = arith.constant 0 : index
    %c0_29 = arith.constant 0 : index
    %51 = vector.load %arg8[%c0_26, %c1_27, %c0_28, %c0_29] : memref<1x4x128x8xbf16, #tpu.memory_space<vmem>>, vector<1x1x128x8xbf16>
    %52 = vector.shape_cast %51 : vector<1x1x128x8xbf16> to vector<128x8xbf16>
    %53 = vector.shape_cast %50 : vector<128x8xbf16> to vector<1x1x128x8xbf16>
    tpu.vector_store %arg8[%c0_26, %c1_27, %c0_28, %c0_29], %53 {strides = array<i32>} : memref<1x4x128x8xbf16, #tpu.memory_space<vmem>>, vector<1x1x128x8xbf16>,
    %54 = vector.extract_strided_slice %31 {offsets = [0, 16], sizes = [128, 8], strides = [1, 1]} : vector<128x64xf32> to vector<128x8xf32>
    %55 = tpu.transpose %54, [1, 0] : vector<128x8xf32> -> vector<8x128xf32>
    %56 = arith.truncf %55 : vector<8x128xf32> to vector<8x128xbf16>
    %c0_30 = arith.constant 0 : index
    %c2 = arith.constant 2 : index
    %c0_31 = arith.constant 0 : index
    %c0_32 = arith.constant 0 : index
    %57 = vector.load %arg7[%c0_30, %c2, %c0_31, %c0_32] : memref<1x4x8x128xbf16, #tpu.memory_space<vmem>>, vector<1x1x8x128xbf16>
    %58 = vector.shape_cast %57 : vector<1x1x8x128xbf16> to vector<8x128xbf16>
    %59 = vector.shape_cast %56 : vector<8x128xbf16> to vector<1x1x8x128xbf16>
    tpu.vector_store %arg7[%c0_30, %c2, %c0_31, %c0_32], %59 {strides = array<i32>} : memref<1x4x8x128xbf16, #tpu.memory_space<vmem>>, vector<1x1x8x128xbf16>,
    %60 = vector.extract_strided_slice %31 {offsets = [0, 48], sizes = [128, 8], strides = [1, 1]} : vector<128x64xf32> to vector<128x8xf32>
    %61 = arith.truncf %60 : vector<128x8xf32> to vector<128x8xbf16>
    %c0_33 = arith.constant 0 : index
    %c2_34 = arith.constant 2 : index
    %c0_35 = arith.constant 0 : index
    %c0_36 = arith.constant 0 : index
    %62 = vector.load %arg8[%c0_33, %c2_34, %c0_35, %c0_36] : memref<1x4x128x8xbf16, #tpu.memory_space<vmem>>, vector<1x1x128x8xbf16>
    %63 = vector.shape_cast %62 : vector<1x1x128x8xbf16> to vector<128x8xbf16>
    %64 = vector.shape_cast %61 : vector<128x8xbf16> to vector<1x1x128x8xbf16>
    tpu.vector_store %arg8[%c0_33, %c2_34, %c0_35, %c0_36], %64 {strides = array<i32>} : memref<1x4x128x8xbf16, #tpu.memory_space<vmem>>, vector<1x1x128x8xbf16>,
    %65 = vector.extract_strided_slice %31 {offsets = [0, 24], sizes = [128, 8], strides = [1, 1]} : vector<128x64xf32> to vector<128x8xf32>
    %66 = tpu.transpose %65, [1, 0] : vector<128x8xf32> -> vector<8x128xf32>
    %67 = arith.truncf %66 : vector<8x128xf32> to vector<8x128xbf16>
    %c0_37 = arith.constant 0 : index
    %c3 = arith.constant 3 : index
    %c0_38 = arith.constant 0 : index
    %c0_39 = arith.constant 0 : index
    %68 = vector.load %arg7[%c0_37, %c3, %c0_38, %c0_39] : memref<1x4x8x128xbf16, #tpu.memory_space<vmem>>, vector<1x1x8x128xbf16>
    %69 = vector.shape_cast %68 : vector<1x1x8x128xbf16> to vector<8x128xbf16>
    %70 = vector.shape_cast %67 : vector<8x128xbf16> to vector<1x1x8x128xbf16>
    tpu.vector_store %arg7[%c0_37, %c3, %c0_38, %c0_39], %70 {strides = array<i32>} : memref<1x4x8x128xbf16, #tpu.memory_space<vmem>>, vector<1x1x8x128xbf16>,
    %71 = vector.extract_strided_slice %31 {offsets = [0, 56], sizes = [128, 8], strides = [1, 1]} : vector<128x64xf32> to vector<128x8xf32>
    %72 = arith.truncf %71 : vector<128x8xf32> to vector<128x8xbf16>
    %c0_40 = arith.constant 0 : index
    %c3_41 = arith.constant 3 : index
    %c0_42 = arith.constant 0 : index
    %c0_43 = arith.constant 0 : index
    %73 = vector.load %arg8[%c0_40, %c3_41, %c0_42, %c0_43] : memref<1x4x128x8xbf16, #tpu.memory_space<vmem>>, vector<1x1x128x8xbf16>
    %74 = vector.shape_cast %73 : vector<1x1x128x8xbf16> to vector<128x8xbf16>
    %75 = vector.shape_cast %72 : vector<128x8xbf16> to vector<1x1x128x8xbf16>
    tpu.vector_store %arg8[%c0_40, %c3_41, %c0_42, %c0_43], %75 {strides = array<i32>} : memref<1x4x128x8xbf16, #tpu.memory_space<vmem>>, vector<1x1x128x8xbf16>,
    return
  }
  func.func @transform_0(%arg0: i32, %arg1: i32) -> (i32, i32, i32) {
    %c0_i32 = arith.constant 0 : i32
    %c0_i32_0 = arith.constant 0 : i32
    return %arg0, %arg1, %c0_i32 : i32, i32, i32
  }
  func.func @transform_1(%arg0: i32, %arg1: i32) -> (i32, i32) {
    %c0_i32 = arith.constant 0 : i32
    %c0_i32_0 = arith.constant 0 : i32
    %c0_i32_1 = arith.constant 0 : i32
    return %c0_i32, %c0_i32_0 : i32, i32
  }
  func.func @transform_2(%arg0: i32, %arg1: i32) -> (i32, i32) {
    %c0_i32 = arith.constant 0 : i32
    %c0_i32_0 = arith.constant 0 : i32
    %c0_i32_1 = arith.constant 0 : i32
    return %c0_i32, %c0_i32_0 : i32, i32
  }
  func.func @transform_3(%arg0: i32, %arg1: i32) -> (i32, i32) {
    %c0_i32 = arith.constant 0 : i32
    %c0_i32_0 = arith.constant 0 : i32
    %c0_i32_1 = arith.constant 0 : i32
    return %c0_i32, %c0_i32_0 : i32, i32
  }
  func.func @transform_4(%arg0: i32, %arg1: i32) -> (i32, i32) {
    %c0_i32 = arith.constant 0 : i32
    %c0_i32_0 = arith.constant 0 : i32
    %c0_i32_1 = arith.constant 0 : i32
    return %c0_i32, %c0_i32_0 : i32, i32
  }
  func.func @transform_5(%arg0: i32, %arg1: i32) -> (i32, i32, i32, i32) {
    %c0_i32 = arith.constant 0 : i32
    %c0_i32_0 = arith.constant 0 : i32
    %c0_i32_1 = arith.constant 0 : i32
    return %arg0, %c0_i32, %c0_i32_0, %arg1 : i32, i32, i32, i32
  }
  func.func @transform_6(%arg0: i32, %arg1: i32) -> (i32, i32, i32, i32) {
    %c0_i32 = arith.constant 0 : i32
    %c0_i32_0 = arith.constant 0 : i32
    %c0_i32_1 = arith.constant 0 : i32
    return %arg0, %c0_i32, %arg1, %c0_i32_0 : i32, i32, i32, i32
  }
}

</mosaic_0001>

<llo_original>
// kernel: tpu_custom_call.1
$region0: #{tpu_custom_call.1}
  #allocation0 [shape = 'u32[]', space=smem, size = 0x4, offset = 0x4, fixed_abs, tag = 'smem constant byte address 0x4 - core index']
  #allocation1 [shape = 'u32[72,128]{1,0:T(1,128)}', space=vmem, size = 0x9000, scoped, tag = 'internal scratch']
  %s0 = inlined_call_operand.vmem [shape: f32[2,256,32], index: 0, kind: input, shape index: {}]
  %s1 = inlined_call_operand.vmem [shape: f32[1,32], index: 1, kind: input, shape index: {}]
  %s2 = inlined_call_operand.vmem [shape: f32[1,32], index: 2, kind: input, shape index: {}]
  %s3 = inlined_call_operand.vmem [shape: bf16[32,64], index: 3, kind: input, shape index: {}]
  %s4 = inlined_call_operand.vmem [shape: f32[1,64], index: 4, kind: input, shape index: {}]
  %s5 = inlined_call_operand.hbm [shape: bf16[2,4,8,256], index: 5, kind: output, shape index: {0}]
  %s6 = inlined_call_operand.vmem [shape: bf16[2,4,256,8], index: 6, kind: output, shape index: {1}]
  %7 = xla_tuple %s5, %s6
  %s8 = sld [smem:[#allocation0]]
  $region98: #{tpu_custom_call.1} parent=0
    _
  %s10 = ssub.s32 1, %s8
  %s11 = scalar_select 0, %s10, %s8
  $region1: #{tpu_custom_call.1} parent=0
    #allocation2 [shape = 'u8[16384]{0}', space=vmem, size = 0x4000, scoped, tag = 'output window, operand 0']
    #allocation3 [shape = 's32[2]{0}', space=sflag, size = 0x8, scoped, tag = 'scoped memory for tpu_custom_call.1']
    #allocation4 [shape = 'u8[262144]{0}', space=vmem, size = 0x40000, scoped, tag = 'output window, operand 1']
    %12 = vsyncpa [#allocation3], 0
    %s13 = scalar_lea.sflag [#allocation3], 1
    %14 = vsyncpa %s13, 0
    loop: start=0, step=1, limit=6
    $region2: #{tpu_custom_call.1} parent=1 // loop_pre_header
      _
    $region3: #{tpu_custom_call.1} parent=1 // loop_header
      %s16 = sphi 0, %s20
      %p17 = scmp.ge.s32.totalorder %s16, 6
      %s23 = sphi 0, %s35
      %s24 = sphi 0, %s31
      %s25 = sphi 0, %s23
      %s26 = sphi 0, %s24
      %s27 = sphi 0, %s25
      %s28 = sphi 0, %s26
      %s40 = sphi 0, %s42
      %s43 = sphi 0, %s40
      %s44 = sphi 0, %s43
      %s60 = sphi 0, %s44
      %s64 = sphi 0, %s64
      %s66 = sphi 0, %s64
      %s67 = sphi 0, %s66
      %s81 = sphi 0, %s67
      %s85 = sphi 0, %s85
      %s87 = sphi 0, %s85
      %s88 = sphi 0, %s87
      %s102 = sphi 0, %s88
      %s106 = sphi 0, %s106
      %s108 = sphi 0, %s106
      %s109 = sphi 0, %s108
      %s123 = sphi 0, %s109
      %s127 = sphi 0, %s127
      %s129 = sphi 0, %s127
      %s130 = sphi 0, %s129
      %s144 = sphi 0, %s130
      %s152 = sphi 0, %s154
      %s155 = sphi 0, %s152
      %s156 = sphi 0, %s155
      %s172 = sphi 0, %s156
      %s180 = sphi 0, %s182
      %s183 = sphi 0, %s180
      %s184 = sphi 0, %s183
      %s200 = sphi 0, %s184
    $region4: #{tpu_custom_call.1} parent=1 // loop_header_branch
      %19 = sbr.rel (%p17) target = $region8
    $region5: #{tpu_custom_call.1} parent=1 // loop_body
      %s21 = ssub.s32 %s16, 1
      %s22 = ssub.s32 %s16, 2
      %s29 = sadd.s32 1, %s24
      %p30 = scmp.ge.s32.totalorder %s29, 2
      %s31 = scalar_select %p30, 0, %s29
      %s32 = sadd.s32 1, %s23
      %s33 = scalar_select %p30, %s32, %s23
      %p34 = scmp.ge.s32.totalorder %s33, 2
      %s35 = scalar_select %p34, 0, %s33
      %s36 = ssub.s32 %s23, %s35
      %s37 = ssub.s32 %s24, %s31
      %s38 = sor.u32 %s36, %s37
      %p39 = scmp.eq.s32.totalorder %s38, 0
      %s41 = sadd.s32 %s40, 1
      %s42 = scalar_select %p39, %s40, %s41
      %p45 = pneg %p39
      %p46 = scmp.eq.s32.totalorder %s16, 3
      %p47 = por %p45, %p46
      %p48 = scmp.ne.s32.totalorder %s40, %s43
      %p49 = scmp.eq.s32.totalorder %s16, 0
      %p50 = por %p48, %p49
      %p51 = scmp.ne.s32.totalorder %s40, %s43
      %p52 = scmp.eq.s32.totalorder %s21, 3
      %p53 = por %p51, %p52
      %p54 = scmp.ne.s32.totalorder %s43, %s44
      %p55 = scmp.eq.s32.totalorder %s21, 0
      %p56 = por %p54, %p55
      %p57 = scmp.ne.s32.totalorder %s43, %s44
      %p58 = scmp.eq.s32.totalorder %s22, 3
      %p59 = por %p57, %p58
      %p61 = scmp.ne.s32.totalorder %s44, %s60
      %p62 = scmp.eq.s32.totalorder %s22, 0
      %p63 = por %p61, %p62
      %s65 = sadd.s32 %s64, 1
      %p68 = scmp.eq.s32.totalorder %s16, 3
      %p69 = scmp.ne.s32.totalorder %s64, %s66
      %p70 = scmp.eq.s32.totalorder %s16, 0
      %p71 = por %p69, %p70
      %p72 = scmp.ne.s32.totalorder %s64, %s66
      %p73 = scmp.eq.s32.totalorder %s21, 3
      %p74 = por %p72, %p73
      %p75 = scmp.ne.s32.totalorder %s66, %s67
      %p76 = scmp.eq.s32.totalorder %s21, 0
      %p77 = por %p75, %p76
      %p78 = scmp.ne.s32.totalorder %s66, %s67
      %p79 = scmp.eq.s32.totalorder %s22, 3
      %p80 = por %p78, %p79
      %p82 = scmp.ne.s32.totalorder %s67, %s81
      %p83 = scmp.eq.s32.totalorder %s22, 0
      %p84 = por %p82, %p83
      %s86 = sadd.s32 %s85, 1
      %p89 = scmp.eq.s32.totalorder %s16, 3
      %p90 = scmp.ne.s32.totalorder %s85, %s87
      %p91 = scmp.eq.s32.totalorder %s16, 0
      %p92 = por %p90, %p91
      %p93 = scmp.ne.s32.totalorder %s85, %s87
      %p94 = scmp.eq.s32.totalorder %s21, 3
      %p95 = por %p93, %p94
      %p96 = scmp.ne.s32.totalorder %s87, %s88
      %p97 = scmp.eq.s32.totalorder %s21, 0
      %p98 = por %p96, %p97
      %p99 = scmp.ne.s32.totalorder %s87, %s88
      %p100 = scmp.eq.s32.totalorder %s22, 3
      %p101 = por %p99, %p100
      %p103 = scmp.ne.s32.totalorder %s88, %s102
      %p104 = scmp.eq.s32.totalorder %s22, 0
      %p105 = por %p103, %p104
      %s107 = sadd.s32 %s106, 1
      %p110 = scmp.eq.s32.totalorder %s16, 3
      %p111 = scmp.ne.s32.totalorder %s106, %s108
      %p112 = scmp.eq.s32.totalorder %s16, 0
      %p113 = por %p111, %p112
      %p114 = scmp.ne.s32.totalorder %s106, %s108
      %p115 = scmp.eq.s32.totalorder %s21, 3
      %p116 = por %p114, %p115
      %p117 = scmp.ne.s32.totalorder %s108, %s109
      %p118 = scmp.eq.s32.totalorder %s21, 0
      %p119 = por %p117, %p118
      %p120 = scmp.ne.s32.totalorder %s108, %s109
      %p121 = scmp.eq.s32.totalorder %s22, 3
      %p122 = por %p120, %p121
      %p124 = scmp.ne.s32.totalorder %s109, %s123
      %p125 = scmp.eq.s32.totalorder %s22, 0
      %p126 = por %p124, %p125
      %s128 = sadd.s32 %s127, 1
      %p131 = scmp.eq.s32.totalorder %s16, 3
      %p132 = scmp.ne.s32.totalorder %s127, %s129
      %p133 = scmp.eq.s32.totalorder %s16, 0
      %p134 = por %p132, %p133
      %p135 = scmp.ne.s32.totalorder %s127, %s129
      %p136 = scmp.eq.s32.totalorder %s21, 3
      %p137 = por %p135, %p136
      %p138 = scmp.ne.s32.totalorder %s129, %s130
      %p139 = scmp.eq.s32.totalorder %s21, 0
      %p140 = por %p138, %p139
      %p141 = scmp.ne.s32.totalorder %s129, %s130
      %p142 = scmp.eq.s32.totalorder %s22, 3
      %p143 = por %p141, %p142
      %p145 = scmp.ne.s32.totalorder %s130, %s144
      %p146 = scmp.eq.s32.totalorder %s22, 0
      %p147 = por %p145, %p146
      %s148 = ssub.s32 %s23, %s35
      %s149 = ssub.s32 %s24, %s31
      %s150 = sor.u32 %s148, %s149
      %p151 = scmp.eq.s32.totalorder %s150, 0
      %s153 = sadd.s32 %s152, 1
      %s154 = scalar_select %p151, %s152, %s153
      %p157 = pneg %p151
      %p158 = scmp.eq.s32.totalorder %s16, 3
      %p159 = por %p157, %p158
      %p160 = scmp.ne.s32.totalorder %s152, %s155
      %p161 = scmp.eq.s32.totalorder %s16, 0
      %p162 = por %p160, %p161
      %p163 = scmp.ne.s32.totalorder %s152, %s155
      %p164 = scmp.eq.s32.totalorder %s21, 3
      %p165 = por %p163, %p164
      %p166 = scmp.ne.s32.totalorder %s155, %s156
      %p167 = scmp.eq.s32.totalorder %s21, 0
      %p168 = por %p166, %p167
      %p169 = scmp.ne.s32.totalorder %s155, %s156
      %p170 = scmp.eq.s32.totalorder %s22, 3
      %p171 = por %p169, %p170
      %p173 = scmp.ne.s32.totalorder %s156, %s172
      %p174 = scmp.eq.s32.totalorder %s22, 0
      %p175 = por %p173, %p174
      %s176 = ssub.s32 %s23, %s35
      %s177 = ssub.s32 %s24, %s31
      %s178 = sor.u32 %s176, %s177
      %p179 = scmp.eq.s32.totalorder %s178, 0
      %s181 = sadd.s32 %s180, 1
      %s182 = scalar_select %p179, %s180, %s181
      %p185 = pneg %p179
      %p186 = scmp.eq.s32.totalorder %s16, 3
      %p187 = por %p185, %p186
      %p188 = scmp.ne.s32.totalorder %s180, %s183
      %p189 = scmp.eq.s32.totalorder %s16, 0
      %p190 = por %p188, %p189
      %p191 = scmp.ne.s32.totalorder %s180, %s183
      %p192 = scmp.eq.s32.totalorder %s21, 3
      %p193 = por %p191, %p192
      %p194 = scmp.ne.s32.totalorder %s183, %s184
      %p195 = scmp.eq.s32.totalorder %s21, 0
      %p196 = por %p194, %p195
      %p197 = scmp.ne.s32.totalorder %s183, %s184
      %p198 = scmp.eq.s32.totalorder %s22, 3
      %p199 = por %p197, %p198
      %p201 = scmp.ne.s32.totalorder %s184, %s200
      %p202 = scmp.eq.s32.totalorder %s22, 0
      %p203 = por %p201, %p202
      %p204 = scmp.le.s32.totalorder 1, %s16
      %p205 = scmp.lt.s32.totalorder %s16, 5
      %p206 = pnand %p204, %p205
      %p207 = pneg %p206
      // Predicated region
      $region9: #{tpu_custom_call.1} parent=5 // pred_check
        _
      $region10: #{tpu_custom_call.1} parent=5 // pred_check_branch
        %209 = sbr.rel (%p206) target = $region12
      $region11: #{tpu_custom_call.1} parent=5 // pred_region
        %s210 = ssub.s32 %s16, 1
        // Predicated region
        $region13: #{tpu_custom_call.1} parent=11 // pred_check
          %p211 = pneg %p77
        $region14: #{tpu_custom_call.1} parent=11 // pred_check_branch
          %213 = sbr.rel (%p211) target = $region16
        $region15: #{tpu_custom_call.1} parent=11 // pred_region
          _
        $region16: #{tpu_custom_call.1} parent=11 // pred_fallthru
          _
        // Predicated region
        $region17: #{tpu_custom_call.1} parent=11 // pred_check
          %p214 = pneg %p98
        $region18: #{tpu_custom_call.1} parent=11 // pred_check_branch
          %216 = sbr.rel (%p214) target = $region20
        $region19: #{tpu_custom_call.1} parent=11 // pred_region
          _
        $region20: #{tpu_custom_call.1} parent=11 // pred_fallthru
          _
        // Predicated region
        $region21: #{tpu_custom_call.1} parent=11 // pred_check
          %p217 = pneg %p119
        $region22: #{tpu_custom_call.1} parent=11 // pred_check_branch
          %219 = sbr.rel (%p217) target = $region24
        $region23: #{tpu_custom_call.1} parent=11 // pred_region
          _
        $region24: #{tpu_custom_call.1} parent=11 // pred_fallthru
          _
        // Predicated region
        $region25: #{tpu_custom_call.1} parent=11 // pred_check
          %p220 = pneg %p140
        $region26: #{tpu_custom_call.1} parent=11 // pred_check_branch
          %222 = sbr.rel (%p220) target = $region28
        $region27: #{tpu_custom_call.1} parent=11 // pred_region
          _
        $region28: #{tpu_custom_call.1} parent=11 // pred_fallthru
          _
      $region12: #{tpu_custom_call.1} parent=5 // pred_fallthru
        _
      %p223 = scmp.lt.s32.totalorder %s16, 4
      // Predicated region
      $region29: #{tpu_custom_call.1} parent=5 // pred_check
        %p224 = pneg %p223
      $region30: #{tpu_custom_call.1} parent=5 // pred_check_branch
        %226 = sbr.rel (%p224) target = $region32
      $region31: #{tpu_custom_call.1} parent=5 // pred_region
        // Predicated region
        $region33: #{tpu_custom_call.1} parent=31 // pred_check
          %p227 = pneg %p50
        $region34: #{tpu_custom_call.1} parent=31 // pred_check_branch
          %229 = sbr.rel (%p227) target = $region36
        $region35: #{tpu_custom_call.1} parent=31 // pred_region
          %s230 = smul.u32 16, %s24
          %p231 = scmp.lt.s32.totalorder %s23, 1
          %s232 = scalar_select %p231, %s23, 1
          %p233 = scmp.lt.s32.totalorder %s230, 31
          %s234 = scalar_select %p233, %s230, 31
          %s235 = smul.addr %s232, 32
          %s236 = sadd.s32 %s234, %s235
          %s237 = smul.addr %s236, 8
          %s238 = scalar_lea.vmem %s0, %s237
          %s239 = smul.u32 16, %s24
        $region36: #{tpu_custom_call.1} parent=31 // pred_fallthru
          _
      $region32: #{tpu_custom_call.1} parent=5 // pred_fallthru
        _
      %p240 = scmp.le.s32.totalorder 1, %s16
      %p241 = scmp.lt.s32.totalorder %s16, 5
      %p242 = pnand %p240, %p241
      %p243 = pneg %p242
      // Predicated region
      $region37: #{tpu_custom_call.1} parent=5 // pred_check
        _
      $region38: #{tpu_custom_call.1} parent=5 // pred_check_branch
        %245 = sbr.rel (%p242) target = $region40
      $region39: #{tpu_custom_call.1} parent=5 // pred_region
        %s246 = ssub.s32 %s16, 1
        %s247 = smul.u32 16, %s26
        %p248 = scmp.lt.s32.totalorder %s25, 1
        %s249 = scalar_select %p248, %s25, 1
        %p250 = scmp.lt.s32.totalorder %s247, 31
        %s251 = scalar_select %p250, %s247, 31
        %s252 = smul.addr %s249, 32
        %s253 = sadd.s32 %s251, %s252
        %s254 = smul.addr %s253, 8
        %s255 = scalar_lea.vmem %s0, %s254
        %p256 = pneg %p56
        %p257 = pneg %p53
        %p258 = pneg %p77
        %p259 = pneg %p74
        %p260 = pneg %p98
        %p261 = pneg %p95
        %p262 = pneg %p119
        %p263 = pneg %p116
        %p264 = pneg %p140
        %p265 = pneg %p137
        %p266 = pneg %p168
        %p267 = pneg %p165
        %s268 = sand.u32 %s155, 1
        %s269 = scalar_lea.sflag [#allocation3], %s268
        %s270 = sand.u32 %s155, 1
        %s271 = smul.addr %s270, 16
        %s272 = scalar_lea.vmem [#allocation2], %s271
        %p273 = pneg %p196
        %p274 = pneg %p193
        %s275 = sand.u32 %s183, 1
        %s276 = sand.u32 %s183, 1
        %s277 = smul.addr %s276, 256
        %s278 = scalar_lea.vmem [#allocation4], %s277
        %s279 = smul.u32 16, %s26
        %p280 = scmp.lt.s32.totalorder %s25, 1
        %s281 = scalar_select %p280, %s25, 1
        %p282 = scmp.lt.s32.totalorder %s279, 31
        %s283 = scalar_select %p282, %s279, 31
        %s284 = smul.addr %s281, 32
        %s285 = sadd.s32 %s283, %s284
        %s286 = smul.addr %s285, 8
        %s287 = scalar_lea.vmem %s0, %s286
        %s288 = smul.u32 16, %s26
        %s289 = smul.u32 16, %s26
        %v291 = vld [vmem:[%s287] sm:$0xff]
        %v292 = vld [vmem:[%s287 + $0x8] sm:$0xff]
        %v293 = vld [vmem:[%s287 + $0x10] sm:$0xff]
        %v294 = vld [vmem:[%s287 + $0x18] sm:$0xff]
        %v295 = vld [vmem:[%s287 + $0x20] sm:$0xff]
        %v296 = vld [vmem:[%s287 + $0x28] sm:$0xff]
        %v297 = vld [vmem:[%s287 + $0x30] sm:$0xff]
        %v298 = vld [vmem:[%s287 + $0x38] sm:$0xff]
        %v299 = vld [vmem:[%s287 + $0x40] sm:$0xff]
        %v300 = vld [vmem:[%s287 + $0x48] sm:$0xff]
        %v301 = vld [vmem:[%s287 + $0x50] sm:$0xff]
        %v302 = vld [vmem:[%s287 + $0x58] sm:$0xff]
        %v303 = vld [vmem:[%s287 + $0x60] sm:$0xff]
        %v304 = vld [vmem:[%s287 + $0x68] sm:$0xff]
        %v305 = vld [vmem:[%s287 + $0x70] sm:$0xff]
        %v306 = vld [vmem:[%s287 + $0x78] sm:$0xff]
        %v307 = vld [vmem:[%s1] sm:$0x1]
        %v308 = vld [vmem:[%s2] sm:$0x1]
        %vm309 = vcmask 261120
        %v310 = vsel %vm309, %v291, 0.0
        %311 = vadd.xlane.f32.xlu0 %v310
        %v312 = vpop.xlane.xlu0 %311
        %v313 = vsel %vm309, %v292, 0.0
        %314 = vadd.xlane.f32.xlu0 %v313
        %v315 = vpop.xlane.xlu0 %314
        %v316 = vsel %vm309, %v293, 0.0
        %317 = vadd.xlane.f32.xlu0 %v316
        %v318 = vpop.xlane.xlu0 %317
        %v319 = vsel %vm309, %v294, 0.0
        %320 = vadd.xlane.f32.xlu0 %v319
        %v321 = vpop.xlane.xlu0 %320
        %v322 = vsel %vm309, %v295, 0.0
        %323 = vadd.xlane.f32.xlu0 %v322
        %v324 = vpop.xlane.xlu0 %323
        %v325 = vsel %vm309, %v296, 0.0
        %326 = vadd.xlane.f32.xlu0 %v325
        %v327 = vpop.xlane.xlu0 %326
        %v328 = vsel %vm309, %v297, 0.0
        %329 = vadd.xlane.f32.xlu0 %v328
        %v330 = vpop.xlane.xlu0 %329
        %v331 = vsel %vm309, %v298, 0.0
        %332 = vadd.xlane.f32.xlu0 %v331
        %v333 = vpop.xlane.xlu0 %332
        %v334 = vsel %vm309, %v299, 0.0
        %335 = vadd.xlane.f32.xlu0 %v334
        %v336 = vpop.xlane.xlu0 %335
        %v337 = vsel %vm309, %v300, 0.0
        %338 = vadd.xlane.f32.xlu0 %v337
        %v339 = vpop.xlane.xlu0 %338
        %v340 = vsel %vm309, %v301, 0.0
        %341 = vadd.xlane.f32.xlu0 %v340
        %v342 = vpop.xlane.xlu0 %341
        %v343 = vsel %vm309, %v302, 0.0
        %344 = vadd.xlane.f32.xlu0 %v343
        %v345 = vpop.xlane.xlu0 %344
        %v346 = vsel %vm309, %v303, 0.0
        %347 = vadd.xlane.f32.xlu0 %v346
        %v348 = vpop.xlane.xlu0 %347
        %v349 = vsel %vm309, %v304, 0.0
        %350 = vadd.xlane.f32.xlu0 %v349
        %v351 = vpop.xlane.xlu0 %350
        %v352 = vsel %vm309, %v305, 0.0
        %353 = vadd.xlane.f32.xlu0 %v352
        %v354 = vpop.xlane.xlu0 %353
        %v355 = vsel %vm309, %v306, 0.0
        %356 = vadd.xlane.f32.xlu0 %v355
        %v357 = vpop.xlane.xlu0 %356
        %v358 = vrcp.pop 32.0
        %v359 = vmul.f32 32.0, %v358
        %v360 = vsub.f32 1.0, %v359
        %v361 = vmul.f32 %v358, %v360
        %v362 = vadd.f32 %v358, %v361
        %vm363 = vweird.f32 %v358
        %v364 = vsel %vm363, %v358, %v362
        %v365 = vmul.f32 %v312, %v364
        %v366 = vmul.f32 %v315, %v364
        %v367 = vmul.f32 %v318, %v364
        %v368 = vmul.f32 %v321, %v364
        %v369 = vmul.f32 %v324, %v364
        %v370 = vmul.f32 %v327, %v364
        %v371 = vmul.f32 %v330, %v364
        %v372 = vmul.f32 %v333, %v364
        %v373 = vmul.f32 %v336, %v364
        %v374 = vmul.f32 %v339, %v364
        %v375 = vmul.f32 %v342, %v364
        %v376 = vmul.f32 %v345, %v364
        %v377 = vmul.f32 %v348, %v364
        %v378 = vmul.f32 %v351, %v364
        %v379 = vmul.f32 %v354, %v364
        %v380 = vmul.f32 %v357, %v364
        %v381 = vsub.f32 %v291, %v365
        %v382 = vsub.f32 %v292, %v366
        %v383 = vsub.f32 %v293, %v367
        %v384 = vsub.f32 %v294, %v368
        %v385 = vsub.f32 %v295, %v369
        %v386 = vsub.f32 %v296, %v370
        %v387 = vsub.f32 %v297, %v371
        %v388 = vsub.f32 %v298, %v372
        %v389 = vsub.f32 %v299, %v373
        %v390 = vsub.f32 %v300, %v374
        %v391 = vsub.f32 %v301, %v375
        %v392 = vsub.f32 %v302, %v376
        %v393 = vsub.f32 %v303, %v377
        %v394 = vsub.f32 %v304, %v378
        %v395 = vsub.f32 %v305, %v379
        %v396 = vsub.f32 %v306, %v380
        %v397 = vmul.f32 %v381, %v381
        %v398 = vmul.f32 %v382, %v382
        %v399 = vmul.f32 %v383, %v383
        %v400 = vmul.f32 %v384, %v384
        %v401 = vmul.f32 %v385, %v385
        %v402 = vmul.f32 %v386, %v386
        %v403 = vmul.f32 %v387, %v387
        %v404 = vmul.f32 %v388, %v388
        %v405 = vmul.f32 %v389, %v389
        %v406 = vmul.f32 %v390, %v390
        %v407 = vmul.f32 %v391, %v391
        %v408 = vmul.f32 %v392, %v392
        %v409 = vmul.f32 %v393, %v393
        %v410 = vmul.f32 %v394, %v394
        %v411 = vmul.f32 %v395, %v395
        %v412 = vmul.f32 %v396, %v396
        %v413 = vsel %vm309, %v397, 0.0
        %414 = vadd.xlane.f32.xlu0 %v413
        %v415 = vpop.xlane.xlu0 %414
        %v416 = vsel %vm309, %v398, 0.0
        %417 = vadd.xlane.f32.xlu0 %v416
        %v418 = vpop.xlane.xlu0 %417
        %v419 = vsel %vm309, %v399, 0.0
        %420 = vadd.xlane.f32.xlu0 %v419
        %v421 = vpop.xlane.xlu0 %420
        %v422 = vsel %vm309, %v400, 0.0
        %423 = vadd.xlane.f32.xlu0 %v422
        %v424 = vpop.xlane.xlu0 %423
        %v425 = vsel %vm309, %v401, 0.0
        %426 = vadd.xlane.f32.xlu0 %v425
        %v427 = vpop.xlane.xlu0 %426
        %v428 = vsel %vm309, %v402, 0.0
        %429 = vadd.xlane.f32.xlu0 %v428
        %v430 = vpop.xlane.xlu0 %429
        %v431 = vsel %vm309, %v403, 0.0
        %432 = vadd.xlane.f32.xlu0 %v431
        %v433 = vpop.xlane.xlu0 %432
        %v434 = vsel %vm309, %v404, 0.0
        %435 = vadd.xlane.f32.xlu0 %v434
        %v436 = vpop.xlane.xlu0 %435
        %v437 = vsel %vm309, %v405, 0.0
        %438 = vadd.xlane.f32.xlu0 %v437
        %v439 = vpop.xlane.xlu0 %438
        %v440 = vsel %vm309, %v406, 0.0
        %441 = vadd.xlane.f32.xlu0 %v440
        %v442 = vpop.xlane.xlu0 %441
        %v443 = vsel %vm309, %v407, 0.0
        %444 = vadd.xlane.f32.xlu0 %v443
        %v445 = vpop.xlane.xlu0 %444
        %v446 = vsel %vm309, %v408, 0.0
        %447 = vadd.xlane.f32.xlu0 %v446
        %v448 = vpop.xlane.xlu0 %447
        %v449 = vsel %vm309, %v409, 0.0
        %450 = vadd.xlane.f32.xlu0 %v449
        %v451 = vpop.xlane.xlu0 %450
        %v452 = vsel %vm309, %v410, 0.0
        %453 = vadd.xlane.f32.xlu0 %v452
        %v454 = vpop.xlane.xlu0 %453
        %v455 = vsel %vm309, %v411, 0.0
        %456 = vadd.xlane.f32.xlu0 %v455
        %v457 = vpop.xlane.xlu0 %456
        %v458 = vsel %vm309, %v412, 0.0
        %459 = vadd.xlane.f32.xlu0 %v458
        %v460 = vpop.xlane.xlu0 %459
        %v461 = vmul.f32 %v415, %v364
        %v462 = vmul.f32 %v418, %v364
        %v463 = vmul.f32 %v421, %v364
        %v464 = vmul.f32 %v424, %v364
        %v465 = vmul.f32 %v427, %v364
        %v466 = vmul.f32 %v430, %v364
        %v467 = vmul.f32 %v433, %v364
        %v468 = vmul.f32 %v436, %v364
        %v469 = vmul.f32 %v439, %v364
        %v470 = vmul.f32 %v442, %v364
        %v471 = vmul.f32 %v445, %v364
        %v472 = vmul.f32 %v448, %v364
        %v473 = vmul.f32 %v451, %v364
        %v474 = vmul.f32 %v454, %v364
        %v475 = vmul.f32 %v457, %v364
        %v476 = vmul.f32 %v460, %v364
        %v477 = vadd.f32 %v461, 1e-05
        %v478 = vadd.f32 %v462, 1e-05
        %v479 = vadd.f32 %v463, 1e-05
        %v480 = vadd.f32 %v464, 1e-05
        %v481 = vadd.f32 %v465, 1e-05
        %v482 = vadd.f32 %v466, 1e-05
        %v483 = vadd.f32 %v467, 1e-05
        %v484 = vadd.f32 %v468, 1e-05
        %v485 = vadd.f32 %v469, 1e-05
        %v486 = vadd.f32 %v470, 1e-05
        %v487 = vadd.f32 %v471, 1e-05
        %v488 = vadd.f32 %v472, 1e-05
        %v489 = vadd.f32 %v473, 1e-05
        %v490 = vadd.f32 %v474, 1e-05
        %v491 = vadd.f32 %v475, 1e-05
        %v492 = vadd.f32 %v476, 1e-05
        %v493 = vrsqrt.pop %v477
        %v494 = vmul.f32 %v493, %v477
        %v495 = vmul.f32 %v494, %v493
        %v496 = vmul.f32 0.5, %v495
        %v497 = vsub.f32 1.5, %v496
        %v498 = vmul.f32 %v493, %v497
        %vm499 = vweird.f32 %v477
        %vm500 = vweird.f32 %v493
        %vm501 = vmor %vm499, %vm500
        %v502 = vsel %vm501, %v493, %v498
        %v503 = vrsqrt.pop %v478
        %v504 = vmul.f32 %v503, %v478
        %v505 = vmul.f32 %v504, %v503
        %v506 = vmul.f32 0.5, %v505
        %v507 = vsub.f32 1.5, %v506
        %v508 = vmul.f32 %v503, %v507
        %vm509 = vweird.f32 %v478
        %vm510 = vweird.f32 %v503
        %vm511 = vmor %vm509, %vm510
        %v512 = vsel %vm511, %v503, %v508
        %v513 = vrsqrt.pop %v479
        %v514 = vmul.f32 %v513, %v479
        %v515 = vmul.f32 %v514, %v513
        %v516 = vmul.f32 0.5, %v515
        %v517 = vsub.f32 1.5, %v516
        %v518 = vmul.f32 %v513, %v517
        %vm519 = vweird.f32 %v479
        %vm520 = vweird.f32 %v513
        %vm521 = vmor %vm519, %vm520
        %v522 = vsel %vm521, %v513, %v518
        %v523 = vrsqrt.pop %v480
        %v524 = vmul.f32 %v523, %v480
        %v525 = vmul.f32 %v524, %v523
        %v526 = vmul.f32 0.5, %v525
        %v527 = vsub.f32 1.5, %v526
        %v528 = vmul.f32 %v523, %v527
        %vm529 = vweird.f32 %v480
        %vm530 = vweird.f32 %v523
        %vm531 = vmor %vm529, %vm530
        %v532 = vsel %vm531, %v523, %v528
        %v533 = vrsqrt.pop %v481
        %v534 = vmul.f32 %v533, %v481
        %v535 = vmul.f32 %v534, %v533
        %v536 = vmul.f32 0.5, %v535
        %v537 = vsub.f32 1.5, %v536
        %v538 = vmul.f32 %v533, %v537
        %vm539 = vweird.f32 %v481
        %vm540 = vweird.f32 %v533
        %vm541 = vmor %vm539, %vm540
        %v542 = vsel %vm541, %v533, %v538
        %v543 = vrsqrt.pop %v482
        %v544 = vmul.f32 %v543, %v482
        %v545 = vmul.f32 %v544, %v543
        %v546 = vmul.f32 0.5, %v545
        %v547 = vsub.f32 1.5, %v546
        %v548 = vmul.f32 %v543, %v547
        %vm549 = vweird.f32 %v482
        %vm550 = vweird.f32 %v543
        %vm551 = vmor %vm549, %vm550
        %v552 = vsel %vm551, %v543, %v548
        %v553 = vrsqrt.pop %v483
        %v554 = vmul.f32 %v553, %v483
        %v555 = vmul.f32 %v554, %v553
        %v556 = vmul.f32 0.5, %v555
        %v557 = vsub.f32 1.5, %v556
        %v558 = vmul.f32 %v553, %v557
        %vm559 = vweird.f32 %v483
        %vm560 = vweird.f32 %v553
        %vm561 = vmor %vm559, %vm560
        %v562 = vsel %vm561, %v553, %v558
        %v563 = vrsqrt.pop %v484
        %v564 = vmul.f32 %v563, %v484
        %v565 = vmul.f32 %v564, %v563
        %v566 = vmul.f32 0.5, %v565
        %v567 = vsub.f32 1.5, %v566
        %v568 = vmul.f32 %v563, %v567
        %vm569 = vweird.f32 %v484
        %vm570 = vweird.f32 %v563
        %vm571 = vmor %vm569, %vm570
        %v572 = vsel %vm571, %v563, %v568
        %v573 = vrsqrt.pop %v485
        %v574 = vmul.f32 %v573, %v485
        %v575 = vmul.f32 %v574, %v573
        %v576 = vmul.f32 0.5, %v575
        %v577 = vsub.f32 1.5, %v576
        %v578 = vmul.f32 %v573, %v577
        %vm579 = vweird.f32 %v485
        %vm580 = vweird.f32 %v573
        %vm581 = vmor %vm579, %vm580
        %v582 = vsel %vm581, %v573, %v578
        %v583 = vrsqrt.pop %v486
        %v584 = vmul.f32 %v583, %v486
        %v585 = vmul.f32 %v584, %v583
        %v586 = vmul.f32 0.5, %v585
        %v587 = vsub.f32 1.5, %v586
        %v588 = vmul.f32 %v583, %v587
        %vm589 = vweird.f32 %v486
        %vm590 = vweird.f32 %v583
        %vm591 = vmor %vm589, %vm590
        %v592 = vsel %vm591, %v583, %v588
        %v593 = vrsqrt.pop %v487
        %v594 = vmul.f32 %v593, %v487
        %v595 = vmul.f32 %v594, %v593
        %v596 = vmul.f32 0.5, %v595
        %v597 = vsub.f32 1.5, %v596
        %v598 = vmul.f32 %v593, %v597
        %vm599 = vweird.f32 %v487
        %vm600 = vweird.f32 %v593
        %vm601 = vmor %vm599, %vm600
        %v602 = vsel %vm601, %v593, %v598
        %v603 = vrsqrt.pop %v488
        %v604 = vmul.f32 %v603, %v488
        %v605 = vmul.f32 %v604, %v603
        %v606 = vmul.f32 0.5, %v605
        %v607 = vsub.f32 1.5, %v606
        %v608 = vmul.f32 %v603, %v607
        %vm609 = vweird.f32 %v488
        %vm610 = vweird.f32 %v603
        %vm611 = vmor %vm609, %vm610
        %v612 = vsel %vm611, %v603, %v608
        %v613 = vrsqrt.pop %v489
        %v614 = vmul.f32 %v613, %v489
        %v615 = vmul.f32 %v614, %v613
        %v616 = vmul.f32 0.5, %v615
        %v617 = vsub.f32 1.5, %v616
        %v618 = vmul.f32 %v613, %v617
        %vm619 = vweird.f32 %v489
        %vm620 = vweird.f32 %v613
        %vm621 = vmor %vm619, %vm620
        %v622 = vsel %vm621, %v613, %v618
        %v623 = vrsqrt.pop %v490
        %v624 = vmul.f32 %v623, %v490
        %v625 = vmul.f32 %v624, %v623
        %v626 = vmul.f32 0.5, %v625
        %v627 = vsub.f32 1.5, %v626
        %v628 = vmul.f32 %v623, %v627
        %vm629 = vweird.f32 %v490
        %vm630 = vweird.f32 %v623
        %vm631 = vmor %vm629, %vm630
        %v632 = vsel %vm631, %v623, %v628
        %v633 = vrsqrt.pop %v491
        %v634 = vmul.f32 %v633, %v491
        %v635 = vmul.f32 %v634, %v633
        %v636 = vmul.f32 0.5, %v635
        %v637 = vsub.f32 1.5, %v636
        %v638 = vmul.f32 %v633, %v637
        %vm639 = vweird.f32 %v491
        %vm640 = vweird.f32 %v633
        %vm641 = vmor %vm639, %vm640
        %v642 = vsel %vm641, %v633, %v638
        %v643 = vrsqrt.pop %v492
        %v644 = vmul.f32 %v643, %v492
        %v645 = vmul.f32 %v644, %v643
        %v646 = vmul.f32 0.5, %v645
        %v647 = vsub.f32 1.5, %v646
        %v648 = vmul.f32 %v643, %v647
        %vm649 = vweird.f32 %v492
        %vm650 = vweird.f32 %v643
        %vm651 = vmor %vm649, %vm650
        %v652 = vsel %vm651, %v643, %v648
        %v653 = vmul.f32 %v381, %v502
        %v654 = vmul.f32 %v382, %v512
        %v655 = vmul.f32 %v383, %v522
        %v656 = vmul.f32 %v384, %v532
        %v657 = vmul.f32 %v385, %v542
        %v658 = vmul.f32 %v386, %v552
        %v659 = vmul.f32 %v387, %v562
        %v660 = vmul.f32 %v388, %v572
        %v661 = vmul.f32 %v389, %v582
        %v662 = vmul.f32 %v390, %v592
        %v663 = vmul.f32 %v391, %v602
        %v664 = vmul.f32 %v392, %v612
        %v665 = vmul.f32 %v393, %v622
        %v666 = vmul.f32 %v394, %v632
        %v667 = vmul.f32 %v395, %v642
        %v668 = vmul.f32 %v396, %v652
        %v670 = vperm.slane %v307, 0
        %v672 = vmul.f32 %v653, %v670
        %v673 = vmul.f32 %v654, %v670
        %v674 = vmul.f32 %v655, %v670
        %v675 = vmul.f32 %v656, %v670
        %v676 = vmul.f32 %v657, %v670
        %v677 = vmul.f32 %v658, %v670
        %v678 = vmul.f32 %v659, %v670
        %v679 = vmul.f32 %v660, %v670
        %v680 = vmul.f32 %v661, %v670
        %v681 = vmul.f32 %v662, %v670
        %v682 = vmul.f32 %v663, %v670
        %v683 = vmul.f32 %v664, %v670
        %v684 = vmul.f32 %v665, %v670
        %v685 = vmul.f32 %v666, %v670
        %v686 = vmul.f32 %v667, %v670
        %v687 = vmul.f32 %v668, %v670
        %v689 = vperm.slane %v308, 0
        %v691 = vadd.f32 %v672, %v689
        %v692 = vadd.f32 %v673, %v689
        %v693 = vadd.f32 %v674, %v689
        %v694 = vadd.f32 %v675, %v689
        %v695 = vadd.f32 %v676, %v689
        %v696 = vadd.f32 %v677, %v689
        %v697 = vadd.f32 %v678, %v689
        %v698 = vadd.f32 %v679, %v689
        %v699 = vadd.f32 %v680, %v689
        %v700 = vadd.f32 %v681, %v689
        %v701 = vadd.f32 %v682, %v689
        %v702 = vadd.f32 %v683, %v689
        %v703 = vadd.f32 %v684, %v689
        %v704 = vadd.f32 %v685, %v689
        %v705 = vadd.f32 %v686, %v689
        %v706 = vadd.f32 %v687, %v689
        %v707 = vpack.c.bf16 %v692, %v691
        %v708 = vpack.c.bf16 %v694, %v693
        %v709 = vpack.c.bf16 %v696, %v695
        %v710 = vpack.c.bf16 %v698, %v697
        %v711 = vpack.c.bf16 %v700, %v699
        %v712 = vpack.c.bf16 %v702, %v701
        %v713 = vpack.c.bf16 %v704, %v703
        %v714 = vpack.c.bf16 %v706, %v705
        %v715 = vld [vmem:[%s3] sm:$0xf]
        %v716 = vld [vmem:[%s3 + $0x4] sm:$0xf]
        %v717 = vld [vmem:[%s3 + $0x8] sm:$0xf]
        %v718 = vld [vmem:[%s3 + $0xc] sm:$0xf]
        %v719 = vld [vmem:[%s4] sm:$0x1]
        %v721 = vperm.slane %v719, 0
        %v727 = vunpack.c.l.b16 %v715
        %v728 = vunpack.c.l.b16 %v716
        %v729 = vunpack.c.l.b16 %v717
        %v730 = vunpack.c.l.b16 %v718
        %v731 = vpack.c.b16 %v728, %v727
        %v732 = vpack.c.b16 %v730, %v729
        %v736 = vsel %vm309, %v707, 0
        %v739 = vsel %vm309, %v708, 0
        %v742 = vsel %vm309, %v709, 0
        %v745 = vsel %vm309, %v710, 0
        %v748 = vsel %vm309, %v711, 0
        %v751 = vsel %vm309, %v712, 0
        %v754 = vsel %vm309, %v713, 0
        %v757 = vsel %vm309, %v714, 0
        %759 = vmatpush.bf16.msra.mxu0 0
        %760 = vmatpush.bf16.msra.mxu0 0
        %761 = vmatpush.bf16.msra.mxu0 0
        %762 = vmatpush.bf16.msra.mxu0 0
        %763 = vmatpush.bf16.msra.mxu0 0
        %764 = vmatpush.bf16.msra.mxu0 0
        %765 = vmatpush.bf16.msra.mxu0 %v732
        %766 = vmatpush.bf16.msra.mxu0 %v731
        %767 = vmatmul.bf16.gmra.mxu0 %v736
        %v768 = vpop.f32.mrf.mxu0
        %v769 = vadd.f32 %v721, %v768
        %v770 = vpop.f32.mrf.mxu0
        %v771 = vadd.f32 %v721, %v770
        %772 = vmatmul.bf16.gmra.mxu0 %v739
        %v773 = vpop.f32.mrf.mxu0
        %v774 = vadd.f32 %v721, %v773
        %v775 = vpop.f32.mrf.mxu0
        %v776 = vadd.f32 %v721, %v775
        %777 = vmatmul.bf16.gmra.mxu0 %v742
        %v778 = vpop.f32.mrf.mxu0
        %v779 = vadd.f32 %v721, %v778
        %v780 = vpop.f32.mrf.mxu0
        %v781 = vadd.f32 %v721, %v780
        %782 = vmatmul.bf16.gmra.mxu0 %v745
        %v783 = vpop.f32.mrf.mxu0
        %v784 = vadd.f32 %v721, %v783
        %v785 = vpop.f32.mrf.mxu0
        %v786 = vadd.f32 %v721, %v785
        %787 = vmatmul.bf16.gmra.mxu0 %v748
        %v788 = vpop.f32.mrf.mxu0
        %v789 = vadd.f32 %v721, %v788
        %v790 = vpop.f32.mrf.mxu0
        %v791 = vadd.f32 %v721, %v790
        %792 = vmatmul.bf16.gmra.mxu0 %v751
        %v793 = vpop.f32.mrf.mxu0
        %v794 = vadd.f32 %v721, %v793
        %v795 = vpop.f32.mrf.mxu0
        %v796 = vadd.f32 %v721, %v795
        %797 = vmatmul.bf16.gmra.mxu0 %v754
        %v798 = vpop.f32.mrf.mxu0
        %v799 = vadd.f32 %v721, %v798
        %v800 = vpop.f32.mrf.mxu0
        %v801 = vadd.f32 %v721, %v800
        %802 = vmatmul.bf16.gmra.mxu0 %v757
        %v803 = vpop.f32.mrf.mxu0
        %v804 = vadd.f32 %v721, %v803
        %v805 = vpop.f32.mrf.mxu0
        %v806 = vadd.f32 %v721, %v805
        %807 = vdwg.mxu0
        %808 = vxpose.xlu0.b32.start [1/16] %v769, 128
        %809 = vxpose.xlu0.b32.cont [2/16] %v771, 128
        %810 = vxpose.xlu0.b32.cont [3/16] %v774, 128
        %811 = vxpose.xlu0.b32.cont [4/16] %v776, 128
        %812 = vxpose.xlu0.b32.cont [5/16] %v779, 128
        %813 = vxpose.xlu0.b32.cont [6/16] %v781, 128
        %814 = vxpose.xlu0.b32.cont [7/16] %v784, 128
        %815 = vxpose.xlu0.b32.cont [8/16] %v786, 128
        %816 = vxpose.xlu0.b32.cont [9/16] %v789, 128
        %817 = vxpose.xlu0.b32.cont [10/16] %v791, 128
        %818 = vxpose.xlu0.b32.cont [11/16] %v794, 128
        %819 = vxpose.xlu0.b32.cont [12/16] %v796, 128
        %820 = vxpose.xlu0.b32.cont [13/16] %v799, 128
        %821 = vxpose.xlu0.b32.cont [14/16] %v801, 128
        %822 = vxpose.xlu0.b32.cont [15/16] %v804, 128
        %823 = vxpose.xlu0.b32.end [16/16] %v806, 128
        %v824 = vpop.trf.xlu0
        %v825 = vpop.trf.xlu0
        %v826 = vpop.trf.xlu0
        %v827 = vpop.trf.xlu0
        %v828 = vpop.trf.xlu0
        %v829 = vpop.trf.xlu0
        %v830 = vpop.trf.xlu0
        %v831 = vpop.trf.xlu0
        %v832 = vpop.trf.xlu0
        %v833 = vpop.trf.xlu0
        %v834 = vpop.trf.xlu0
        %v835 = vpop.trf.xlu0
        %v836 = vpop.trf.xlu0
        %v837 = vpop.trf.xlu0
        %v838 = vpop.trf.xlu0
        %v839 = vpop.trf.xlu0
        %v840 = vpack.c.bf16 %v824, %v824
        %841 = vst [vmem:[%s272] sm:$0xf] %v840
        %v842 = vpack.c.bf16 %v769, %v769
        %v843 = vpack.c.bf16 %v771, %v771
        %v844 = vpack.c.bf16 %v774, %v774
        %v845 = vpack.c.bf16 %v776, %v776
        %v846 = vpack.c.bf16 %v779, %v779
        %v847 = vpack.c.bf16 %v781, %v781
        %v848 = vpack.c.bf16 %v784, %v784
        %v849 = vpack.c.bf16 %v786, %v786
        %v850 = vpack.c.bf16 %v789, %v789
        %v851 = vpack.c.bf16 %v791, %v791
        %v852 = vpack.c.bf16 %v794, %v794
        %v853 = vpack.c.bf16 %v796, %v796
        %v854 = vpack.c.bf16 %v799, %v799
        %v855 = vpack.c.bf16 %v801, %v801
        %v856 = vpack.c.bf16 %v804, %v804
        %v857 = vpack.c.bf16 %v806, %v806
        %874 = vrot.lane.b32.xlu0 %v842, 96
        %v875 = vpop.permute.xlu0 %874
        %876 = vrot.lane.b32.xlu0 %v843, 96
        %v877 = vpop.permute.xlu0 %876
        %878 = vrot.lane.b32.xlu0 %v844, 96
        %v879 = vpop.permute.xlu0 %878
        %880 = vrot.lane.b32.xlu0 %v845, 96
        %v881 = vpop.permute.xlu0 %880
        %882 = vrot.lane.b32.xlu0 %v846, 96
        %v883 = vpop.permute.xlu0 %882
        %884 = vrot.lane.b32.xlu0 %v847, 96
        %v885 = vpop.permute.xlu0 %884
        %886 = vrot.lane.b32.xlu0 %v848, 96
        %v887 = vpop.permute.xlu0 %886
        %888 = vrot.lane.b32.xlu0 %v849, 96
        %v889 = vpop.permute.xlu0 %888
        %890 = vrot.lane.b32.xlu0 %v850, 96
        %v891 = vpop.permute.xlu0 %890
        %892 = vrot.lane.b32.xlu0 %v851, 96
        %v893 = vpop.permute.xlu0 %892
        %894 = vrot.lane.b32.xlu0 %v852, 96
        %v895 = vpop.permute.xlu0 %894
        %896 = vrot.lane.b32.xlu0 %v853, 96
        %v897 = vpop.permute.xlu0 %896
        %898 = vrot.lane.b32.xlu0 %v854, 96
        %v899 = vpop.permute.xlu0 %898
        %900 = vrot.lane.b32.xlu0 %v855, 96
        %v901 = vpop.permute.xlu0 %900
        %902 = vrot.lane.b32.xlu0 %v856, 96
        %v903 = vpop.permute.xlu0 %902
        %904 = vrot.lane.b32.xlu0 %v857, 96
        %v905 = vpop.permute.xlu0 %904
        %vm922 = vcmask 60416
        %923 = vst.msk [vmem:[%s278] sm:$0xf] %vm922, %v875
        %924 = vst.msk [vmem:[%s278 + $0x4] sm:$0xf] %vm922, %v877
        %925 = vst.msk [vmem:[%s278 + $0x8] sm:$0xf] %vm922, %v879
        %926 = vst.msk [vmem:[%s278 + $0xc] sm:$0xf] %vm922, %v881
        %927 = vst.msk [vmem:[%s278 + $0x10] sm:$0xf] %vm922, %v883
        %928 = vst.msk [vmem:[%s278 + $0x14] sm:$0xf] %vm922, %v885
        %929 = vst.msk [vmem:[%s278 + $0x18] sm:$0xf] %vm922, %v887
        %930 = vst.msk [vmem:[%s278 + $0x1c] sm:$0xf] %vm922, %v889
        %931 = vst.msk [vmem:[%s278 + $0x20] sm:$0xf] %vm922, %v891
        %932 = vst.msk [vmem:[%s278 + $0x24] sm:$0xf] %vm922, %v893
        %933 = vst.msk [vmem:[%s278 + $0x28] sm:$0xf] %vm922, %v895
        %934 = vst.msk [vmem:[%s278 + $0x2c] sm:$0xf] %vm922, %v897
        %935 = vst.msk [vmem:[%s278 + $0x30] sm:$0xf] %vm922, %v899
        %936 = vst.msk [vmem:[%s278 + $0x34] sm:$0xf] %vm922, %v901
        %937 = vst.msk [vmem:[%s278 + $0x38] sm:$0xf] %vm922, %v903
        %938 = vst.msk [vmem:[%s278 + $0x3c] sm:$0xf] %vm922, %v905
        %955 = vrot.lane.b32.xlu0 %v769, 120
        %v956 = vpop.permute.xlu0 %955
        %957 = vrot.lane.b32.xlu0 %v771, 120
        %v958 = vpop.permute.xlu0 %957
        %959 = vrot.lane.b32.xlu0 %v774, 120
        %v960 = vpop.permute.xlu0 %959
        %961 = vrot.lane.b32.xlu0 %v776, 120
        %v962 = vpop.permute.xlu0 %961
        %963 = vrot.lane.b32.xlu0 %v779, 120
        %v964 = vpop.permute.xlu0 %963
        %965 = vrot.lane.b32.xlu0 %v781, 120
        %v966 = vpop.permute.xlu0 %965
        %967 = vrot.lane.b32.xlu0 %v784, 120
        %v968 = vpop.permute.xlu0 %967
        %969 = vrot.lane.b32.xlu0 %v786, 120
        %v970 = vpop.permute.xlu0 %969
        %971 = vrot.lane.b32.xlu0 %v789, 120
        %v972 = vpop.permute.xlu0 %971
        %973 = vrot.lane.b32.xlu0 %v791, 120
        %v974 = vpop.permute.xlu0 %973
        %975 = vrot.lane.b32.xlu0 %v794, 120
        %v976 = vpop.permute.xlu0 %975
        %977 = vrot.lane.b32.xlu0 %v796, 120
        %v978 = vpop.permute.xlu0 %977
        %979 = vrot.lane.b32.xlu0 %v799, 120
        %v980 = vpop.permute.xlu0 %979
        %981 = vrot.lane.b32.xlu0 %v801, 120
        %v982 = vpop.permute.xlu0 %981
        %983 = vrot.lane.b32.xlu0 %v804, 120
        %v984 = vpop.permute.xlu0 %983
        %985 = vrot.lane.b32.xlu0 %v806, 120
        %v986 = vpop.permute.xlu0 %985
        %1003 = vxpose.xlu0.b32.start [1/16] %v956, 128
        %1004 = vxpose.xlu0.b32.cont [2/16] %v958, 128
        %1005 = vxpose.xlu0.b32.cont [3/16] %v960, 128
        %1006 = vxpose.xlu0.b32.cont [4/16] %v962, 128
        %1007 = vxpose.xlu0.b32.cont [5/16] %v964, 128
        %1008 = vxpose.xlu0.b32.cont [6/16] %v966, 128
        %1009 = vxpose.xlu0.b32.cont [7/16] %v968, 128
        %1010 = vxpose.xlu0.b32.cont [8/16] %v970, 128
        %1011 = vxpose.xlu0.b32.cont [9/16] %v972, 128
        %1012 = vxpose.xlu0.b32.cont [10/16] %v974, 128
        %1013 = vxpose.xlu0.b32.cont [11/16] %v976, 128
        %1014 = vxpose.xlu0.b32.cont [12/16] %v978, 128
        %1015 = vxpose.xlu0.b32.cont [13/16] %v980, 128
        %1016 = vxpose.xlu0.b32.cont [14/16] %v982, 128
        %1017 = vxpose.xlu0.b32.cont [15/16] %v984, 128
        %1018 = vxpose.xlu0.b32.end [16/16] %v986, 128
        %v1019 = vpop.trf.xlu0
        %v1020 = vpop.trf.xlu0
        %v1021 = vpop.trf.xlu0
        %v1022 = vpop.trf.xlu0
        %v1023 = vpop.trf.xlu0
        %v1024 = vpop.trf.xlu0
        %v1025 = vpop.trf.xlu0
        %v1026 = vpop.trf.xlu0
        %v1027 = vpop.trf.xlu0
        %v1028 = vpop.trf.xlu0
        %v1029 = vpop.trf.xlu0
        %v1030 = vpop.trf.xlu0
        %v1031 = vpop.trf.xlu0
        %v1032 = vpop.trf.xlu0
        %v1033 = vpop.trf.xlu0
        %v1034 = vpop.trf.xlu0
        %v1035 = vpack.c.bf16 %v1019, %v1019
        %s1036 = scalar_lea.vmem %s272, 4 [#allocation2]
        %1037 = vst [vmem:[%s1036] sm:$0xf] %v1035
        %1038 = vrot.lane.b32.xlu0 %v842, 88
        %v1039 = vpop.permute.xlu0 %1038
        %1040 = vrot.lane.b32.xlu0 %v843, 88
        %v1041 = vpop.permute.xlu0 %1040
        %1042 = vrot.lane.b32.xlu0 %v844, 88
        %v1043 = vpop.permute.xlu0 %1042
        %1044 = vrot.lane.b32.xlu0 %v845, 88
        %v1045 = vpop.permute.xlu0 %1044
        %1046 = vrot.lane.b32.xlu0 %v846, 88
        %v1047 = vpop.permute.xlu0 %1046
        %1048 = vrot.lane.b32.xlu0 %v847, 88
        %v1049 = vpop.permute.xlu0 %1048
        %1050 = vrot.lane.b32.xlu0 %v848, 88
        %v1051 = vpop.permute.xlu0 %1050
        %1052 = vrot.lane.b32.xlu0 %v849, 88
        %v1053 = vpop.permute.xlu0 %1052
        %1054 = vrot.lane.b32.xlu0 %v850, 88
        %v1055 = vpop.permute.xlu0 %1054
        %1056 = vrot.lane.b32.xlu0 %v851, 88
        %v1057 = vpop.permute.xlu0 %1056
        %1058 = vrot.lane.b32.xlu0 %v852, 88
        %v1059 = vpop.permute.xlu0 %1058
        %1060 = vrot.lane.b32.xlu0 %v853, 88
        %v1061 = vpop.permute.xlu0 %1060
        %1062 = vrot.lane.b32.xlu0 %v854, 88
        %v1063 = vpop.permute.xlu0 %1062
        %1064 = vrot.lane.b32.xlu0 %v855, 88
        %v1065 = vpop.permute.xlu0 %1064
        %1066 = vrot.lane.b32.xlu0 %v856, 88
        %v1067 = vpop.permute.xlu0 %1066
        %1068 = vrot.lane.b32.xlu0 %v857, 88
        %v1069 = vpop.permute.xlu0 %1068
        %s1086 = scalar_lea.vmem %s278, 64 [#allocation4]
        %1087 = vst.msk [vmem:[%s1086] sm:$0xf] %vm922, %v1039
        %1088 = vst.msk [vmem:[%s1086 + $0x4] sm:$0xf] %vm922, %v1041
        %1089 = vst.msk [vmem:[%s1086 + $0x8] sm:$0xf] %vm922, %v1043
        %1090 = vst.msk [vmem:[%s1086 + $0xc] sm:$0xf] %vm922, %v1045
        %1091 = vst.msk [vmem:[%s1086 + $0x10] sm:$0xf] %vm922, %v1047
        %1092 = vst.msk [vmem:[%s1086 + $0x14] sm:$0xf] %vm922, %v1049
        %1093 = vst.msk [vmem:[%s1086 + $0x18] sm:$0xf] %vm922, %v1051
        %1094 = vst.msk [vmem:[%s1086 + $0x1c] sm:$0xf] %vm922, %v1053
        %1095 = vst.msk [vmem:[%s1086 + $0x20] sm:$0xf] %vm922, %v1055
        %1096 = vst.msk [vmem:[%s1086 + $0x24] sm:$0xf] %vm922, %v1057
        %1097 = vst.msk [vmem:[%s1086 + $0x28] sm:$0xf] %vm922, %v1059
        %1098 = vst.msk [vmem:[%s1086 + $0x2c] sm:$0xf] %vm922, %v1061
        %1099 = vst.msk [vmem:[%s1086 + $0x30] sm:$0xf] %vm922, %v1063
        %1100 = vst.msk [vmem:[%s1086 + $0x34] sm:$0xf] %vm922, %v1065
        %1101 = vst.msk [vmem:[%s1086 + $0x38] sm:$0xf] %vm922, %v1067
        %1102 = vst.msk [vmem:[%s1086 + $0x3c] sm:$0xf] %vm922, %v1069
        %1103 = vrot.lane.b32.xlu0 %v769, 112
        %v1104 = vpop.permute.xlu0 %1103
        %1105 = vrot.lane.b32.xlu0 %v771, 112
        %v1106 = vpop.permute.xlu0 %1105
        %1107 = vrot.lane.b32.xlu0 %v774, 112
        %v1108 = vpop.permute.xlu0 %1107
        %1109 = vrot.lane.b32.xlu0 %v776, 112
        %v1110 = vpop.permute.xlu0 %1109
        %1111 = vrot.lane.b32.xlu0 %v779, 112
        %v1112 = vpop.permute.xlu0 %1111
        %1113 = vrot.lane.b32.xlu0 %v781, 112
        %v1114 = vpop.permute.xlu0 %1113
        %1115 = vrot.lane.b32.xlu0 %v784, 112
        %v1116 = vpop.permute.xlu0 %1115
        %1117 = vrot.lane.b32.xlu0 %v786, 112
        %v1118 = vpop.permute.xlu0 %1117
        %1119 = vrot.lane.b32.xlu0 %v789, 112
        %v1120 = vpop.permute.xlu0 %1119
        %1121 = vrot.lane.b32.xlu0 %v791, 112
        %v1122 = vpop.permute.xlu0 %1121
        %1123 = vrot.lane.b32.xlu0 %v794, 112
        %v1124 = vpop.permute.xlu0 %1123
        %1125 = vrot.lane.b32.xlu0 %v796, 112
        %v1126 = vpop.permute.xlu0 %1125
        %1127 = vrot.lane.b32.xlu0 %v799, 112
        %v1128 = vpop.permute.xlu0 %1127
        %1129 = vrot.lane.b32.xlu0 %v801, 112
        %v1130 = vpop.permute.xlu0 %1129
        %1131 = vrot.lane.b32.xlu0 %v804, 112
        %v1132 = vpop.permute.xlu0 %1131
        %1133 = vrot.lane.b32.xlu0 %v806, 112
        %v1134 = vpop.permute.xlu0 %1133
        %1151 = vxpose.xlu0.b32.start [1/16] %v1104, 128
        %1152 = vxpose.xlu0.b32.cont [2/16] %v1106, 128
        %1153 = vxpose.xlu0.b32.cont [3/16] %v1108, 128
        %1154 = vxpose.xlu0.b32.cont [4/16] %v1110, 128
        %1155 = vxpose.xlu0.b32.cont [5/16] %v1112, 128
        %1156 = vxpose.xlu0.b32.cont [6/16] %v1114, 128
        %1157 = vxpose.xlu0.b32.cont [7/16] %v1116, 128
        %1158 = vxpose.xlu0.b32.cont [8/16] %v1118, 128
        %1159 = vxpose.xlu0.b32.cont [9/16] %v1120, 128
        %1160 = vxpose.xlu0.b32.cont [10/16] %v1122, 128
        %1161 = vxpose.xlu0.b32.cont [11/16] %v1124, 128
        %1162 = vxpose.xlu0.b32.cont [12/16] %v1126, 128
        %1163 = vxpose.xlu0.b32.cont [13/16] %v1128, 128
        %1164 = vxpose.xlu0.b32.cont [14/16] %v1130, 128
        %1165 = vxpose.xlu0.b32.cont [15/16] %v1132, 128
        %1166 = vxpose.xlu0.b32.end [16/16] %v1134, 128
        %v1167 = vpop.trf.xlu0
        %v1168 = vpop.trf.xlu0
        %v1169 = vpop.trf.xlu0
        %v1170 = vpop.trf.xlu0
        %v1171 = vpop.trf.xlu0
        %v1172 = vpop.trf.xlu0
        %v1173 = vpop.trf.xlu0
        %v1174 = vpop.trf.xlu0
        %v1175 = vpop.trf.xlu0
        %v1176 = vpop.trf.xlu0
        %v1177 = vpop.trf.xlu0
        %v1178 = vpop.trf.xlu0
        %v1179 = vpop.trf.xlu0
        %v1180 = vpop.trf.xlu0
        %v1181 = vpop.trf.xlu0
        %v1182 = vpop.trf.xlu0
        %v1183 = vpack.c.bf16 %v1167, %v1167
        %s1184 = scalar_lea.vmem %s272, 8 [#allocation2]
        %1185 = vst [vmem:[%s1184] sm:$0xf] %v1183
        %1186 = vrot.lane.b32.xlu0 %v842, 80
        %v1187 = vpop.permute.xlu0 %1186
        %1188 = vrot.lane.b32.xlu0 %v843, 80
        %v1189 = vpop.permute.xlu0 %1188
        %1190 = vrot.lane.b32.xlu0 %v844, 80
        %v1191 = vpop.permute.xlu0 %1190
        %1192 = vrot.lane.b32.xlu0 %v845, 80
        %v1193 = vpop.permute.xlu0 %1192
        %1194 = vrot.lane.b32.xlu0 %v846, 80
        %v1195 = vpop.permute.xlu0 %1194
        %1196 = vrot.lane.b32.xlu0 %v847, 80
        %v1197 = vpop.permute.xlu0 %1196
        %1198 = vrot.lane.b32.xlu0 %v848, 80
        %v1199 = vpop.permute.xlu0 %1198
        %1200 = vrot.lane.b32.xlu0 %v849, 80
        %v1201 = vpop.permute.xlu0 %1200
        %1202 = vrot.lane.b32.xlu0 %v850, 80
        %v1203 = vpop.permute.xlu0 %1202
        %1204 = vrot.lane.b32.xlu0 %v851, 80
        %v1205 = vpop.permute.xlu0 %1204
        %1206 = vrot.lane.b32.xlu0 %v852, 80
        %v1207 = vpop.permute.xlu0 %1206
        %1208 = vrot.lane.b32.xlu0 %v853, 80
        %v1209 = vpop.permute.xlu0 %1208
        %1210 = vrot.lane.b32.xlu0 %v854, 80
        %v1211 = vpop.permute.xlu0 %1210
        %1212 = vrot.lane.b32.xlu0 %v855, 80
        %v1213 = vpop.permute.xlu0 %1212
        %1214 = vrot.lane.b32.xlu0 %v856, 80
        %v1215 = vpop.permute.xlu0 %1214
        %1216 = vrot.lane.b32.xlu0 %v857, 80
        %v1217 = vpop.permute.xlu0 %1216
        %s1234 = scalar_lea.vmem %s278, 128 [#allocation4]
        %1235 = vst.msk [vmem:[%s1234] sm:$0xf] %vm922, %v1187
        %1236 = vst.msk [vmem:[%s1234 + $0x4] sm:$0xf] %vm922, %v1189
        %1237 = vst.msk [vmem:[%s1234 + $0x8] sm:$0xf] %vm922, %v1191
        %1238 = vst.msk [vmem:[%s1234 + $0xc] sm:$0xf] %vm922, %v1193
        %1239 = vst.msk [vmem:[%s1234 + $0x10] sm:$0xf] %vm922, %v1195
        %1240 = vst.msk [vmem:[%s1234 + $0x14] sm:$0xf] %vm922, %v1197
        %1241 = vst.msk [vmem:[%s1234 + $0x18] sm:$0xf] %vm922, %v1199
        %1242 = vst.msk [vmem:[%s1234 + $0x1c] sm:$0xf] %vm922, %v1201
        %1243 = vst.msk [vmem:[%s1234 + $0x20] sm:$0xf] %vm922, %v1203
        %1244 = vst.msk [vmem:[%s1234 + $0x24] sm:$0xf] %vm922, %v1205
        %1245 = vst.msk [vmem:[%s1234 + $0x28] sm:$0xf] %vm922, %v1207
        %1246 = vst.msk [vmem:[%s1234 + $0x2c] sm:$0xf] %vm922, %v1209
        %1247 = vst.msk [vmem:[%s1234 + $0x30] sm:$0xf] %vm922, %v1211
        %1248 = vst.msk [vmem:[%s1234 + $0x34] sm:$0xf] %vm922, %v1213
        %1249 = vst.msk [vmem:[%s1234 + $0x38] sm:$0xf] %vm922, %v1215
        %1250 = vst.msk [vmem:[%s1234 + $0x3c] sm:$0xf] %vm922, %v1217
        %1251 = vrot.lane.b32.xlu0 %v769, 104
        %v1252 = vpop.permute.xlu0 %1251
        %1253 = vrot.lane.b32.xlu0 %v771, 104
        %v1254 = vpop.permute.xlu0 %1253
        %1255 = vrot.lane.b32.xlu0 %v774, 104
        %v1256 = vpop.permute.xlu0 %1255
        %1257 = vrot.lane.b32.xlu0 %v776, 104
        %v1258 = vpop.permute.xlu0 %1257
        %1259 = vrot.lane.b32.xlu0 %v779, 104
        %v1260 = vpop.permute.xlu0 %1259
        %1261 = vrot.lane.b32.xlu0 %v781, 104
        %v1262 = vpop.permute.xlu0 %1261
        %1263 = vrot.lane.b32.xlu0 %v784, 104
        %v1264 = vpop.permute.xlu0 %1263
        %1265 = vrot.lane.b32.xlu0 %v786, 104
        %v1266 = vpop.permute.xlu0 %1265
        %1267 = vrot.lane.b32.xlu0 %v789, 104
        %v1268 = vpop.permute.xlu0 %1267
        %1269 = vrot.lane.b32.xlu0 %v791, 104
        %v1270 = vpop.permute.xlu0 %1269
        %1271 = vrot.lane.b32.xlu0 %v794, 104
        %v1272 = vpop.permute.xlu0 %1271
        %1273 = vrot.lane.b32.xlu0 %v796, 104
        %v1274 = vpop.permute.xlu0 %1273
        %1275 = vrot.lane.b32.xlu0 %v799, 104
        %v1276 = vpop.permute.xlu0 %1275
        %1277 = vrot.lane.b32.xlu0 %v801, 104
        %v1278 = vpop.permute.xlu0 %1277
        %1279 = vrot.lane.b32.xlu0 %v804, 104
        %v1280 = vpop.permute.xlu0 %1279
        %1281 = vrot.lane.b32.xlu0 %v806, 104
        %v1282 = vpop.permute.xlu0 %1281
        %1299 = vxpose.xlu0.b32.start [1/16] %v1252, 128
        %1300 = vxpose.xlu0.b32.cont [2/16] %v1254, 128
        %1301 = vxpose.xlu0.b32.cont [3/16] %v1256, 128
        %1302 = vxpose.xlu0.b32.cont [4/16] %v1258, 128
        %1303 = vxpose.xlu0.b32.cont [5/16] %v1260, 128
        %1304 = vxpose.xlu0.b32.cont [6/16] %v1262, 128
        %1305 = vxpose.xlu0.b32.cont [7/16] %v1264, 128
        %1306 = vxpose.xlu0.b32.cont [8/16] %v1266, 128
        %1307 = vxpose.xlu0.b32.cont [9/16] %v1268, 128
        %1308 = vxpose.xlu0.b32.cont [10/16] %v1270, 128
        %1309 = vxpose.xlu0.b32.cont [11/16] %v1272, 128
        %1310 = vxpose.xlu0.b32.cont [12/16] %v1274, 128
        %1311 = vxpose.xlu0.b32.cont [13/16] %v1276, 128
        %1312 = vxpose.xlu0.b32.cont [14/16] %v1278, 128
        %1313 = vxpose.xlu0.b32.cont [15/16] %v1280, 128
        %1314 = vxpose.xlu0.b32.end [16/16] %v1282, 128
        %v1315 = vpop.trf.xlu0
        %v1316 = vpop.trf.xlu0
        %v1317 = vpop.trf.xlu0
        %v1318 = vpop.trf.xlu0
        %v1319 = vpop.trf.xlu0
        %v1320 = vpop.trf.xlu0
        %v1321 = vpop.trf.xlu0
        %v1322 = vpop.trf.xlu0
        %v1323 = vpop.trf.xlu0
        %v1324 = vpop.trf.xlu0
        %v1325 = vpop.trf.xlu0
        %v1326 = vpop.trf.xlu0
        %v1327 = vpop.trf.xlu0
        %v1328 = vpop.trf.xlu0
        %v1329 = vpop.trf.xlu0
        %v1330 = vpop.trf.xlu0
        %v1331 = vpack.c.bf16 %v1315, %v1315
        %s1332 = scalar_lea.vmem %s272, 12 [#allocation2]
        %1333 = vst [vmem:[%s1332] sm:$0xf] %v1331
        %1334 = vrot.lane.b32.xlu0 %v842, 72
        %v1335 = vpop.permute.xlu0 %1334
        %1336 = vrot.lane.b32.xlu0 %v843, 72
        %v1337 = vpop.permute.xlu0 %1336
        %1338 = vrot.lane.b32.xlu0 %v844, 72
        %v1339 = vpop.permute.xlu0 %1338
        %1340 = vrot.lane.b32.xlu0 %v845, 72
        %v1341 = vpop.permute.xlu0 %1340
        %1342 = vrot.lane.b32.xlu0 %v846, 72
        %v1343 = vpop.permute.xlu0 %1342
        %1344 = vrot.lane.b32.xlu0 %v847, 72
        %v1345 = vpop.permute.xlu0 %1344
        %1346 = vrot.lane.b32.xlu0 %v848, 72
        %v1347 = vpop.permute.xlu0 %1346
        %1348 = vrot.lane.b32.xlu0 %v849, 72
        %v1349 = vpop.permute.xlu0 %1348
        %1350 = vrot.lane.b32.xlu0 %v850, 72
        %v1351 = vpop.permute.xlu0 %1350
        %1352 = vrot.lane.b32.xlu0 %v851, 72
        %v1353 = vpop.permute.xlu0 %1352
        %1354 = vrot.lane.b32.xlu0 %v852, 72
        %v1355 = vpop.permute.xlu0 %1354
        %1356 = vrot.lane.b32.xlu0 %v853, 72
        %v1357 = vpop.permute.xlu0 %1356
        %1358 = vrot.lane.b32.xlu0 %v854, 72
        %v1359 = vpop.permute.xlu0 %1358
        %1360 = vrot.lane.b32.xlu0 %v855, 72
        %v1361 = vpop.permute.xlu0 %1360
        %1362 = vrot.lane.b32.xlu0 %v856, 72
        %v1363 = vpop.permute.xlu0 %1362
        %1364 = vrot.lane.b32.xlu0 %v857, 72
        %v1365 = vpop.permute.xlu0 %1364
        %s1382 = scalar_lea.vmem %s278, 192 [#allocation4]
        %1383 = vst.msk [vmem:[%s1382] sm:$0xf] %vm922, %v1335
        %1384 = vst.msk [vmem:[%s1382 + $0x4] sm:$0xf] %vm922, %v1337
        %1385 = vst.msk [vmem:[%s1382 + $0x8] sm:$0xf] %vm922, %v1339
        %1386 = vst.msk [vmem:[%s1382 + $0xc] sm:$0xf] %vm922, %v1341
        %1387 = vst.msk [vmem:[%s1382 + $0x10] sm:$0xf] %vm922, %v1343
        %1388 = vst.msk [vmem:[%s1382 + $0x14] sm:$0xf] %vm922, %v1345
        %1389 = vst.msk [vmem:[%s1382 + $0x18] sm:$0xf] %vm922, %v1347
        %1390 = vst.msk [vmem:[%s1382 + $0x1c] sm:$0xf] %vm922, %v1349
        %1391 = vst.msk [vmem:[%s1382 + $0x20] sm:$0xf] %vm922, %v1351
        %1392 = vst.msk [vmem:[%s1382 + $0x24] sm:$0xf] %vm922, %v1353
        %1393 = vst.msk [vmem:[%s1382 + $0x28] sm:$0xf] %vm922, %v1355
        %1394 = vst.msk [vmem:[%s1382 + $0x2c] sm:$0xf] %vm922, %v1357
        %1395 = vst.msk [vmem:[%s1382 + $0x30] sm:$0xf] %vm922, %v1359
        %1396 = vst.msk [vmem:[%s1382 + $0x34] sm:$0xf] %vm922, %v1361
        %1397 = vst.msk [vmem:[%s1382 + $0x38] sm:$0xf] %vm922, %v1363
        %1398 = vst.msk [vmem:[%s1382 + $0x3c] sm:$0xf] %vm922, %v1365
        %s1399 = sand.u32 %s155, 1
        %s1400 = scalar_lea.sflag [#allocation3], %s1399
        %s1401 = sand.u32 %s155, 1
        %s1402 = smul.addr %s1401, 16
        %s1403 = scalar_lea.vmem [#allocation2], %s1402
        %s1404 = sand.u32 %s183, 1
        %s1405 = sand.u32 %s183, 1
        %s1406 = smul.addr %s1405, 256
        %s1407 = scalar_lea.vmem [#allocation4], %s1406
        // Predicated region
        $region41: #{tpu_custom_call.1} parent=39 // pred_check
          %p1408 = pneg %p165
        $region42: #{tpu_custom_call.1} parent=39 // pred_check_branch
          %1410 = sbr.rel (%p1408) target = $region44
        $region43: #{tpu_custom_call.1} parent=39 // pred_region
          %1412 = vsyncadd %s1400, 0
          %s1413 = smul.addr %s25, 8
          %s1414 = sadd.s32 %s26, %s1413
          %s1415 = smul.addr %s1414, 4
          %s1416 = scalar_lea.hbm %s5, %s1415
          %s1417 = sshll.u32 %s1403, 4
          %s1418 = int_to_ptr.vmem [resolvable:$true] %s1417
          %s1419 = sshll.u32 %s1416, 4
          %s1420 = int_to_ptr.hbm [resolvable:$true] %s1419
          %1425 = dma.vmem_to_hbm [thread:$0]  %s1418, 256, %s1420, %s1400, 64, 128, 4
        $region44: #{tpu_custom_call.1} parent=39 // pred_fallthru
          _
        // Predicated region
        $region45: #{tpu_custom_call.1} parent=39 // pred_check
          %p1426 = pneg %p193
        $region46: #{tpu_custom_call.1} parent=39 // pred_check_branch
          %1428 = sbr.rel (%p1426) target = $region48
        $region47: #{tpu_custom_call.1} parent=39 // pred_region
          %s1429 = smul.u32 16, %s26
          %s1430 = smul.addr %s25, 128
          %s1431 = sadd.s32 %s1429, %s1430
          %s1432 = smul.addr %s1431, 4
          %s1433 = scalar_lea.vmem %s6, %s1432
          // Predicated region
          $region49: #{tpu_custom_call.1} parent=47 // pred_check
            _
          $region50: #{tpu_custom_call.1} parent=47 // pred_check_branch
            %1435 = sbr.rel (0) target = $region52
          $region51: #{tpu_custom_call.1} parent=47 // pred_region
            // Predicated region
            $region53: #{tpu_custom_call.1} parent=51 // pred_check
              _
            $region54: #{tpu_custom_call.1} parent=51 // pred_check_branch
              %1437 = sbr.rel target = $region56
            $region55: #{tpu_custom_call.1} parent=51 // pred_region
              // Predicated region
              $region68: #{tpu_custom_call.1} parent=55 // pred_check
                _
              $region69: #{tpu_custom_call.1} parent=55 // pred_check_branch
                %1579 = sbr.rel (0) target = $region71
              $region70: #{tpu_custom_call.1} parent=55 // pred_region
                loop: start=0, step=1, limit=1
                $region72: #{tpu_custom_call.1} parent=70 // loop_pre_header
                  _
                $region73: #{tpu_custom_call.1} parent=70 // loop_header
                  %s1581 = sphi 0, %s1585
                  %p1582 = scmp.ge.s32.totalorder %s1581, 1
                  %s1586 = sphi %s1407, %s1407
                  %s1587 = sphi %s1433, %s1433
                $region74: #{tpu_custom_call.1} parent=70 // loop_header_branch
                  %1584 = sbr.rel (%p1582) target = $region78
                $region75: #{tpu_custom_call.1} parent=70 // loop_body
                  _
                $region76: #{tpu_custom_call.1} parent=70 // loop_footer
                  %s1585 = sadd.s32 1, %s1581
                $region77: #{tpu_custom_call.1} parent=70 // loop_footer_branch
                  %1580 = sbr.rel target = $region73
                $region78: #{tpu_custom_call.1} parent=70 // loop_exit
                  _
                %s1589 = ssub.s32 16, 1
                loop: start=0, step=1, limit=1
                $region79: #{tpu_custom_call.1} parent=70 // loop_pre_header
                  _
                $region80: #{tpu_custom_call.1} parent=70 // loop_header
                  %s1591 = sphi 0, %s1595
                  %p1592 = scmp.ge.s32.totalorder %s1591, 1
                  %s1596 = sphi %s1407, %s1407
                  %s1597 = sphi %s1433, %s1433
                $region81: #{tpu_custom_call.1} parent=70 // loop_header_branch
                  %1594 = sbr.rel (%p1592) target = $region85
                $region82: #{tpu_custom_call.1} parent=70 // loop_body
                  %v1598 = vld [vmem:[%s1596] sm:%s1589]
                  %1599 = vst [vmem:[%s1597] sm:%s1589] %v1598
                  %v1600 = vld [vmem:[%s1596 + $0x4] sm:%s1589]
                  %1601 = vst [vmem:[%s1597 + $0x4] sm:%s1589] %v1600
                  %v1602 = vld [vmem:[%s1596 + $0x8] sm:%s1589]
                  %1603 = vst [vmem:[%s1597 + $0x8] sm:%s1589] %v1602
                  %v1604 = vld [vmem:[%s1596 + $0xc] sm:%s1589]
                  %1605 = vst [vmem:[%s1597 + $0xc] sm:%s1589] %v1604
                  %v1606 = vld [vmem:[%s1596 + $0x10] sm:%s1589]
                  %1607 = vst [vmem:[%s1597 + $0x10] sm:%s1589] %v1606
                  %v1608 = vld [vmem:[%s1596 + $0x14] sm:%s1589]
                  %1609 = vst [vmem:[%s1597 + $0x14] sm:%s1589] %v1608
                  %v1610 = vld [vmem:[%s1596 + $0x18] sm:%s1589]
                  %1611 = vst [vmem:[%s1597 + $0x18] sm:%s1589] %v1610
                  %v1612 = vld [vmem:[%s1596 + $0x1c] sm:%s1589]
                  %1613 = vst [vmem:[%s1597 + $0x1c] sm:%s1589] %v1612
                  %v1614 = vld [vmem:[%s1596 + $0x20] sm:%s1589]
                  %1615 = vst [vmem:[%s1597 + $0x20] sm:%s1589] %v1614
                  %v1616 = vld [vmem:[%s1596 + $0x24] sm:%s1589]
                  %1617 = vst [vmem:[%s1597 + $0x24] sm:%s1589] %v1616
                  %v1618 = vld [vmem:[%s1596 + $0x28] sm:%s1589]
                  %1619 = vst [vmem:[%s1597 + $0x28] sm:%s1589] %v1618
                  %v1620 = vld [vmem:[%s1596 + $0x2c] sm:%s1589]
                  %1621 = vst [vmem:[%s1597 + $0x2c] sm:%s1589] %v1620
                  %v1622 = vld [vmem:[%s1596 + $0x30] sm:%s1589]
                  %1623 = vst [vmem:[%s1597 + $0x30] sm:%s1589] %v1622
                  %v1624 = vld [vmem:[%s1596 + $0x34] sm:%s1589]
                  %1625 = vst [vmem:[%s1597 + $0x34] sm:%s1589] %v1624
                  %v1626 = vld [vmem:[%s1596 + $0x38] sm:%s1589]
                  %1627 = vst [vmem:[%s1597 + $0x38] sm:%s1589] %v1626
                  %v1628 = vld [vmem:[%s1596 + $0x3c] sm:%s1589]
                  %1629 = vst [vmem:[%s1597 + $0x3c] sm:%s1589] %v1628
                  %v1630 = vld [vmem:[%s1596 + $0x40] sm:%s1589]
                  %1631 = vst [vmem:[%s1597 + $0x80] sm:%s1589] %v1630
                  %v1632 = vld [vmem:[%s1596 + $0x44] sm:%s1589]
                  %1633 = vst [vmem:[%s1597 + $0x84] sm:%s1589] %v1632
                  %v1634 = vld [vmem:[%s1596 + $0x48] sm:%s1589]
                  %1635 = vst [vmem:[%s1597 + $0x88] sm:%s1589] %v1634
                  %v1636 = vld [vmem:[%s1596 + $0x4c] sm:%s1589]
                  %1637 = vst [vmem:[%s1597 + $0x8c] sm:%s1589] %v1636
                  %v1638 = vld [vmem:[%s1596 + $0x50] sm:%s1589]
                  %1639 = vst [vmem:[%s1597 + $0x90] sm:%s1589] %v1638
                  %v1640 = vld [vmem:[%s1596 + $0x54] sm:%s1589]
                  %1641 = vst [vmem:[%s1597 + $0x94] sm:%s1589] %v1640
                  %v1642 = vld [vmem:[%s1596 + $0x58] sm:%s1589]
                  %1643 = vst [vmem:[%s1597 + $0x98] sm:%s1589] %v1642
                  %v1644 = vld [vmem:[%s1596 + $0x5c] sm:%s1589]
                  %1645 = vst [vmem:[%s1597 + $0x9c] sm:%s1589] %v1644
                  %v1646 = vld [vmem:[%s1596 + $0x60] sm:%s1589]
                  %1647 = vst [vmem:[%s1597 + $0xa0] sm:%s1589] %v1646
                  %v1648 = vld [vmem:[%s1596 + $0x64] sm:%s1589]
                  %1649 = vst [vmem:[%s1597 + $0xa4] sm:%s1589] %v1648
                  %v1650 = vld [vmem:[%s1596 + $0x68] sm:%s1589]
                  %1651 = vst [vmem:[%s1597 + $0xa8] sm:%s1589] %v1650
                  %v1652 = vld [vmem:[%s1596 + $0x6c] sm:%s1589]
                  %1653 = vst [vmem:[%s1597 + $0xac] sm:%s1589] %v1652
                  %v1654 = vld [vmem:[%s1596 + $0x70] sm:%s1589]
                  %1655 = vst [vmem:[%s1597 + $0xb0] sm:%s1589] %v1654
                  %v1656 = vld [vmem:[%s1596 + $0x74] sm:%s1589]
                  %1657 = vst [vmem:[%s1597 + $0xb4] sm:%s1589] %v1656
                  %v1658 = vld [vmem:[%s1596 + $0x78] sm:%s1589]
                  %1659 = vst [vmem:[%s1597 + $0xb8] sm:%s1589] %v1658
                  %v1660 = vld [vmem:[%s1596 + $0x7c] sm:%s1589]
                  %1661 = vst [vmem:[%s1597 + $0xbc] sm:%s1589] %v1660
                  %v1662 = vld [vmem:[%s1596 + $0x80] sm:%s1589]
                  %1663 = vst [vmem:[%s1597 + $0x100] sm:%s1589] %v1662
                  %v1664 = vld [vmem:[%s1596 + $0x84] sm:%s1589]
                  %1665 = vst [vmem:[%s1597 + $0x104] sm:%s1589] %v1664
                  %v1666 = vld [vmem:[%s1596 + $0x88] sm:%s1589]
                  %1667 = vst [vmem:[%s1597 + $0x108] sm:%s1589] %v1666
                  %v1668 = vld [vmem:[%s1596 + $0x8c] sm:%s1589]
                  %1669 = vst [vmem:[%s1597 + $0x10c] sm:%s1589] %v1668
                  %v1670 = vld [vmem:[%s1596 + $0x90] sm:%s1589]
                  %1671 = vst [vmem:[%s1597 + $0x110] sm:%s1589] %v1670
                  %v1672 = vld [vmem:[%s1596 + $0x94] sm:%s1589]
                  %1673 = vst [vmem:[%s1597 + $0x114] sm:%s1589] %v1672
                  %v1674 = vld [vmem:[%s1596 + $0x98] sm:%s1589]
                  %1675 = vst [vmem:[%s1597 + $0x118] sm:%s1589] %v1674
                  %v1676 = vld [vmem:[%s1596 + $0x9c] sm:%s1589]
                  %1677 = vst [vmem:[%s1597 + $0x11c] sm:%s1589] %v1676
                  %v1678 = vld [vmem:[%s1596 + $0xa0] sm:%s1589]
                  %1679 = vst [vmem:[%s1597 + $0x120] sm:%s1589] %v1678
                  %v1680 = vld [vmem:[%s1596 + $0xa4] sm:%s1589]
                  %1681 = vst [vmem:[%s1597 + $0x124] sm:%s1589] %v1680
                  %v1682 = vld [vmem:[%s1596 + $0xa8] sm:%s1589]
                  %1683 = vst [vmem:[%s1597 + $0x128] sm:%s1589] %v1682
                  %v1684 = vld [vmem:[%s1596 + $0xac] sm:%s1589]
                  %1685 = vst [vmem:[%s1597 + $0x12c] sm:%s1589] %v1684
                  %v1686 = vld [vmem:[%s1596 + $0xb0] sm:%s1589]
                  %1687 = vst [vmem:[%s1597 + $0x130] sm:%s1589] %v1686
                  %v1688 = vld [vmem:[%s1596 + $0xb4] sm:%s1589]
                  %1689 = vst [vmem:[%s1597 + $0x134] sm:%s1589] %v1688
                  %v1690 = vld [vmem:[%s1596 + $0xb8] sm:%s1589]
                  %1691 = vst [vmem:[%s1597 + $0x138] sm:%s1589] %v1690
                  %v1692 = vld [vmem:[%s1596 + $0xbc] sm:%s1589]
                  %1693 = vst [vmem:[%s1597 + $0x13c] sm:%s1589] %v1692
                  %v1694 = vld [vmem:[%s1596 + $0xc0] sm:%s1589]
                  %1695 = vst [vmem:[%s1597 + $0x180] sm:%s1589] %v1694
                  %v1696 = vld [vmem:[%s1596 + $0xc4] sm:%s1589]
                  %1697 = vst [vmem:[%s1597 + $0x184] sm:%s1589] %v1696
                  %v1698 = vld [vmem:[%s1596 + $0xc8] sm:%s1589]
                  %1699 = vst [vmem:[%s1597 + $0x188] sm:%s1589] %v1698
                  %v1700 = vld [vmem:[%s1596 + $0xcc] sm:%s1589]
                  %1701 = vst [vmem:[%s1597 + $0x18c] sm:%s1589] %v1700
                  %v1702 = vld [vmem:[%s1596 + $0xd0] sm:%s1589]
                  %1703 = vst [vmem:[%s1597 + $0x190] sm:%s1589] %v1702
                  %v1704 = vld [vmem:[%s1596 + $0xd4] sm:%s1589]
                  %1705 = vst [vmem:[%s1597 + $0x194] sm:%s1589] %v1704
                  %v1706 = vld [vmem:[%s1596 + $0xd8] sm:%s1589]
                  %1707 = vst [vmem:[%s1597 + $0x198] sm:%s1589] %v1706
                  %v1708 = vld [vmem:[%s1596 + $0xdc] sm:%s1589]
                  %1709 = vst [vmem:[%s1597 + $0x19c] sm:%s1589] %v1708
                  %v1710 = vld [vmem:[%s1596 + $0xe0] sm:%s1589]
                  %1711 = vst [vmem:[%s1597 + $0x1a0] sm:%s1589] %v1710
                  %v1712 = vld [vmem:[%s1596 + $0xe4] sm:%s1589]
                  %1713 = vst [vmem:[%s1597 + $0x1a4] sm:%s1589] %v1712
                  %v1714 = vld [vmem:[%s1596 + $0xe8] sm:%s1589]
                  %1715 = vst [vmem:[%s1597 + $0x1a8] sm:%s1589] %v1714
                  %v1716 = vld [vmem:[%s1596 + $0xec] sm:%s1589]
                  %1717 = vst [vmem:[%s1597 + $0x1ac] sm:%s1589] %v1716
                  %v1718 = vld [vmem:[%s1596 + $0xf0] sm:%s1589]
                  %1719 = vst [vmem:[%s1597 + $0x1b0] sm:%s1589] %v1718
                  %v1720 = vld [vmem:[%s1596 + $0xf4] sm:%s1589]
                  %1721 = vst [vmem:[%s1597 + $0x1b4] sm:%s1589] %v1720
                  %v1722 = vld [vmem:[%s1596 + $0xf8] sm:%s1589]
                  %1723 = vst [vmem:[%s1597 + $0x1b8] sm:%s1589] %v1722
                  %v1724 = vld [vmem:[%s1596 + $0xfc] sm:%s1589]
                  %1725 = vst [vmem:[%s1597 + $0x1bc] sm:%s1589] %v1724
                $region83: #{tpu_custom_call.1} parent=70 // loop_footer
                  %s1595 = sadd.s32 1, %s1591
                $region84: #{tpu_custom_call.1} parent=70 // loop_footer_branch
                  %1590 = sbr.rel target = $region80
                $region85: #{tpu_custom_call.1} parent=70 // loop_exit
                  _
              $region71: #{tpu_custom_call.1} parent=55 // pred_fallthru
                _
            $region56: #{tpu_custom_call.1} parent=51 // pred_fallthru
              _
            // Predicated region
            $region57: #{tpu_custom_call.1} parent=51 // pred_check
              _
            $region58: #{tpu_custom_call.1} parent=51 // pred_check_branch
              %1439 = sbr.rel (0) target = $region60
            $region59: #{tpu_custom_call.1} parent=51 // pred_region
              %s1441 = ssub.s32 16, 1
              loop: start=0, step=1, limit=1
              $region61: #{tpu_custom_call.1} parent=59 // loop_pre_header
                _
              $region62: #{tpu_custom_call.1} parent=59 // loop_header
                %s1443 = sphi 0, %s1447
                %p1444 = scmp.ge.s32.totalorder %s1443, 1
                %s1448 = sphi %s1407, %s1407
                %s1449 = sphi %s1433, %s1433
              $region63: #{tpu_custom_call.1} parent=59 // loop_header_branch
                %1446 = sbr.rel (%p1444) target = $region67
              $region64: #{tpu_custom_call.1} parent=59 // loop_body
                %v1450 = vld [vmem:[%s1448] sm:%s1441]
                %1451 = vst [vmem:[%s1449] sm:%s1441] %v1450
                %v1452 = vld [vmem:[%s1448 + $0x4] sm:%s1441]
                %1453 = vst [vmem:[%s1449 + $0x4] sm:%s1441] %v1452
                %v1454 = vld [vmem:[%s1448 + $0x8] sm:%s1441]
                %1455 = vst [vmem:[%s1449 + $0x8] sm:%s1441] %v1454
                %v1456 = vld [vmem:[%s1448 + $0xc] sm:%s1441]
                %1457 = vst [vmem:[%s1449 + $0xc] sm:%s1441] %v1456
                %v1458 = vld [vmem:[%s1448 + $0x10] sm:%s1441]
                %1459 = vst [vmem:[%s1449 + $0x10] sm:%s1441] %v1458
                %v1460 = vld [vmem:[%s1448 + $0x14] sm:%s1441]
                %1461 = vst [vmem:[%s1449 + $0x14] sm:%s1441] %v1460
                %v1462 = vld [vmem:[%s1448 + $0x18] sm:%s1441]
                %1463 = vst [vmem:[%s1449 + $0x18] sm:%s1441] %v1462
                %v1464 = vld [vmem:[%s1448 + $0x1c] sm:%s1441]
                %1465 = vst [vmem:[%s1449 + $0x1c] sm:%s1441] %v1464
                %v1466 = vld [vmem:[%s1448 + $0x20] sm:%s1441]
                %1467 = vst [vmem:[%s1449 + $0x20] sm:%s1441] %v1466
                %v1468 = vld [vmem:[%s1448 + $0x24] sm:%s1441]
                %1469 = vst [vmem:[%s1449 + $0x24] sm:%s1441] %v1468
                %v1470 = vld [vmem:[%s1448 + $0x28] sm:%s1441]
                %1471 = vst [vmem:[%s1449 + $0x28] sm:%s1441] %v1470
                %v1472 = vld [vmem:[%s1448 + $0x2c] sm:%s1441]
                %1473 = vst [vmem:[%s1449 + $0x2c] sm:%s1441] %v1472
                %v1474 = vld [vmem:[%s1448 + $0x30] sm:%s1441]
                %1475 = vst [vmem:[%s1449 + $0x30] sm:%s1441] %v1474
                %v1476 = vld [vmem:[%s1448 + $0x34] sm:%s1441]
                %1477 = vst [vmem:[%s1449 + $0x34] sm:%s1441] %v1476
                %v1478 = vld [vmem:[%s1448 + $0x38] sm:%s1441]
                %1479 = vst [vmem:[%s1449 + $0x38] sm:%s1441] %v1478
                %v1480 = vld [vmem:[%s1448 + $0x3c] sm:%s1441]
                %1481 = vst [vmem:[%s1449 + $0x3c] sm:%s1441] %v1480
                %v1482 = vld [vmem:[%s1448 + $0x40] sm:%s1441]
                %1483 = vst [vmem:[%s1449 + $0x80] sm:%s1441] %v1482
                %v1484 = vld [vmem:[%s1448 + $0x44] sm:%s1441]
                %1485 = vst [vmem:[%s1449 + $0x84] sm:%s1441] %v1484
                %v1486 = vld [vmem:[%s1448 + $0x48] sm:%s1441]
                %1487 = vst [vmem:[%s1449 + $0x88] sm:%s1441] %v1486
                %v1488 = vld [vmem:[%s1448 + $0x4c] sm:%s1441]
                %1489 = vst [vmem:[%s1449 + $0x8c] sm:%s1441] %v1488
                %v1490 = vld [vmem:[%s1448 + $0x50] sm:%s1441]
                %1491 = vst [vmem:[%s1449 + $0x90] sm:%s1441] %v1490
                %v1492 = vld [vmem:[%s1448 + $0x54] sm:%s1441]
                %1493 = vst [vmem:[%s1449 + $0x94] sm:%s1441] %v1492
                %v1494 = vld [vmem:[%s1448 + $0x58] sm:%s1441]
                %1495 = vst [vmem:[%s1449 + $0x98] sm:%s1441] %v1494
                %v1496 = vld [vmem:[%s1448 + $0x5c] sm:%s1441]
                %1497 = vst [vmem:[%s1449 + $0x9c] sm:%s1441] %v1496
                %v1498 = vld [vmem:[%s1448 + $0x60] sm:%s1441]
                %1499 = vst [vmem:[%s1449 + $0xa0] sm:%s1441] %v1498
                %v1500 = vld [vmem:[%s1448 + $0x64] sm:%s1441]
                %1501 = vst [vmem:[%s1449 + $0xa4] sm:%s1441] %v1500
                %v1502 = vld [vmem:[%s1448 + $0x68] sm:%s1441]
                %1503 = vst [vmem:[%s1449 + $0xa8] sm:%s1441] %v1502
                %v1504 = vld [vmem:[%s1448 + $0x6c] sm:%s1441]
                %1505 = vst [vmem:[%s1449 + $0xac] sm:%s1441] %v1504
                %v1506 = vld [vmem:[%s1448 + $0x70] sm:%s1441]
                %1507 = vst [vmem:[%s1449 + $0xb0] sm:%s1441] %v1506
                %v1508 = vld [vmem:[%s1448 + $0x74] sm:%s1441]
                %1509 = vst [vmem:[%s1449 + $0xb4] sm:%s1441] %v1508
                %v1510 = vld [vmem:[%s1448 + $0x78] sm:%s1441]
                %1511 = vst [vmem:[%s1449 + $0xb8] sm:%s1441] %v1510
                %v1512 = vld [vmem:[%s1448 + $0x7c] sm:%s1441]
                %1513 = vst [vmem:[%s1449 + $0xbc] sm:%s1441] %v1512
                %v1514 = vld [vmem:[%s1448 + $0x80] sm:%s1441]
                %1515 = vst [vmem:[%s1449 + $0x100] sm:%s1441] %v1514
                %v1516 = vld [vmem:[%s1448 + $0x84] sm:%s1441]
                %1517 = vst [vmem:[%s1449 + $0x104] sm:%s1441] %v1516
                %v1518 = vld [vmem:[%s1448 + $0x88] sm:%s1441]
                %1519 = vst [vmem:[%s1449 + $0x108] sm:%s1441] %v1518
                %v1520 = vld [vmem:[%s1448 + $0x8c] sm:%s1441]
                %1521 = vst [vmem:[%s1449 + $0x10c] sm:%s1441] %v1520
                %v1522 = vld [vmem:[%s1448 + $0x90] sm:%s1441]
                %1523 = vst [vmem:[%s1449 + $0x110] sm:%s1441] %v1522
                %v1524 = vld [vmem:[%s1448 + $0x94] sm:%s1441]
                %1525 = vst [vmem:[%s1449 + $0x114] sm:%s1441] %v1524
                %v1526 = vld [vmem:[%s1448 + $0x98] sm:%s1441]
                %1527 = vst [vmem:[%s1449 + $0x118] sm:%s1441] %v1526
                %v1528 = vld [vmem:[%s1448 + $0x9c] sm:%s1441]
                %1529 = vst [vmem:[%s1449 + $0x11c] sm:%s1441] %v1528
                %v1530 = vld [vmem:[%s1448 + $0xa0] sm:%s1441]
                %1531 = vst [vmem:[%s1449 + $0x120] sm:%s1441] %v1530
                %v1532 = vld [vmem:[%s1448 + $0xa4] sm:%s1441]
                %1533 = vst [vmem:[%s1449 + $0x124] sm:%s1441] %v1532
                %v1534 = vld [vmem:[%s1448 + $0xa8] sm:%s1441]
                %1535 = vst [vmem:[%s1449 + $0x128] sm:%s1441] %v1534
                %v1536 = vld [vmem:[%s1448 + $0xac] sm:%s1441]
                %1537 = vst [vmem:[%s1449 + $0x12c] sm:%s1441] %v1536
                %v1538 = vld [vmem:[%s1448 + $0xb0] sm:%s1441]
                %1539 = vst [vmem:[%s1449 + $0x130] sm:%s1441] %v1538
                %v1540 = vld [vmem:[%s1448 + $0xb4] sm:%s1441]
                %1541 = vst [vmem:[%s1449 + $0x134] sm:%s1441] %v1540
                %v1542 = vld [vmem:[%s1448 + $0xb8] sm:%s1441]
                %1543 = vst [vmem:[%s1449 + $0x138] sm:%s1441] %v1542
                %v1544 = vld [vmem:[%s1448 + $0xbc] sm:%s1441]
                %1545 = vst [vmem:[%s1449 + $0x13c] sm:%s1441] %v1544
                %v1546 = vld [vmem:[%s1448 + $0xc0] sm:%s1441]
                %1547 = vst [vmem:[%s1449 + $0x180] sm:%s1441] %v1546
                %v1548 = vld [vmem:[%s1448 + $0xc4] sm:%s1441]
                %1549 = vst [vmem:[%s1449 + $0x184] sm:%s1441] %v1548
                %v1550 = vld [vmem:[%s1448 + $0xc8] sm:%s1441]
                %1551 = vst [vmem:[%s1449 + $0x188] sm:%s1441] %v1550
                %v1552 = vld [vmem:[%s1448 + $0xcc] sm:%s1441]
                %1553 = vst [vmem:[%s1449 + $0x18c] sm:%s1441] %v1552
                %v1554 = vld [vmem:[%s1448 + $0xd0] sm:%s1441]
                %1555 = vst [vmem:[%s1449 + $0x190] sm:%s1441] %v1554
                %v1556 = vld [vmem:[%s1448 + $0xd4] sm:%s1441]
                %1557 = vst [vmem:[%s1449 + $0x194] sm:%s1441] %v1556
                %v1558 = vld [vmem:[%s1448 + $0xd8] sm:%s1441]
                %1559 = vst [vmem:[%s1449 + $0x198] sm:%s1441] %v1558
                %v1560 = vld [vmem:[%s1448 + $0xdc] sm:%s1441]
                %1561 = vst [vmem:[%s1449 + $0x19c] sm:%s1441] %v1560
                %v1562 = vld [vmem:[%s1448 + $0xe0] sm:%s1441]
                %1563 = vst [vmem:[%s1449 + $0x1a0] sm:%s1441] %v1562
                %v1564 = vld [vmem:[%s1448 + $0xe4] sm:%s1441]
                %1565 = vst [vmem:[%s1449 + $0x1a4] sm:%s1441] %v1564
                %v1566 = vld [vmem:[%s1448 + $0xe8] sm:%s1441]
                %1567 = vst [vmem:[%s1449 + $0x1a8] sm:%s1441] %v1566
                %v1568 = vld [vmem:[%s1448 + $0xec] sm:%s1441]
                %1569 = vst [vmem:[%s1449 + $0x1ac] sm:%s1441] %v1568
                %v1570 = vld [vmem:[%s1448 + $0xf0] sm:%s1441]
                %1571 = vst [vmem:[%s1449 + $0x1b0] sm:%s1441] %v1570
                %v1572 = vld [vmem:[%s1448 + $0xf4] sm:%s1441]
                %1573 = vst [vmem:[%s1449 + $0x1b4] sm:%s1441] %v1572
                %v1574 = vld [vmem:[%s1448 + $0xf8] sm:%s1441]
                %1575 = vst [vmem:[%s1449 + $0x1b8] sm:%s1441] %v1574
                %v1576 = vld [vmem:[%s1448 + $0xfc] sm:%s1441]
                %1577 = vst [vmem:[%s1449 + $0x1bc] sm:%s1441] %v1576
              $region65: #{tpu_custom_call.1} parent=59 // loop_footer
                %s1447 = sadd.s32 1, %s1443
              $region66: #{tpu_custom_call.1} parent=59 // loop_footer_branch
                %1442 = sbr.rel target = $region62
              $region67: #{tpu_custom_call.1} parent=59 // loop_exit
                _
            $region60: #{tpu_custom_call.1} parent=51 // pred_fallthru
              _
          $region52: #{tpu_custom_call.1} parent=47 // pred_fallthru
            _
          %1726 = vnop
        $region48: #{tpu_custom_call.1} parent=39 // pred_fallthru
          _
      $region40: #{tpu_custom_call.1} parent=5 // pred_fallthru
        _
      %p1727 = scmp.le.s32.totalorder 2, %s16
      // Predicated region
      $region86: #{tpu_custom_call.1} parent=5 // pred_check
        %p1728 = pneg %p1727
      $region87: #{tpu_custom_call.1} parent=5 // pred_check_branch
        %1730 = sbr.rel (%p1728) target = $region89
      $region88: #{tpu_custom_call.1} parent=5 // pred_region
        %s1731 = ssub.s32 %s16, 2
        // Predicated region
        $region90: #{tpu_custom_call.1} parent=88 // pred_check
          %p1732 = pneg %p171
        $region91: #{tpu_custom_call.1} parent=88 // pred_check_branch
          %1734 = sbr.rel (%p1732) target = $region93
        $region92: #{tpu_custom_call.1} parent=88 // pred_region
          %s1735 = sand.u32 %s156, 1
          %s1736 = scalar_lea.sflag [#allocation3], %s1735
          %s1737 = sand.u32 %s156, 1
          %s1738 = smul.addr %s1737, 16
          %s1739 = scalar_lea.vmem [#allocation2], %s1738
          %1741 = dma.done %s1736, 256
        $region93: #{tpu_custom_call.1} parent=88 // pred_fallthru
          _
        // Predicated region
        $region94: #{tpu_custom_call.1} parent=88 // pred_check
          %p1742 = pneg %p199
        $region95: #{tpu_custom_call.1} parent=88 // pred_check_branch
          %1744 = sbr.rel (%p1742) target = $region97
        $region96: #{tpu_custom_call.1} parent=88 // pred_region
          %s1745 = sand.u32 %s184, 1
          %s1746 = sand.u32 %s184, 1
          %s1747 = smul.addr %s1746, 256
          %s1748 = scalar_lea.vmem [#allocation4], %s1747
        $region97: #{tpu_custom_call.1} parent=88 // pred_fallthru
          _
      $region89: #{tpu_custom_call.1} parent=5 // pred_fallthru
        _
    $region6: #{tpu_custom_call.1} parent=1 // loop_footer
      %s20 = sadd.s32 1, %s16
    $region7: #{tpu_custom_call.1} parent=1 // loop_footer_branch
      %15 = sbr.rel target = $region3
    $region8: #{tpu_custom_call.1} parent=1 // loop_exit
      _
    %1749 = vsyncpa [#allocation3], 1
    %s1750 = scalar_lea.sflag [#allocation3], 1
    %1751 = vsyncpa %s1750, 1

// kernel: tpu_custom_call.1
$region0: #{tpu_custom_call.1}
  #allocation0 [shape = 'u32[]', space=smem, size = 0x4, offset = 0x4, fixed_abs, tag = 'smem constant byte address 0x4 - core index']
  #allocation1 [shape = 'u32[72,128]{1,0:T(1,128)}', space=vmem, size = 0x9000, scoped, tag = 'internal scratch']
  %s0 = inlined_call_operand.vmem [shape: f32[2,256,32], index: 0, kind: input, shape index: {}]
  %s1 = inlined_call_operand.vmem [shape: f32[1,32], index: 1, kind: input, shape index: {}]
  %s2 = inlined_call_operand.vmem [shape: f32[1,32], index: 2, kind: input, shape index: {}]
  %s3 = inlined_call_operand.vmem [shape: bf16[32,64], index: 3, kind: input, shape index: {}]
  %s4 = inlined_call_operand.vmem [shape: f32[1,64], index: 4, kind: input, shape index: {}]
  %s5 = inlined_call_operand.hbm [shape: bf16[2,4,8,256], index: 5, kind: output, shape index: {0}]
  %s6 = inlined_call_operand.vmem [shape: bf16[2,4,256,8], index: 6, kind: output, shape index: {1}]
  %7 = xla_tuple %s5, %s6
  %s8 = sld [smem:[#allocation0]]
  $region98: #{tpu_custom_call.1} parent=0
    _
  %s10 = ssub.s32 1, %s8
  %s11 = scalar_select 0, %s10, %s8
  $region1: #{tpu_custom_call.1} parent=0
    #allocation2 [shape = 'u8[16384]{0}', space=vmem, size = 0x4000, scoped, tag = 'output window, operand 0']
    #allocation3 [shape = 's32[2]{0}', space=sflag, size = 0x8, scoped, tag = 'scoped memory for tpu_custom_call.1']
    #allocation4 [shape = 'u8[262144]{0}', space=vmem, size = 0x40000, scoped, tag = 'output window, operand 1']
    %12 = vsyncpa [#allocation3], 0
    %s13 = scalar_lea.sflag [#allocation3], 1
    %14 = vsyncpa %s13, 0
    loop: start=0, step=1, limit=6
    $region2: #{tpu_custom_call.1} parent=1 // loop_pre_header
      _
    $region3: #{tpu_custom_call.1} parent=1 // loop_header
      %s16 = sphi 0, %s20
      %p17 = scmp.ge.s32.totalorder %s16, 6
      %s23 = sphi 0, %s35
      %s24 = sphi 0, %s31
      %s25 = sphi 0, %s23
      %s26 = sphi 0, %s24
      %s27 = sphi 0, %s25
      %s28 = sphi 0, %s26
      %s40 = sphi 0, %s42
      %s43 = sphi 0, %s40
      %s44 = sphi 0, %s43
      %s60 = sphi 0, %s44
      %s64 = sphi 0, %s64
      %s66 = sphi 0, %s64
      %s67 = sphi 0, %s66
      %s81 = sphi 0, %s67
      %s85 = sphi 0, %s85
      %s87 = sphi 0, %s85
      %s88 = sphi 0, %s87
      %s102 = sphi 0, %s88
      %s106 = sphi 0, %s106
      %s108 = sphi 0, %s106
      %s109 = sphi 0, %s108
      %s123 = sphi 0, %s109
      %s127 = sphi 0, %s127
      %s129 = sphi 0, %s127
      %s130 = sphi 0, %s129
      %s144 = sphi 0, %s130
      %s152 = sphi 0, %s154
      %s155 = sphi 0, %s152
      %s156 = sphi 0, %s155
      %s172 = sphi 0, %s156
      %s180 = sphi 0, %s182
      %s183 = sphi 0, %s180
      %s184 = sphi 0, %s183
      %s200 = sphi 0, %s184
    $region4: #{tpu_custom_call.1} parent=1 // loop_header_branch
      %19 = sbr.rel (%p17) target = $region8
    $region5: #{tpu_custom_call.1} parent=1 // loop_body
      %s21 = ssub.s32 %s16, 1
      %s22 = ssub.s32 %s16, 2
      %s29 = sadd.s32 1, %s24
      %p30 = scmp.ge.s32.totalorder %s29, 2
      %s31 = scalar_select %p30, 0, %s29
      %s32 = sadd.s32 1, %s23
      %s33 = scalar_select %p30, %s32, %s23
      %p34 = scmp.ge.s32.totalorder %s33, 2
      %s35 = scalar_select %p34, 0, %s33
      %s36 = ssub.s32 %s23, %s35
      %s37 = ssub.s32 %s24, %s31
      %s38 = sor.u32 %s36, %s37
      %p39 = scmp.eq.s32.totalorder %s38, 0
      %s41 = sadd.s32 %s40, 1
      %s42 = scalar_select %p39, %s40, %s41
      %p45 = pneg %p39
      %p46 = scmp.eq.s32.totalorder %s16, 3
      %p47 = por %p45, %p46
      %p48 = scmp.ne.s32.totalorder %s40, %s43
      %p49 = scmp.eq.s32.totalorder %s16, 0
      %p50 = por %p48, %p49
      %p51 = scmp.ne.s32.totalorder %s40, %s43
      %p52 = scmp.eq.s32.totalorder %s21, 3
      %p53 = por %p51, %p52
      %p54 = scmp.ne.s32.totalorder %s43, %s44
      %p55 = scmp.eq.s32.totalorder %s21, 0
      %p56 = por %p54, %p55
      %p57 = scmp.ne.s32.totalorder %s43, %s44
      %p58 = scmp.eq.s32.totalorder %s22, 3
      %p59 = por %p57, %p58
      %p61 = scmp.ne.s32.totalorder %s44, %s60
      %p62 = scmp.eq.s32.totalorder %s22, 0
      %p63 = por %p61, %p62
      %s65 = sadd.s32 %s64, 1
      %p68 = scmp.eq.s32.totalorder %s16, 3
      %p69 = scmp.ne.s32.totalorder %s64, %s66
      %p70 = scmp.eq.s32.totalorder %s16, 0
      %p71 = por %p69, %p70
      %p72 = scmp.ne.s32.totalorder %s64, %s66
      %p73 = scmp.eq.s32.totalorder %s21, 3
      %p74 = por %p72, %p73
      %p75 = scmp.ne.s32.totalorder %s66, %s67
      %p76 = scmp.eq.s32.totalorder %s21, 0
      %p77 = por %p75, %p76
      %p78 = scmp.ne.s32.totalorder %s66, %s67
      %p79 = scmp.eq.s32.totalorder %s22, 3
      %p80 = por %p78, %p79
      %p82 = scmp.ne.s32.totalorder %s67, %s81
      %p83 = scmp.eq.s32.totalorder %s22, 0
      %p84 = por %p82, %p83
      %s86 = sadd.s32 %s85, 1
      %p89 = scmp.eq.s32.totalorder %s16, 3
      %p90 = scmp.ne.s32.totalorder %s85, %s87
      %p91 = scmp.eq.s32.totalorder %s16, 0
      %p92 = por %p90, %p91
      %p93 = scmp.ne.s32.totalorder %s85, %s87
      %p94 = scmp.eq.s32.totalorder %s21, 3
      %p95 = por %p93, %p94
      %p96 = scmp.ne.s32.totalorder %s87, %s88
      %p97 = scmp.eq.s32.totalorder %s21, 0
      %p98 = por %p96, %p97
      %p99 = scmp.ne.s32.totalorder %s87, %s88
      %p100 = scmp.eq.s32.totalorder %s22, 3
      %p101 = por %p99, %p100
      %p103 = scmp.ne.s32.totalorder %s88, %s102
      %p104 = scmp.eq.s32.totalorder %s22, 0
      %p105 = por %p103, %p104
      %s107 = sadd.s32 %s106, 1
      %p110 = scmp.eq.s32.totalorder %s16, 3
      %p111 = scmp.ne.s32.totalorder %s106, %s108
      %p112 = scmp.eq.s32.totalorder %s16, 0
      %p113 = por %p111, %p112
      %p114 = scmp.ne.s32.totalorder %s106, %s108
      %p115 = scmp.eq.s32.totalorder %s21, 3
      %p116 = por %p114, %p115
      %p117 = scmp.ne.s32.totalorder %s108, %s109
      %p118 = scmp.eq.s32.totalorder %s21, 0
      %p119 = por %p117, %p118
      %p120 = scmp.ne.s32.totalorder %s108, %s109
      %p121 = scmp.eq.s32.totalorder %s22, 3
      %p122 = por %p120, %p121
      %p124 = scmp.ne.s32.totalorder %s109, %s123
      %p125 = scmp.eq.s32.totalorder %s22, 0
      %p126 = por %p124, %p125
      %s128 = sadd.s32 %s127, 1
      %p131 = scmp.eq.s32.totalorder %s16, 3
      %p132 = scmp.ne.s32.totalorder %s127, %s129
      %p133 = scmp.eq.s32.totalorder %s16, 0
      %p134 = por %p132, %p133
      %p135 = scmp.ne.s32.totalorder %s127, %s129
      %p136 = scmp.eq.s32.totalorder %s21, 3
      %p137 = por %p135, %p136
      %p138 = scmp.ne.s32.totalorder %s129, %s130
      %p139 = scmp.eq.s32.totalorder %s21, 0
      %p140 = por %p138, %p139
      %p141 = scmp.ne.s32.totalorder %s129, %s130
      %p142 = scmp.eq.s32.totalorder %s22, 3
      %p143 = por %p141, %p142
      %p145 = scmp.ne.s32.totalorder %s130, %s144
      %p146 = scmp.eq.s32.totalorder %s22, 0
      %p147 = por %p145, %p146
      %s148 = ssub.s32 %s23, %s35
      %s149 = ssub.s32 %s24, %s31
      %s150 = sor.u32 %s148, %s149
      %p151 = scmp.eq.s32.totalorder %s150, 0
      %s153 = sadd.s32 %s152, 1
      %s154 = scalar_select %p151, %s152, %s153
      %p157 = pneg %p151
      %p158 = scmp.eq.s32.totalorder %s16, 3
      %p159 = por %p157, %p158
      %p160 = scmp.ne.s32.totalorder %s152, %s155
      %p161 = scmp.eq.s32.totalorder %s16, 0
      %p162 = por %p160, %p161
      %p163 = scmp.ne.s32.totalorder %s152, %s155
      %p164 = scmp.eq.s32.totalorder %s21, 3
      %p165 = por %p163, %p164
      %p166 = scmp.ne.s32.totalorder %s155, %s156
      %p167 = scmp.eq.s32.totalorder %s21, 0
      %p168 = por %p166, %p167
      %p169 = scmp.ne.s32.totalorder %s155, %s156
      %p170 = scmp.eq.s32.totalorder %s22, 3
      %p171 = por %p169, %p170
      %p173 = scmp.ne.s32.totalorder %s156, %s172
      %p174 = scmp.eq.s32.totalorder %s22, 0
      %p175 = por %p173, %p174
      %s176 = ssub.s32 %s23, %s35
      %s177 = ssub.s32 %s24, %s31
      %s178 = sor.u32 %s176, %s177
      %p179 = scmp.eq.s32.totalorder %s178, 0
      %s181 = sadd.s32 %s180, 1
      %s182 = scalar_select %p179, %s180, %s181
      %p185 = pneg %p179
      %p186 = scmp.eq.s32.totalorder %s16, 3
      %p187 = por %p185, %p186
      %p188 = scmp.ne.s32.totalorder %s180, %s183
      %p189 = scmp.eq.s32.totalorder %s16, 0
      %p190 = por %p188, %p189
      %p191 = scmp.ne.s32.totalorder %s180, %s183
      %p192 = scmp.eq.s32.totalorder %s21, 3
      %p193 = por %p191, %p192
      %p194 = scmp.ne.s32.totalorder %s183, %s184
      %p195 = scmp.eq.s32.totalorder %s21, 0
      %p196 = por %p194, %p195
      %p197 = scmp.ne.s32.totalorder %s183, %s184
      %p198 = scmp.eq.s32.totalorder %s22, 3
      %p199 = por %p197, %p198
      %p201 = scmp.ne.s32.totalorder %s184, %s200
      %p202 = scmp.eq.s32.totalorder %s22, 0
      %p203 = por %p201, %p202
      %p204 = scmp.le.s32.totalorder 1, %s16
      %p205 = scmp.lt.s32.totalorder %s16, 5
      %p206 = pnand %p204, %p205
      %p207 = pneg %p206
      // Predicated region
      $region9: #{tpu_custom_call.1} parent=5 // pred_check
        _
      $region10: #{tpu_custom_call.1} parent=5 // pred_check_branch
        %209 = sbr.rel (%p206) target = $region12
      $region11: #{tpu_custom_call.1} parent=5 // pred_region
        %s210 = ssub.s32 %s16, 1
        // Predicated region
        $region13: #{tpu_custom_call.1} parent=11 // pred_check
          %p211 = pneg %p77
        $region14: #{tpu_custom_call.1} parent=11 // pred_check_branch
          %213 = sbr.rel (%p211) target = $region16
        $region15: #{tpu_custom_call.1} parent=11 // pred_region
          _
        $region16: #{tpu_custom_call.1} parent=11 // pred_fallthru
          _
        // Predicated region
        $region17: #{tpu_custom_call.1} parent=11 // pred_check
          %p214 = pneg %p98
        $region18: #{tpu_custom_call.1} parent=11 // pred_check_branch
          %216 = sbr.rel (%p214) target = $region20
        $region19: #{tpu_custom_call.1} parent=11 // pred_region
          _
        $region20: #{tpu_custom_call.1} parent=11 // pred_fallthru
          _
        // Predicated region
        $region21: #{tpu_custom_call.1} parent=11 // pred_check
          %p217 = pneg %p119
        $region22: #{tpu_custom_call.1} parent=11 // pred_check_branch
          %219 = sbr.rel (%p217) target = $region24
        $region23: #{tpu_custom_call.1} parent=11 // pred_region
          _
        $region24: #{tpu_custom_call.1} parent=11 // pred_fallthru
          _
        // Predicated region
        $region25: #{tpu_custom_call.1} parent=11 // pred_check
          %p220 = pneg %p140
        $region26: #{tpu_custom_call.1} parent=11 // pred_check_branch
          %222 = sbr.rel (%p220) target = $region28
        $region27: #{tpu_custom_call.1} parent=11 // pred_region
          _
        $region28: #{tpu_custom_call.1} parent=11 // pred_fallthru
          _
      $region12: #{tpu_custom_call.1} parent=5 // pred_fallthru
        _
      %p223 = scmp.lt.s32.totalorder %s16, 4
      // Predicated region
      $region29: #{tpu_custom_call.1} parent=5 // pred_check
        %p224 = pneg %p223
      $region30: #{tpu_custom_call.1} parent=5 // pred_check_branch
        %226 = sbr.rel (%p224) target = $region32
      $region31: #{tpu_custom_call.1} parent=5 // pred_region
        // Predicated region
        $region33: #{tpu_custom_call.1} parent=31 // pred_check
          %p227 = pneg %p50
        $region34: #{tpu_custom_call.1} parent=31 // pred_check_branch
          %229 = sbr.rel (%p227) target = $region36
        $region35: #{tpu_custom_call.1} parent=31 // pred_region
          %s230 = smul.u32 16, %s24
          %p231 = scmp.lt.s32.totalorder %s23, 1
          %s232 = scalar_select %p231, %s23, 1
          %p233 = scmp.lt.s32.totalorder %s230, 31
          %s234 = scalar_select %p233, %s230, 31
          %s235 = smul.addr %s232, 32
          %s236 = sadd.s32 %s234, %s235
          %s237 = smul.addr %s236, 8
          %s238 = scalar_lea.vmem %s0, %s237
          %s239 = smul.u32 16, %s24
        $region36: #{tpu_custom_call.1} parent=31 // pred_fallthru
          _
      $region32: #{tpu_custom_call.1} parent=5 // pred_fallthru
        _
      %p240 = scmp.le.s32.totalorder 1, %s16
      %p241 = scmp.lt.s32.totalorder %s16, 5
      %p242 = pnand %p240, %p241
      %p243 = pneg %p242
      // Predicated region
      $region37: #{tpu_custom_call.1} parent=5 // pred_check
        _
      $region38: #{tpu_custom_call.1} parent=5 // pred_check_branch
        %245 = sbr.rel (%p242) target = $region40
      $region39: #{tpu_custom_call.1} parent=5 // pred_region
        %s246 = ssub.s32 %s16, 1
        %s247 = smul.u32 16, %s26
        %p248 = scmp.lt.s32.totalorder %s25, 1
        %s249 = scalar_select %p248, %s25, 1
        %p250 = scmp.lt.s32.totalorder %s247, 31
        %s251 = scalar_select %p250, %s247, 31
        %s252 = smul.addr %s249, 32
        %s253 = sadd.s32 %s251, %s252
        %s254 = smul.addr %s253, 8
        %s255 = scalar_lea.vmem %s0, %s254
        %p256 = pneg %p56
        %p257 = pneg %p53
        %p258 = pneg %p77
        %p259 = pneg %p74
        %p260 = pneg %p98
        %p261 = pneg %p95
        %p262 = pneg %p119
        %p263 = pneg %p116
        %p264 = pneg %p140
        %p265 = pneg %p137
        %p266 = pneg %p168
        %p267 = pneg %p165
        %s268 = sand.u32 %s155, 1
        %s269 = scalar_lea.sflag [#allocation3], %s268
        %s270 = sand.u32 %s155, 1
        %s271 = smul.addr %s270, 16
        %s272 = scalar_lea.vmem [#allocation2], %s271
        %p273 = pneg %p196
        %p274 = pneg %p193
        %s275 = sand.u32 %s183, 1
        %s276 = sand.u32 %s183, 1
        %s277 = smul.addr %s276, 256
        %s278 = scalar_lea.vmem [#allocation4], %s277
        %s279 = smul.u32 16, %s26
        %p280 = scmp.lt.s32.totalorder %s25, 1
        %s281 = scalar_select %p280, %s25, 1
        %p282 = scmp.lt.s32.totalorder %s279, 31
        %s283 = scalar_select %p282, %s279, 31
        %s284 = smul.addr %s281, 32
        %s285 = sadd.s32 %s283, %s284
        %s286 = smul.addr %s285, 8
        %s287 = scalar_lea.vmem %s0, %s286
        %s288 = smul.u32 16, %s26
        %s289 = smul.u32 16, %s26
        %v291 = vld [vmem:[%s287] sm:$0xff]
        %v292 = vld [vmem:[%s287 + $0x8] sm:$0xff]
        %v293 = vld [vmem:[%s287 + $0x10] sm:$0xff]
        %v294 = vld [vmem:[%s287 + $0x18] sm:$0xff]
        %v295 = vld [vmem:[%s287 + $0x20] sm:$0xff]
        %v296 = vld [vmem:[%s287 + $0x28] sm:$0xff]
        %v297 = vld [vmem:[%s287 + $0x30] sm:$0xff]
        %v298 = vld [vmem:[%s287 + $0x38] sm:$0xff]
        %v299 = vld [vmem:[%s287 + $0x40] sm:$0xff]
        %v300 = vld [vmem:[%s287 + $0x48] sm:$0xff]
        %v301 = vld [vmem:[%s287 + $0x50] sm:$0xff]
        %v302 = vld [vmem:[%s287 + $0x58] sm:$0xff]
        %v303 = vld [vmem:[%s287 + $0x60] sm:$0xff]
        %v304 = vld [vmem:[%s287 + $0x68] sm:$0xff]
        %v305 = vld [vmem:[%s287 + $0x70] sm:$0xff]
        %v306 = vld [vmem:[%s287 + $0x78] sm:$0xff]
        %v307 = vld [vmem:[%s1] sm:$0x1]
        %v308 = vld [vmem:[%s2] sm:$0x1]
        %vm309 = vcmask 261120
        %v310 = vsel %vm309, %v291, 0.0
        %311 = vadd.xlane.f32.xlu0 %v310
        %v312 = vpop.xlane.xlu0 %311
        %v313 = vsel %vm309, %v292, 0.0
        %314 = vadd.xlane.f32.xlu0 %v313
        %v315 = vpop.xlane.xlu0 %314
        %v316 = vsel %vm309, %v293, 0.0
        %317 = vadd.xlane.f32.xlu0 %v316
        %v318 = vpop.xlane.xlu0 %317
        %v319 = vsel %vm309, %v294, 0.0
        %320 = vadd.xlane.f32.xlu0 %v319
        %v321 = vpop.xlane.xlu0 %320
        %v322 = vsel %vm309, %v295, 0.0
        %323 = vadd.xlane.f32.xlu0 %v322
        %v324 = vpop.xlane.xlu0 %323
        %v325 = vsel %vm309, %v296, 0.0
        %326 = vadd.xlane.f32.xlu0 %v325
        %v327 = vpop.xlane.xlu0 %326
        %v328 = vsel %vm309, %v297, 0.0
        %329 = vadd.xlane.f32.xlu0 %v328
        %v330 = vpop.xlane.xlu0 %329
        %v331 = vsel %vm309, %v298, 0.0
        %332 = vadd.xlane.f32.xlu0 %v331
        %v333 = vpop.xlane.xlu0 %332
        %v334 = vsel %vm309, %v299, 0.0
        %335 = vadd.xlane.f32.xlu0 %v334
        %v336 = vpop.xlane.xlu0 %335
        %v337 = vsel %vm309, %v300, 0.0
        %338 = vadd.xlane.f32.xlu0 %v337
        %v339 = vpop.xlane.xlu0 %338
        %v340 = vsel %vm309, %v301, 0.0
        %341 = vadd.xlane.f32.xlu0 %v340
        %v342 = vpop.xlane.xlu0 %341
        %v343 = vsel %vm309, %v302, 0.0
        %344 = vadd.xlane.f32.xlu0 %v343
        %v345 = vpop.xlane.xlu0 %344
        %v346 = vsel %vm309, %v303, 0.0
        %347 = vadd.xlane.f32.xlu0 %v346
        %v348 = vpop.xlane.xlu0 %347
        %v349 = vsel %vm309, %v304, 0.0
        %350 = vadd.xlane.f32.xlu0 %v349
        %v351 = vpop.xlane.xlu0 %350
        %v352 = vsel %vm309, %v305, 0.0
        %353 = vadd.xlane.f32.xlu0 %v352
        %v354 = vpop.xlane.xlu0 %353
        %v355 = vsel %vm309, %v306, 0.0
        %356 = vadd.xlane.f32.xlu0 %v355
        %v357 = vpop.xlane.xlu0 %356
        %v358 = vrcp.pop 32.0
        %v359 = vmul.f32 32.0, %v358
        %v360 = vsub.f32 1.0, %v359
        %v361 = vmul.f32 %v358, %v360
        %v362 = vadd.f32 %v358, %v361
        %vm363 = vweird.f32 %v358
        %v364 = vsel %vm363, %v358, %v362
        %v365 = vmul.f32 %v312, %v364
        %v366 = vmul.f32 %v315, %v364
        %v367 = vmul.f32 %v318, %v364
        %v368 = vmul.f32 %v321, %v364
        %v369 = vmul.f32 %v324, %v364
        %v370 = vmul.f32 %v327, %v364
        %v371 = vmul.f32 %v330, %v364
        %v372 = vmul.f32 %v333, %v364
        %v373 = vmul.f32 %v336, %v364
        %v374 = vmul.f32 %v339, %v364
        %v375 = vmul.f32 %v342, %v364
        %v376 = vmul.f32 %v345, %v364
        %v377 = vmul.f32 %v348, %v364
        %v378 = vmul.f32 %v351, %v364
        %v379 = vmul.f32 %v354, %v364
        %v380 = vmul.f32 %v357, %v364
        %v381 = vsub.f32 %v291, %v365
        %v382 = vsub.f32 %v292, %v366
        %v383 = vsub.f32 %v293, %v367
        %v384 = vsub.f32 %v294, %v368
        %v385 = vsub.f32 %v295, %v369
        %v386 = vsub.f32 %v296, %v370
        %v387 = vsub.f32 %v297, %v371
        %v388 = vsub.f32 %v298, %v372
        %v389 = vsub.f32 %v299, %v373
        %v390 = vsub.f32 %v300, %v374
        %v391 = vsub.f32 %v301, %v375
        %v392 = vsub.f32 %v302, %v376
        %v393 = vsub.f32 %v303, %v377
        %v394 = vsub.f32 %v304, %v378
        %v395 = vsub.f32 %v305, %v379
        %v396 = vsub.f32 %v306, %v380
        %v397 = vmul.f32 %v381, %v381
        %v398 = vmul.f32 %v382, %v382
        %v399 = vmul.f32 %v383, %v383
        %v400 = vmul.f32 %v384, %v384
        %v401 = vmul.f32 %v385, %v385
        %v402 = vmul.f32 %v386, %v386
        %v403 = vmul.f32 %v387, %v387
        %v404 = vmul.f32 %v388, %v388
        %v405 = vmul.f32 %v389, %v389
        %v406 = vmul.f32 %v390, %v390
        %v407 = vmul.f32 %v391, %v391
        %v408 = vmul.f32 %v392, %v392
        %v409 = vmul.f32 %v393, %v393
        %v410 = vmul.f32 %v394, %v394
        %v411 = vmul.f32 %v395, %v395
        %v412 = vmul.f32 %v396, %v396
        %v413 = vsel %vm309, %v397, 0.0
        %414 = vadd.xlane.f32.xlu0 %v413
        %v415 = vpop.xlane.xlu0 %414
        %v416 = vsel %vm309, %v398, 0.0
        %417 = vadd.xlane.f32.xlu0 %v416
        %v418 = vpop.xlane.xlu0 %417
        %v419 = vsel %vm309, %v399, 0.0
        %420 = vadd.xlane.f32.xlu0 %v419
        %v421 = vpop.xlane.xlu0 %420
        %v422 = vsel %vm309, %v400, 0.0
        %423 = vadd.xlane.f32.xlu0 %v422
        %v424 = vpop.xlane.xlu0 %423
        %v425 = vsel %vm309, %v401, 0.0
        %426 = vadd.xlane.f32.xlu0 %v425
        %v427 = vpop.xlane.xlu0 %426
        %v428 = vsel %vm309, %v402, 0.0
        %429 = vadd.xlane.f32.xlu0 %v428
        %v430 = vpop.xlane.xlu0 %429
        %v431 = vsel %vm309, %v403, 0.0
        %432 = vadd.xlane.f32.xlu0 %v431
        %v433 = vpop.xlane.xlu0 %432
        %v434 = vsel %vm309, %v404, 0.0
        %435 = vadd.xlane.f32.xlu0 %v434
        %v436 = vpop.xlane.xlu0 %435
        %v437 = vsel %vm309, %v405, 0.0
        %438 = vadd.xlane.f32.xlu0 %v437
        %v439 = vpop.xlane.xlu0 %438
        %v440 = vsel %vm309, %v406, 0.0
        %441 = vadd.xlane.f32.xlu0 %v440
        %v442 = vpop.xlane.xlu0 %441
        %v443 = vsel %vm309, %v407, 0.0
        %444 = vadd.xlane.f32.xlu0 %v443
        %v445 = vpop.xlane.xlu0 %444
        %v446 = vsel %vm309, %v408, 0.0
        %447 = vadd.xlane.f32.xlu0 %v446
        %v448 = vpop.xlane.xlu0 %447
        %v449 = vsel %vm309, %v409, 0.0
        %450 = vadd.xlane.f32.xlu0 %v449
        %v451 = vpop.xlane.xlu0 %450
        %v452 = vsel %vm309, %v410, 0.0
        %453 = vadd.xlane.f32.xlu0 %v452
        %v454 = vpop.xlane.xlu0 %453
        %v455 = vsel %vm309, %v411, 0.0
        %456 = vadd.xlane.f32.xlu0 %v455
        %v457 = vpop.xlane.xlu0 %456
        %v458 = vsel %vm309, %v412, 0.0
        %459 = vadd.xlane.f32.xlu0 %v458
        %v460 = vpop.xlane.xlu0 %459
        %v461 = vmul.f32 %v415, %v364
        %v462 = vmul.f32 %v418, %v364
        %v463 = vmul.f32 %v421, %v364
        %v464 = vmul.f32 %v424, %v364
        %v465 = vmul.f32 %v427, %v364
        %v466 = vmul.f32 %v430, %v364
        %v467 = vmul.f32 %v433, %v364
        %v468 = vmul.f32 %v436, %v364
        %v469 = vmul.f32 %v439, %v364
        %v470 = vmul.f32 %v442, %v364
        %v471 = vmul.f32 %v445, %v364
        %v472 = vmul.f32 %v448, %v364
        %v473 = vmul.f32 %v451, %v364
        %v474 = vmul.f32 %v454, %v364
        %v475 = vmul.f32 %v457, %v364
        %v476 = vmul.f32 %v460, %v364
        %v477 = vadd.f32 %v461, 1e-05
        %v478 = vadd.f32 %v462, 1e-05
        %v479 = vadd.f32 %v463, 1e-05
        %v480 = vadd.f32 %v464, 1e-05
        %v481 = vadd.f32 %v465, 1e-05
        %v482 = vadd.f32 %v466, 1e-05
        %v483 = vadd.f32 %v467, 1e-05
        %v484 = vadd.f32 %v468, 1e-05
        %v485 = vadd.f32 %v469, 1e-05
        %v486 = vadd.f32 %v470, 1e-05
        %v487 = vadd.f32 %v471, 1e-05
        %v488 = vadd.f32 %v472, 1e-05
        %v489 = vadd.f32 %v473, 1e-05
        %v490 = vadd.f32 %v474, 1e-05
        %v491 = vadd.f32 %v475, 1e-05
        %v492 = vadd.f32 %v476, 1e-05
        %v493 = vrsqrt.pop %v477
        %v494 = vmul.f32 %v493, %v477
        %v495 = vmul.f32 %v494, %v493
        %v496 = vmul.f32 0.5, %v495
        %v497 = vsub.f32 1.5, %v496
        %v498 = vmul.f32 %v493, %v497
        %vm499 = vweird.f32 %v477
        %vm500 = vweird.f32 %v493
        %vm501 = vmor %vm499, %vm500
        %v502 = vsel %vm501, %v493, %v498
        %v503 = vrsqrt.pop %v478
        %v504 = vmul.f32 %v503, %v478
        %v505 = vmul.f32 %v504, %v503
        %v506 = vmul.f32 0.5, %v505
        %v507 = vsub.f32 1.5, %v506
        %v508 = vmul.f32 %v503, %v507
        %vm509 = vweird.f32 %v478
        %vm510 = vweird.f32 %v503
        %vm511 = vmor %vm509, %vm510
        %v512 = vsel %vm511, %v503, %v508
        %v513 = vrsqrt.pop %v479
        %v514 = vmul.f32 %v513, %v479
        %v515 = vmul.f32 %v514, %v513
        %v516 = vmul.f32 0.5, %v515
        %v517 = vsub.f32 1.5, %v516
        %v518 = vmul.f32 %v513, %v517
        %vm519 = vweird.f32 %v479
        %vm520 = vweird.f32 %v513
        %vm521 = vmor %vm519, %vm520
        %v522 = vsel %vm521, %v513, %v518
        %v523 = vrsqrt.pop %v480
        %v524 = vmul.f32 %v523, %v480
        %v525 = vmul.f32 %v524, %v523
        %v526 = vmul.f32 0.5, %v525
        %v527 = vsub.f32 1.5, %v526
        %v528 = vmul.f32 %v523, %v527
        %vm529 = vweird.f32 %v480
        %vm530 = vweird.f32 %v523
        %vm531 = vmor %vm529, %vm530
        %v532 = vsel %vm531, %v523, %v528
        %v533 = vrsqrt.pop %v481
        %v534 = vmul.f32 %v533, %v481
        %v535 = vmul.f32 %v534, %v533
        %v536 = vmul.f32 0.5, %v535
        %v537 = vsub.f32 1.5, %v536
        %v538 = vmul.f32 %v533, %v537
        %vm539 = vweird.f32 %v481
        %vm540 = vweird.f32 %v533
        %vm541 = vmor %vm539, %vm540
        %v542 = vsel %vm541, %v533, %v538
        %v543 = vrsqrt.pop %v482
        %v544 = vmul.f32 %v543, %v482
        %v545 = vmul.f32 %v544, %v543
        %v546 = vmul.f32 0.5, %v545
        %v547 = vsub.f32 1.5, %v546
        %v548 = vmul.f32 %v543, %v547
        %vm549 = vweird.f32 %v482
        %vm550 = vweird.f32 %v543
        %vm551 = vmor %vm549, %vm550
        %v552 = vsel %vm551, %v543, %v548
        %v553 = vrsqrt.pop %v483
        %v554 = vmul.f32 %v553, %v483
        %v555 = vmul.f32 %v554, %v553
        %v556 = vmul.f32 0.5, %v555
        %v557 = vsub.f32 1.5, %v556
        %v558 = vmul.f32 %v553, %v557
        %vm559 = vweird.f32 %v483
        %vm560 = vweird.f32 %v553
        %vm561 = vmor %vm559, %vm560
        %v562 = vsel %vm561, %v553, %v558
        %v563 = vrsqrt.pop %v484
        %v564 = vmul.f32 %v563, %v484
        %v565 = vmul.f32 %v564, %v563
        %v566 = vmul.f32 0.5, %v565
        %v567 = vsub.f32 1.5, %v566
        %v568 = vmul.f32 %v563, %v567
        %vm569 = vweird.f32 %v484
        %vm570 = vweird.f32 %v563
        %vm571 = vmor %vm569, %vm570
        %v572 = vsel %vm571, %v563, %v568
        %v573 = vrsqrt.pop %v485
        %v574 = vmul.f32 %v573, %v485
        %v575 = vmul.f32 %v574, %v573
        %v576 = vmul.f32 0.5, %v575
        %v577 = vsub.f32 1.5, %v576
        %v578 = vmul.f32 %v573, %v577
        %vm579 = vweird.f32 %v485
        %vm580 = vweird.f32 %v573
        %vm581 = vmor %vm579, %vm580
        %v582 = vsel %vm581, %v573, %v578
        %v583 = vrsqrt.pop %v486
        %v584 = vmul.f32 %v583, %v486
        %v585 = vmul.f32 %v584, %v583
        %v586 = vmul.f32 0.5, %v585
        %v587 = vsub.f32 1.5, %v586
        %v588 = vmul.f32 %v583, %v587
        %vm589 = vweird.f32 %v486
        %vm590 = vweird.f32 %v583
        %vm591 = vmor %vm589, %vm590
        %v592 = vsel %vm591, %v583, %v588
        %v593 = vrsqrt.pop %v487
        %v594 = vmul.f32 %v593, %v487
        %v595 = vmul.f32 %v594, %v593
        %v596 = vmul.f32 0.5, %v595
        %v597 = vsub.f32 1.5, %v596
        %v598 = vmul.f32 %v593, %v597
        %vm599 = vweird.f32 %v487
        %vm600 = vweird.f32 %v593
        %vm601 = vmor %vm599, %vm600
        %v602 = vsel %vm601, %v593, %v598
        %v603 = vrsqrt.pop %v488
        %v604 = vmul.f32 %v603, %v488
        %v605 = vmul.f32 %v604, %v603
        %v606 = vmul.f32 0.5, %v605
        %v607 = vsub.f32 1.5, %v606
        %v608 = vmul.f32 %v603, %v607
        %vm609 = vweird.f32 %v488
        %vm610 = vweird.f32 %v603
        %vm611 = vmor %vm609, %vm610
        %v612 = vsel %vm611, %v603, %v608
        %v613 = vrsqrt.pop %v489
        %v614 = vmul.f32 %v613, %v489
        %v615 = vmul.f32 %v614, %v613
        %v616 = vmul.f32 0.5, %v615
        %v617 = vsub.f32 1.5, %v616
        %v618 = vmul.f32 %v613, %v617
        %vm619 = vweird.f32 %v489
        %vm620 = vweird.f32 %v613
        %vm621 = vmor %vm619, %vm620
        %v622 = vsel %vm621, %v613, %v618
        %v623 = vrsqrt.pop %v490
        %v624 = vmul.f32 %v623, %v490
        %v625 = vmul.f32 %v624, %v623
        %v626 = vmul.f32 0.5, %v625
        %v627 = vsub.f32 1.5, %v626
        %v628 = vmul.f32 %v623, %v627
        %vm629 = vweird.f32 %v490
        %vm630 = vweird.f32 %v623
        %vm631 = vmor %vm629, %vm630
        %v632 = vsel %vm631, %v623, %v628
        %v633 = vrsqrt.pop %v491
        %v634 = vmul.f32 %v633, %v491
        %v635 = vmul.f32 %v634, %v633
        %v636 = vmul.f32 0.5, %v635
        %v637 = vsub.f32 1.5, %v636
        %v638 = vmul.f32 %v633, %v637
        %vm639 = vweird.f32 %v491
        %vm640 = vweird.f32 %v633
        %vm641 = vmor %vm639, %vm640
        %v642 = vsel %vm641, %v633, %v638
        %v643 = vrsqrt.pop %v492
        %v644 = vmul.f32 %v643, %v492
        %v645 = vmul.f32 %v644, %v643
        %v646 = vmul.f32 0.5, %v645
        %v647 = vsub.f32 1.5, %v646
        %v648 = vmul.f32 %v643, %v647
        %vm649 = vweird.f32 %v492
        %vm650 = vweird.f32 %v643
        %vm651 = vmor %vm649, %vm650
        %v652 = vsel %vm651, %v643, %v648
        %v653 = vmul.f32 %v381, %v502
        %v654 = vmul.f32 %v382, %v512
        %v655 = vmul.f32 %v383, %v522
        %v656 = vmul.f32 %v384, %v532
        %v657 = vmul.f32 %v385, %v542
        %v658 = vmul.f32 %v386, %v552
        %v659 = vmul.f32 %v387, %v562
        %v660 = vmul.f32 %v388, %v572
        %v661 = vmul.f32 %v389, %v582
        %v662 = vmul.f32 %v390, %v592
        %v663 = vmul.f32 %v391, %v602
        %v664 = vmul.f32 %v392, %v612
        %v665 = vmul.f32 %v393, %v622
        %v666 = vmul.f32 %v394, %v632
        %v667 = vmul.f32 %v395, %v642
        %v668 = vmul.f32 %v396, %v652
        %v670 = vperm.slane %v307, 0
        %v672 = vmul.f32 %v653, %v670
        %v673 = vmul.f32 %v654, %v670
        %v674 = vmul.f32 %v655, %v670
        %v675 = vmul.f32 %v656, %v670
        %v676 = vmul.f32 %v657, %v670
        %v677 = vmul.f32 %v658, %v670
        %v678 = vmul.f32 %v659, %v670
        %v679 = vmul.f32 %v660, %v670
        %v680 = vmul.f32 %v661, %v670
        %v681 = vmul.f32 %v662, %v670
        %v682 = vmul.f32 %v663, %v670
        %v683 = vmul.f32 %v664, %v670
        %v684 = vmul.f32 %v665, %v670
        %v685 = vmul.f32 %v666, %v670
        %v686 = vmul.f32 %v667, %v670
        %v687 = vmul.f32 %v668, %v670
        %v689 = vperm.slane %v308, 0
        %v691 = vadd.f32 %v672, %v689
        %v692 = vadd.f32 %v673, %v689
        %v693 = vadd.f32 %v674, %v689
        %v694 = vadd.f32 %v675, %v689
        %v695 = vadd.f32 %v676, %v689
        %v696 = vadd.f32 %v677, %v689
        %v697 = vadd.f32 %v678, %v689
        %v698 = vadd.f32 %v679, %v689
        %v699 = vadd.f32 %v680, %v689
        %v700 = vadd.f32 %v681, %v689
        %v701 = vadd.f32 %v682, %v689
        %v702 = vadd.f32 %v683, %v689
        %v703 = vadd.f32 %v684, %v689
        %v704 = vadd.f32 %v685, %v689
        %v705 = vadd.f32 %v686, %v689
        %v706 = vadd.f32 %v687, %v689
        %v707 = vpack.c.bf16 %v692, %v691
        %v708 = vpack.c.bf16 %v694, %v693
        %v709 = vpack.c.bf16 %v696, %v695
        %v710 = vpack.c.bf16 %v698, %v697
        %v711 = vpack.c.bf16 %v700, %v699
        %v712 = vpack.c.bf16 %v702, %v701
        %v713 = vpack.c.bf16 %v704, %v703
        %v714 = vpack.c.bf16 %v706, %v705
        %v715 = vld [vmem:[%s3] sm:$0xf]
        %v716 = vld [vmem:[%s3 + $0x4] sm:$0xf]
        %v717 = vld [vmem:[%s3 + $0x8] sm:$0xf]
        %v718 = vld [vmem:[%s3 + $0xc] sm:$0xf]
        %v719 = vld [vmem:[%s4] sm:$0x1]
        %v721 = vperm.slane %v719, 0
        %v727 = vunpack.c.l.b16 %v715
        %v728 = vunpack.c.l.b16 %v716
        %v729 = vunpack.c.l.b16 %v717
        %v730 = vunpack.c.l.b16 %v718
        %v731 = vpack.c.b16 %v728, %v727
        %v732 = vpack.c.b16 %v730, %v729
        %v736 = vsel %vm309, %v707, 0
        %v739 = vsel %vm309, %v708, 0
        %v742 = vsel %vm309, %v709, 0
        %v745 = vsel %vm309, %v710, 0
        %v748 = vsel %vm309, %v711, 0
        %v751 = vsel %vm309, %v712, 0
        %v754 = vsel %vm309, %v713, 0
        %v757 = vsel %vm309, %v714, 0
        %759 = vmatpush.bf16.msra.mxu0 0
        %760 = vmatpush.bf16.msra.mxu0 0
        %761 = vmatpush.bf16.msra.mxu0 0
        %762 = vmatpush.bf16.msra.mxu0 0
        %763 = vmatpush.bf16.msra.mxu0 0
        %764 = vmatpush.bf16.msra.mxu0 0
        %765 = vmatpush.bf16.msra.mxu0 %v732
        %766 = vmatpush.bf16.msra.mxu0 %v731
        %767 = vmatmul.bf16.gmra.mxu0 %v736
        %v768 = vpop.f32.mrf.mxu0
        %v769 = vadd.f32 %v721, %v768
        %v770 = vpop.f32.mrf.mxu0
        %v771 = vadd.f32 %v721, %v770
        %772 = vmatmul.bf16.gmra.mxu0 %v739
        %v773 = vpop.f32.mrf.mxu0
        %v774 = vadd.f32 %v721, %v773
        %v775 = vpop.f32.mrf.mxu0
        %v776 = vadd.f32 %v721, %v775
        %777 = vmatmul.bf16.gmra.mxu0 %v742
        %v778 = vpop.f32.mrf.mxu0
        %v779 = vadd.f32 %v721, %v778
        %v780 = vpop.f32.mrf.mxu0
        %v781 = vadd.f32 %v721, %v780
        %782 = vmatmul.bf16.gmra.mxu0 %v745
        %v783 = vpop.f32.mrf.mxu0
        %v784 = vadd.f32 %v721, %v783
        %v785 = vpop.f32.mrf.mxu0
        %v786 = vadd.f32 %v721, %v785
        %787 = vmatmul.bf16.gmra.mxu0 %v748
        %v788 = vpop.f32.mrf.mxu0
        %v789 = vadd.f32 %v721, %v788
        %v790 = vpop.f32.mrf.mxu0
        %v791 = vadd.f32 %v721, %v790
        %792 = vmatmul.bf16.gmra.mxu0 %v751
        %v793 = vpop.f32.mrf.mxu0
        %v794 = vadd.f32 %v721, %v793
        %v795 = vpop.f32.mrf.mxu0
        %v796 = vadd.f32 %v721, %v795
        %797 = vmatmul.bf16.gmra.mxu0 %v754
        %v798 = vpop.f32.mrf.mxu0
        %v799 = vadd.f32 %v721, %v798
        %v800 = vpop.f32.mrf.mxu0
        %v801 = vadd.f32 %v721, %v800
        %802 = vmatmul.bf16.gmra.mxu0 %v757
        %v803 = vpop.f32.mrf.mxu0
        %v804 = vadd.f32 %v721, %v803
        %v805 = vpop.f32.mrf.mxu0
        %v806 = vadd.f32 %v721, %v805
        %807 = vdwg.mxu0
        %808 = vxpose.xlu0.b32.start [1/16] %v769, 128
        %809 = vxpose.xlu0.b32.cont [2/16] %v771, 128
        %810 = vxpose.xlu0.b32.cont [3/16] %v774, 128
        %811 = vxpose.xlu0.b32.cont [4/16] %v776, 128
        %812 = vxpose.xlu0.b32.cont [5/16] %v779, 128
        %813 = vxpose.xlu0.b32.cont [6/16] %v781, 128
        %814 = vxpose.xlu0.b32.cont [7/16] %v784, 128
        %815 = vxpose.xlu0.b32.cont [8/16] %v786, 128
        %816 = vxpose.xlu0.b32.cont [9/16] %v789, 128
        %817 = vxpose.xlu0.b32.cont [10/16] %v791, 128
        %818 = vxpose.xlu0.b32.cont [11/16] %v794, 128
        %819 = vxpose.xlu0.b32.cont [12/16] %v796, 128
        %820 = vxpose.xlu0.b32.cont [13/16] %v799, 128
        %821 = vxpose.xlu0.b32.cont [14/16] %v801, 128
        %822 = vxpose.xlu0.b32.cont [15/16] %v804, 128
        %823 = vxpose.xlu0.b32.end [16/16] %v806, 128
        %v824 = vpop.trf.xlu0
        %v825 = vpop.trf.xlu0
        %v826 = vpop.trf.xlu0
        %v827 = vpop.trf.xlu0
        %v828 = vpop.trf.xlu0
        %v829 = vpop.trf.xlu0
        %v830 = vpop.trf.xlu0
        %v831 = vpop.trf.xlu0
        %v832 = vpop.trf.xlu0
        %v833 = vpop.trf.xlu0
        %v834 = vpop.trf.xlu0
        %v835 = vpop.trf.xlu0
        %v836 = vpop.trf.xlu0
        %v837 = vpop.trf.xlu0
        %v838 = vpop.trf.xlu0
        %v839 = vpop.trf.xlu0
        %v840 = vpack.c.bf16 %v824, %v824
        %841 = vst [vmem:[%s272] sm:$0xf] %v840
        %v842 = vpack.c.bf16 %v769, %v769
        %v843 = vpack.c.bf16 %v771, %v771
        %v844 = vpack.c.bf16 %v774, %v774
        %v845 = vpack.c.bf16 %v776, %v776
        %v846 = vpack.c.bf16 %v779, %v779
        %v847 = vpack.c.bf16 %v781, %v781
        %v848 = vpack.c.bf16 %v784, %v784
        %v849 = vpack.c.bf16 %v786, %v786
        %v850 = vpack.c.bf16 %v789, %v789
        %v851 = vpack.c.bf16 %v791, %v791
        %v852 = vpack.c.bf16 %v794, %v794
        %v853 = vpack.c.bf16 %v796, %v796
        %v854 = vpack.c.bf16 %v799, %v799
        %v855 = vpack.c.bf16 %v801, %v801
        %v856 = vpack.c.bf16 %v804, %v804
        %v857 = vpack.c.bf16 %v806, %v806
        %874 = vrot.lane.b32.xlu0 %v842, 96
        %v875 = vpop.permute.xlu0 %874
        %876 = vrot.lane.b32.xlu0 %v843, 96
        %v877 = vpop.permute.xlu0 %876
        %878 = vrot.lane.b32.xlu0 %v844, 96
        %v879 = vpop.permute.xlu0 %878
        %880 = vrot.lane.b32.xlu0 %v845, 96
        %v881 = vpop.permute.xlu0 %880
        %882 = vrot.lane.b32.xlu0 %v846, 96
        %v883 = vpop.permute.xlu0 %882
        %884 = vrot.lane.b32.xlu0 %v847, 96
        %v885 = vpop.permute.xlu0 %884
        %886 = vrot.lane.b32.xlu0 %v848, 96
        %v887 = vpop.permute.xlu0 %886
        %888 = vrot.lane.b32.xlu0 %v849, 96
        %v889 = vpop.permute.xlu0 %888
        %890 = vrot.lane.b32.xlu0 %v850, 96
        %v891 = vpop.permute.xlu0 %890
        %892 = vrot.lane.b32.xlu0 %v851, 96
        %v893 = vpop.permute.xlu0 %892
        %894 = vrot.lane.b32.xlu0 %v852, 96
        %v895 = vpop.permute.xlu0 %894
        %896 = vrot.lane.b32.xlu0 %v853, 96
        %v897 = vpop.permute.xlu0 %896
        %898 = vrot.lane.b32.xlu0 %v854, 96
        %v899 = vpop.permute.xlu0 %898
        %900 = vrot.lane.b32.xlu0 %v855, 96
        %v901 = vpop.permute.xlu0 %900
        %902 = vrot.lane.b32.xlu0 %v856, 96
        %v903 = vpop.permute.xlu0 %902
        %904 = vrot.lane.b32.xlu0 %v857, 96
        %v905 = vpop.permute.xlu0 %904
        %vm922 = vcmask 60416
        %923 = vst.msk [vmem:[%s278] sm:$0xf] %vm922, %v875
        %924 = vst.msk [vmem:[%s278 + $0x4] sm:$0xf] %vm922, %v877
        %925 = vst.msk [vmem:[%s278 + $0x8] sm:$0xf] %vm922, %v879
        %926 = vst.msk [vmem:[%s278 + $0xc] sm:$0xf] %vm922, %v881
        %927 = vst.msk [vmem:[%s278 + $0x10] sm:$0xf] %vm922, %v883
        %928 = vst.msk [vmem:[%s278 + $0x14] sm:$0xf] %vm922, %v885
        %929 = vst.msk [vmem:[%s278 + $0x18] sm:$0xf] %vm922, %v887
        %930 = vst.msk [vmem:[%s278 + $0x1c] sm:$0xf] %vm922, %v889
        %931 = vst.msk [vmem:[%s278 + $0x20] sm:$0xf] %vm922, %v891
        %932 = vst.msk [vmem:[%s278 + $0x24] sm:$0xf] %vm922, %v893
        %933 = vst.msk [vmem:[%s278 + $0x28] sm:$0xf] %vm922, %v895
        %934 = vst.msk [vmem:[%s278 + $0x2c] sm:$0xf] %vm922, %v897
        %935 = vst.msk [vmem:[%s278 + $0x30] sm:$0xf] %vm922, %v899
        %936 = vst.msk [vmem:[%s278 + $0x34] sm:$0xf] %vm922, %v901
        %937 = vst.msk [vmem:[%s278 + $0x38] sm:$0xf] %vm922, %v903
        %938 = vst.msk [vmem:[%s278 + $0x3c] sm:$0xf] %vm922, %v905
        %955 = vrot.lane.b32.xlu0 %v769, 120
        %v956 = vpop.permute.xlu0 %955
        %957 = vrot.lane.b32.xlu0 %v771, 120
        %v958 = vpop.permute.xlu0 %957
        %959 = vrot.lane.b32.xlu0 %v774, 120
        %v960 = vpop.permute.xlu0 %959
        %961 = vrot.lane.b32.xlu0 %v776, 120
        %v962 = vpop.permute.xlu0 %961
        %963 = vrot.lane.b32.xlu0 %v779, 120
        %v964 = vpop.permute.xlu0 %963
        %965 = vrot.lane.b32.xlu0 %v781, 120
        %v966 = vpop.permute.xlu0 %965
        %967 = vrot.lane.b32.xlu0 %v784, 120
        %v968 = vpop.permute.xlu0 %967
        %969 = vrot.lane.b32.xlu0 %v786, 120
        %v970 = vpop.permute.xlu0 %969
        %971 = vrot.lane.b32.xlu0 %v789, 120
        %v972 = vpop.permute.xlu0 %971
        %973 = vrot.lane.b32.xlu0 %v791, 120
        %v974 = vpop.permute.xlu0 %973
        %975 = vrot.lane.b32.xlu0 %v794, 120
        %v976 = vpop.permute.xlu0 %975
        %977 = vrot.lane.b32.xlu0 %v796, 120
        %v978 = vpop.permute.xlu0 %977
        %979 = vrot.lane.b32.xlu0 %v799, 120
        %v980 = vpop.permute.xlu0 %979
        %981 = vrot.lane.b32.xlu0 %v801, 120
        %v982 = vpop.permute.xlu0 %981
        %983 = vrot.lane.b32.xlu0 %v804, 120
        %v984 = vpop.permute.xlu0 %983
        %985 = vrot.lane.b32.xlu0 %v806, 120
        %v986 = vpop.permute.xlu0 %985
        %1003 = vxpose.xlu0.b32.start [1/16] %v956, 128
        %1004 = vxpose.xlu0.b32.cont [2/16] %v958, 128
        %1005 = vxpose.xlu0.b32.cont [3/16] %v960, 128
        %1006 = vxpose.xlu0.b32.cont [4/16] %v962, 128
        %1007 = vxpose.xlu0.b32.cont [5/16] %v964, 128
        %1008 = vxpose.xlu0.b32.cont [6/16] %v966, 128
        %1009 = vxpose.xlu0.b32.cont [7/16] %v968, 128
        %1010 = vxpose.xlu0.b32.cont [8/16] %v970, 128
        %1011 = vxpose.xlu0.b32.cont [9/16] %v972, 128
        %1012 = vxpose.xlu0.b32.cont [10/16] %v974, 128
        %1013 = vxpose.xlu0.b32.cont [11/16] %v976, 128
        %1014 = vxpose.xlu0.b32.cont [12/16] %v978, 128
        %1015 = vxpose.xlu0.b32.cont [13/16] %v980, 128
        %1016 = vxpose.xlu0.b32.cont [14/16] %v982, 128
        %1017 = vxpose.xlu0.b32.cont [15/16] %v984, 128
        %1018 = vxpose.xlu0.b32.end [16/16] %v986, 128
        %v1019 = vpop.trf.xlu0
        %v1020 = vpop.trf.xlu0
        %v1021 = vpop.trf.xlu0
        %v1022 = vpop.trf.xlu0
        %v1023 = vpop.trf.xlu0
        %v1024 = vpop.trf.xlu0
        %v1025 = vpop.trf.xlu0
        %v1026 = vpop.trf.xlu0
        %v1027 = vpop.trf.xlu0
        %v1028 = vpop.trf.xlu0
        %v1029 = vpop.trf.xlu0
        %v1030 = vpop.trf.xlu0
        %v1031 = vpop.trf.xlu0
        %v1032 = vpop.trf.xlu0
        %v1033 = vpop.trf.xlu0
        %v1034 = vpop.trf.xlu0
        %v1035 = vpack.c.bf16 %v1019, %v1019
        %s1036 = scalar_lea.vmem %s272, 4 [#allocation2]
        %1037 = vst [vmem:[%s1036] sm:$0xf] %v1035
        %1038 = vrot.lane.b32.xlu0 %v842, 88
        %v1039 = vpop.permute.xlu0 %1038
        %1040 = vrot.lane.b32.xlu0 %v843, 88
        %v1041 = vpop.permute.xlu0 %1040
        %1042 = vrot.lane.b32.xlu0 %v844, 88
        %v1043 = vpop.permute.xlu0 %1042
        %1044 = vrot.lane.b32.xlu0 %v845, 88
        %v1045 = vpop.permute.xlu0 %1044
        %1046 = vrot.lane.b32.xlu0 %v846, 88
        %v1047 = vpop.permute.xlu0 %1046
        %1048 = vrot.lane.b32.xlu0 %v847, 88
        %v1049 = vpop.permute.xlu0 %1048
        %1050 = vrot.lane.b32.xlu0 %v848, 88
        %v1051 = vpop.permute.xlu0 %1050
        %1052 = vrot.lane.b32.xlu0 %v849, 88
        %v1053 = vpop.permute.xlu0 %1052
        %1054 = vrot.lane.b32.xlu0 %v850, 88
        %v1055 = vpop.permute.xlu0 %1054
        %1056 = vrot.lane.b32.xlu0 %v851, 88
        %v1057 = vpop.permute.xlu0 %1056
        %1058 = vrot.lane.b32.xlu0 %v852, 88
        %v1059 = vpop.permute.xlu0 %1058
        %1060 = vrot.lane.b32.xlu0 %v853, 88
        %v1061 = vpop.permute.xlu0 %1060
        %1062 = vrot.lane.b32.xlu0 %v854, 88
        %v1063 = vpop.permute.xlu0 %1062
        %1064 = vrot.lane.b32.xlu0 %v855, 88
        %v1065 = vpop.permute.xlu0 %1064
        %1066 = vrot.lane.b32.xlu0 %v856, 88
        %v1067 = vpop.permute.xlu0 %1066
        %1068 = vrot.lane.b32.xlu0 %v857, 88
        %v1069 = vpop.permute.xlu0 %1068
        %s1086 = scalar_lea.vmem %s278, 64 [#allocation4]
        %1087 = vst.msk [vmem:[%s1086] sm:$0xf] %vm922, %v1039
        %1088 = vst.msk [vmem:[%s1086 + $0x4] sm:$0xf] %vm922, %v1041
        %1089 = vst.msk [vmem:[%s1086 + $0x8] sm:$0xf] %vm922, %v1043
        %1090 = vst.msk [vmem:[%s1086 + $0xc] sm:$0xf] %vm922, %v1045
        %1091 = vst.msk [vmem:[%s1086 + $0x10] sm:$0xf] %vm922, %v1047
        %1092 = vst.msk [vmem:[%s1086 + $0x14] sm:$0xf] %vm922, %v1049
        %1093 = vst.msk [vmem:[%s1086 + $0x18] sm:$0xf] %vm922, %v1051
        %1094 = vst.msk [vmem:[%s1086 + $0x1c] sm:$0xf] %vm922, %v1053
        %1095 = vst.msk [vmem:[%s1086 + $0x20] sm:$0xf] %vm922, %v1055
        %1096 = vst.msk [vmem:[%s1086 + $0x24] sm:$0xf] %vm922, %v1057
        %1097 = vst.msk [vmem:[%s1086 + $0x28] sm:$0xf] %vm922, %v1059
        %1098 = vst.msk [vmem:[%s1086 + $0x2c] sm:$0xf] %vm922, %v1061
        %1099 = vst.msk [vmem:[%s1086 + $0x30] sm:$0xf] %vm922, %v1063
        %1100 = vst.msk [vmem:[%s1086 + $0x34] sm:$0xf] %vm922, %v1065
        %1101 = vst.msk [vmem:[%s1086 + $0x38] sm:$0xf] %vm922, %v1067
        %1102 = vst.msk [vmem:[%s1086 + $0x3c] sm:$0xf] %vm922, %v1069
        %1103 = vrot.lane.b32.xlu0 %v769, 112
        %v1104 = vpop.permute.xlu0 %1103
        %1105 = vrot.lane.b32.xlu0 %v771, 112
        %v1106 = vpop.permute.xlu0 %1105
        %1107 = vrot.lane.b32.xlu0 %v774, 112
        %v1108 = vpop.permute.xlu0 %1107
        %1109 = vrot.lane.b32.xlu0 %v776, 112
        %v1110 = vpop.permute.xlu0 %1109
        %1111 = vrot.lane.b32.xlu0 %v779, 112
        %v1112 = vpop.permute.xlu0 %1111
        %1113 = vrot.lane.b32.xlu0 %v781, 112
        %v1114 = vpop.permute.xlu0 %1113
        %1115 = vrot.lane.b32.xlu0 %v784, 112
        %v1116 = vpop.permute.xlu0 %1115
        %1117 = vrot.lane.b32.xlu0 %v786, 112
        %v1118 = vpop.permute.xlu0 %1117
        %1119 = vrot.lane.b32.xlu0 %v789, 112
        %v1120 = vpop.permute.xlu0 %1119
        %1121 = vrot.lane.b32.xlu0 %v791, 112
        %v1122 = vpop.permute.xlu0 %1121
        %1123 = vrot.lane.b32.xlu0 %v794, 112
        %v1124 = vpop.permute.xlu0 %1123
        %1125 = vrot.lane.b32.xlu0 %v796, 112
        %v1126 = vpop.permute.xlu0 %1125
        %1127 = vrot.lane.b32.xlu0 %v799, 112
        %v1128 = vpop.permute.xlu0 %1127
        %1129 = vrot.lane.b32.xlu0 %v801, 112
        %v1130 = vpop.permute.xlu0 %1129
        %1131 = vrot.lane.b32.xlu0 %v804, 112
        %v1132 = vpop.permute.xlu0 %1131
        %1133 = vrot.lane.b32.xlu0 %v806, 112
        %v1134 = vpop.permute.xlu0 %1133
        %1151 = vxpose.xlu0.b32.start [1/16] %v1104, 128
        %1152 = vxpose.xlu0.b32.cont [2/16] %v1106, 128
        %1153 = vxpose.xlu0.b32.cont [3/16] %v1108, 128
        %1154 = vxpose.xlu0.b32.cont [4/16] %v1110, 128
        %1155 = vxpose.xlu0.b32.cont [5/16] %v1112, 128
        %1156 = vxpose.xlu0.b32.cont [6/16] %v1114, 128
        %1157 = vxpose.xlu0.b32.cont [7/16] %v1116, 128
        %1158 = vxpose.xlu0.b32.cont [8/16] %v1118, 128
        %1159 = vxpose.xlu0.b32.cont [9/16] %v1120, 128
        %1160 = vxpose.xlu0.b32.cont [10/16] %v1122, 128
        %1161 = vxpose.xlu0.b32.cont [11/16] %v1124, 128
        %1162 = vxpose.xlu0.b32.cont [12/16] %v1126, 128
        %1163 = vxpose.xlu0.b32.cont [13/16] %v1128, 128
        %1164 = vxpose.xlu0.b32.cont [14/16] %v1130, 128
        %1165 = vxpose.xlu0.b32.cont [15/16] %v1132, 128
        %1166 = vxpose.xlu0.b32.end [16/16] %v1134, 128
        %v1167 = vpop.trf.xlu0
        %v1168 = vpop.trf.xlu0
        %v1169 = vpop.trf.xlu0
        %v1170 = vpop.trf.xlu0
        %v1171 = vpop.trf.xlu0
        %v1172 = vpop.trf.xlu0
        %v1173 = vpop.trf.xlu0
        %v1174 = vpop.trf.xlu0
        %v1175 = vpop.trf.xlu0
        %v1176 = vpop.trf.xlu0
        %v1177 = vpop.trf.xlu0
        %v1178 = vpop.trf.xlu0
        %v1179 = vpop.trf.xlu0
        %v1180 = vpop.trf.xlu0
        %v1181 = vpop.trf.xlu0
        %v1182 = vpop.trf.xlu0
        %v1183 = vpack.c.bf16 %v1167, %v1167
        %s1184 = scalar_lea.vmem %s272, 8 [#allocation2]
        %1185 = vst [vmem:[%s1184] sm:$0xf] %v1183
        %1186 = vrot.lane.b32.xlu0 %v842, 80
        %v1187 = vpop.permute.xlu0 %1186
        %1188 = vrot.lane.b32.xlu0 %v843, 80
        %v1189 = vpop.permute.xlu0 %1188
        %1190 = vrot.lane.b32.xlu0 %v844, 80
        %v1191 = vpop.permute.xlu0 %1190
        %1192 = vrot.lane.b32.xlu0 %v845, 80
        %v1193 = vpop.permute.xlu0 %1192
        %1194 = vrot.lane.b32.xlu0 %v846, 80
        %v1195 = vpop.permute.xlu0 %1194
        %1196 = vrot.lane.b32.xlu0 %v847, 80
        %v1197 = vpop.permute.xlu0 %1196
        %1198 = vrot.lane.b32.xlu0 %v848, 80
        %v1199 = vpop.permute.xlu0 %1198
        %1200 = vrot.lane.b32.xlu0 %v849, 80
        %v1201 = vpop.permute.xlu0 %1200
        %1202 = vrot.lane.b32.xlu0 %v850, 80
        %v1203 = vpop.permute.xlu0 %1202
        %1204 = vrot.lane.b32.xlu0 %v851, 80
        %v1205 = vpop.permute.xlu0 %1204
        %1206 = vrot.lane.b32.xlu0 %v852, 80
        %v1207 = vpop.permute.xlu0 %1206
        %1208 = vrot.lane.b32.xlu0 %v853, 80
        %v1209 = vpop.permute.xlu0 %1208
        %1210 = vrot.lane.b32.xlu0 %v854, 80
        %v1211 = vpop.permute.xlu0 %1210
        %1212 = vrot.lane.b32.xlu0 %v855, 80
        %v1213 = vpop.permute.xlu0 %1212
        %1214 = vrot.lane.b32.xlu0 %v856, 80
        %v1215 = vpop.permute.xlu0 %1214
        %1216 = vrot.lane.b32.xlu0 %v857, 80
        %v1217 = vpop.permute.xlu0 %1216
        %s1234 = scalar_lea.vmem %s278, 128 [#allocation4]
        %1235 = vst.msk [vmem:[%s1234] sm:$0xf] %vm922, %v1187
        %1236 = vst.msk [vmem:[%s1234 + $0x4] sm:$0xf] %vm922, %v1189
        %1237 = vst.msk [vmem:[%s1234 + $0x8] sm:$0xf] %vm922, %v1191
        %1238 = vst.msk [vmem:[%s1234 + $0xc] sm:$0xf] %vm922, %v1193
        %1239 = vst.msk [vmem:[%s1234 + $0x10] sm:$0xf] %vm922, %v1195
        %1240 = vst.msk [vmem:[%s1234 + $0x14] sm:$0xf] %vm922, %v1197
        %1241 = vst.msk [vmem:[%s1234 + $0x18] sm:$0xf] %vm922, %v1199
        %1242 = vst.msk [vmem:[%s1234 + $0x1c] sm:$0xf] %vm922, %v1201
        %1243 = vst.msk [vmem:[%s1234 + $0x20] sm:$0xf] %vm922, %v1203
        %1244 = vst.msk [vmem:[%s1234 + $0x24] sm:$0xf] %vm922, %v1205
        %1245 = vst.msk [vmem:[%s1234 + $0x28] sm:$0xf] %vm922, %v1207
        %1246 = vst.msk [vmem:[%s1234 + $0x2c] sm:$0xf] %vm922, %v1209
        %1247 = vst.msk [vmem:[%s1234 + $0x30] sm:$0xf] %vm922, %v1211
        %1248 = vst.msk [vmem:[%s1234 + $0x34] sm:$0xf] %vm922, %v1213
        %1249 = vst.msk [vmem:[%s1234 + $0x38] sm:$0xf] %vm922, %v1215
        %1250 = vst.msk [vmem:[%s1234 + $0x3c] sm:$0xf] %vm922, %v1217
        %1251 = vrot.lane.b32.xlu0 %v769, 104
        %v1252 = vpop.permute.xlu0 %1251
        %1253 = vrot.lane.b32.xlu0 %v771, 104
        %v1254 = vpop.permute.xlu0 %1253
        %1255 = vrot.lane.b32.xlu0 %v774, 104
        %v1256 = vpop.permute.xlu0 %1255
        %1257 = vrot.lane.b32.xlu0 %v776, 104
        %v1258 = vpop.permute.xlu0 %1257
        %1259 = vrot.lane.b32.xlu0 %v779, 104
        %v1260 = vpop.permute.xlu0 %1259
        %1261 = vrot.lane.b32.xlu0 %v781, 104
        %v1262 = vpop.permute.xlu0 %1261
        %1263 = vrot.lane.b32.xlu0 %v784, 104
        %v1264 = vpop.permute.xlu0 %1263
        %1265 = vrot.lane.b32.xlu0 %v786, 104
        %v1266 = vpop.permute.xlu0 %1265
        %1267 = vrot.lane.b32.xlu0 %v789, 104
        %v1268 = vpop.permute.xlu0 %1267
        %1269 = vrot.lane.b32.xlu0 %v791, 104
        %v1270 = vpop.permute.xlu0 %1269
        %1271 = vrot.lane.b32.xlu0 %v794, 104
        %v1272 = vpop.permute.xlu0 %1271
        %1273 = vrot.lane.b32.xlu0 %v796, 104
        %v1274 = vpop.permute.xlu0 %1273
        %1275 = vrot.lane.b32.xlu0 %v799, 104
        %v1276 = vpop.permute.xlu0 %1275
        %1277 = vrot.lane.b32.xlu0 %v801, 104
        %v1278 = vpop.permute.xlu0 %1277
        %1279 = vrot.lane.b32.xlu0 %v804, 104
        %v1280 = vpop.permute.xlu0 %1279
        %1281 = vrot.lane.b32.xlu0 %v806, 104
        %v1282 = vpop.permute.xlu0 %1281
        %1299 = vxpose.xlu0.b32.start [1/16] %v1252, 128
        %1300 = vxpose.xlu0.b32.cont [2/16] %v1254, 128
        %1301 = vxpose.xlu0.b32.cont [3/16] %v1256, 128
        %1302 = vxpose.xlu0.b32.cont [4/16] %v1258, 128
        %1303 = vxpose.xlu0.b32.cont [5/16] %v1260, 128
        %1304 = vxpose.xlu0.b32.cont [6/16] %v1262, 128
        %1305 = vxpose.xlu0.b32.cont [7/16] %v1264, 128
        %1306 = vxpose.xlu0.b32.cont [8/16] %v1266, 128
        %1307 = vxpose.xlu0.b32.cont [9/16] %v1268, 128
        %1308 = vxpose.xlu0.b32.cont [10/16] %v1270, 128
        %1309 = vxpose.xlu0.b32.cont [11/16] %v1272, 128
        %1310 = vxpose.xlu0.b32.cont [12/16] %v1274, 128
        %1311 = vxpose.xlu0.b32.cont [13/16] %v1276, 128
        %1312 = vxpose.xlu0.b32.cont [14/16] %v1278, 128
        %1313 = vxpose.xlu0.b32.cont [15/16] %v1280, 128
        %1314 = vxpose.xlu0.b32.end [16/16] %v1282, 128
        %v1315 = vpop.trf.xlu0
        %v1316 = vpop.trf.xlu0
        %v1317 = vpop.trf.xlu0
        %v1318 = vpop.trf.xlu0
        %v1319 = vpop.trf.xlu0
        %v1320 = vpop.trf.xlu0
        %v1321 = vpop.trf.xlu0
        %v1322 = vpop.trf.xlu0
        %v1323 = vpop.trf.xlu0
        %v1324 = vpop.trf.xlu0
        %v1325 = vpop.trf.xlu0
        %v1326 = vpop.trf.xlu0
        %v1327 = vpop.trf.xlu0
        %v1328 = vpop.trf.xlu0
        %v1329 = vpop.trf.xlu0
        %v1330 = vpop.trf.xlu0
        %v1331 = vpack.c.bf16 %v1315, %v1315
        %s1332 = scalar_lea.vmem %s272, 12 [#allocation2]
        %1333 = vst [vmem:[%s1332] sm:$0xf] %v1331
        %1334 = vrot.lane.b32.xlu0 %v842, 72
        %v1335 = vpop.permute.xlu0 %1334
        %1336 = vrot.lane.b32.xlu0 %v843, 72
        %v1337 = vpop.permute.xlu0 %1336
        %1338 = vrot.lane.b32.xlu0 %v844, 72
        %v1339 = vpop.permute.xlu0 %1338
        %1340 = vrot.lane.b32.xlu0 %v845, 72
        %v1341 = vpop.permute.xlu0 %1340
        %1342 = vrot.lane.b32.xlu0 %v846, 72
        %v1343 = vpop.permute.xlu0 %1342
        %1344 = vrot.lane.b32.xlu0 %v847, 72
        %v1345 = vpop.permute.xlu0 %1344
        %1346 = vrot.lane.b32.xlu0 %v848, 72
        %v1347 = vpop.permute.xlu0 %1346
        %1348 = vrot.lane.b32.xlu0 %v849, 72
        %v1349 = vpop.permute.xlu0 %1348
        %1350 = vrot.lane.b32.xlu0 %v850, 72
        %v1351 = vpop.permute.xlu0 %1350
        %1352 = vrot.lane.b32.xlu0 %v851, 72
        %v1353 = vpop.permute.xlu0 %1352
        %1354 = vrot.lane.b32.xlu0 %v852, 72
        %v1355 = vpop.permute.xlu0 %1354
        %1356 = vrot.lane.b32.xlu0 %v853, 72
        %v1357 = vpop.permute.xlu0 %1356
        %1358 = vrot.lane.b32.xlu0 %v854, 72
        %v1359 = vpop.permute.xlu0 %1358
        %1360 = vrot.lane.b32.xlu0 %v855, 72
        %v1361 = vpop.permute.xlu0 %1360
        %1362 = vrot.lane.b32.xlu0 %v856, 72
        %v1363 = vpop.permute.xlu0 %1362
        %1364 = vrot.lane.b32.xlu0 %v857, 72
        %v1365 = vpop.permute.xlu0 %1364
        %s1382 = scalar_lea.vmem %s278, 192 [#allocation4]
        %1383 = vst.msk [vmem:[%s1382] sm:$0xf] %vm922, %v1335
        %1384 = vst.msk [vmem:[%s1382 + $0x4] sm:$0xf] %vm922, %v1337
        %1385 = vst.msk [vmem:[%s1382 + $0x8] sm:$0xf] %vm922, %v1339
        %1386 = vst.msk [vmem:[%s1382 + $0xc] sm:$0xf] %vm922, %v1341
        %1387 = vst.msk [vmem:[%s1382 + $0x10] sm:$0xf] %vm922, %v1343
        %1388 = vst.msk [vmem:[%s1382 + $0x14] sm:$0xf] %vm922, %v1345
        %1389 = vst.msk [vmem:[%s1382 + $0x18] sm:$0xf] %vm922, %v1347
        %1390 = vst.msk [vmem:[%s1382 + $0x1c] sm:$0xf] %vm922, %v1349
        %1391 = vst.msk [vmem:[%s1382 + $0x20] sm:$0xf] %vm922, %v1351
        %1392 = vst.msk [vmem:[%s1382 + $0x24] sm:$0xf] %vm922, %v1353
        %1393 = vst.msk [vmem:[%s1382 + $0x28] sm:$0xf] %vm922, %v1355
        %1394 = vst.msk [vmem:[%s1382 + $0x2c] sm:$0xf] %vm922, %v1357
        %1395 = vst.msk [vmem:[%s1382 + $0x30] sm:$0xf] %vm922, %v1359
        %1396 = vst.msk [vmem:[%s1382 + $0x34] sm:$0xf] %vm922, %v1361
        %1397 = vst.msk [vmem:[%s1382 + $0x38] sm:$0xf] %vm922, %v1363
        %1398 = vst.msk [vmem:[%s1382 + $0x3c] sm:$0xf] %vm922, %v1365
        %s1399 = sand.u32 %s155, 1
        %s1400 = scalar_lea.sflag [#allocation3], %s1399
        %s1401 = sand.u32 %s155, 1
        %s1402 = smul.addr %s1401, 16
        %s1403 = scalar_lea.vmem [#allocation2], %s1402
        %s1404 = sand.u32 %s183, 1
        %s1405 = sand.u32 %s183, 1
        %s1406 = smul.addr %s1405, 256
        %s1407 = scalar_lea.vmem [#allocation4], %s1406
        // Predicated region
        $region41: #{tpu_custom_call.1} parent=39 // pred_check
          %p1408 = pneg %p165
        $region42: #{tpu_custom_call.1} parent=39 // pred_check_branch
          %1410 = sbr.rel (%p1408) target = $region44
        $region43: #{tpu_custom_call.1} parent=39 // pred_region
          %1412 = vsyncadd %s1400, 0
          %s1413 = smul.addr %s25, 8
          %s1414 = sadd.s32 %s26, %s1413
          %s1415 = smul.addr %s1414, 4
          %s1416 = scalar_lea.hbm %s5, %s1415
          %s1417 = sshll.u32 %s1403, 4
          %s1418 = int_to_ptr.vmem [resolvable:$true] %s1417
          %s1419 = sshll.u32 %s1416, 4
          %s1420 = int_to_ptr.hbm [resolvable:$true] %s1419
          %1425 = dma.vmem_to_hbm [thread:$0]  %s1418, 256, %s1420, %s1400, 64, 128, 4
        $region44: #{tpu_custom_call.1} parent=39 // pred_fallthru
          _
        // Predicated region
        $region45: #{tpu_custom_call.1} parent=39 // pred_check
          %p1426 = pneg %p193
        $region46: #{tpu_custom_call.1} parent=39 // pred_check_branch
          %1428 = sbr.rel (%p1426) target = $region48
        $region47: #{tpu_custom_call.1} parent=39 // pred_region
          %s1429 = smul.u32 16, %s26
          %s1430 = smul.addr %s25, 128
          %s1431 = sadd.s32 %s1429, %s1430
          %s1432 = smul.addr %s1431, 4
          %s1433 = scalar_lea.vmem %s6, %s1432
          // Predicated region
          $region49: #{tpu_custom_call.1} parent=47 // pred_check
            _
          $region50: #{tpu_custom_call.1} parent=47 // pred_check_branch
            %1435 = sbr.rel (0) target = $region52
          $region51: #{tpu_custom_call.1} parent=47 // pred_region
            // Predicated region
            $region53: #{tpu_custom_call.1} parent=51 // pred_check
              _
            $region54: #{tpu_custom_call.1} parent=51 // pred_check_branch
              %1437 = sbr.rel target = $region56
            $region55: #{tpu_custom_call.1} parent=51 // pred_region
              // Predicated region
              $region68: #{tpu_custom_call.1} parent=55 // pred_check
                _
              $region69: #{tpu_custom_call.1} parent=55 // pred_check_branch
                %1579 = sbr.rel (0) target = $region71
              $region70: #{tpu_custom_call.1} parent=55 // pred_region
                loop: start=0, step=1, limit=1
                $region72: #{tpu_custom_call.1} parent=70 // loop_pre_header
                  _
                $region73: #{tpu_custom_call.1} parent=70 // loop_header
                  %s1581 = sphi 0, %s1585
                  %p1582 = scmp.ge.s32.totalorder %s1581, 1
                  %s1586 = sphi %s1407, %s1407
                  %s1587 = sphi %s1433, %s1433
                $region74: #{tpu_custom_call.1} parent=70 // loop_header_branch
                  %1584 = sbr.rel (%p1582) target = $region78
                $region75: #{tpu_custom_call.1} parent=70 // loop_body
                  _
                $region76: #{tpu_custom_call.1} parent=70 // loop_footer
                  %s1585 = sadd.s32 1, %s1581
                $region77: #{tpu_custom_call.1} parent=70 // loop_footer_branch
                  %1580 = sbr.rel target = $region73
                $region78: #{tpu_custom_call.1} parent=70 // loop_exit
                  _
                %s1589 = ssub.s32 16, 1
                loop: start=0, step=1, limit=1
                $region79: #{tpu_custom_call.1} parent=70 // loop_pre_header
                  _
                $region80: #{tpu_custom_call.1} parent=70 // loop_header
                  %s1591 = sphi 0, %s1595
                  %p1592 = scmp.ge.s32.totalorder %s1591, 1
                  %s1596 = sphi %s1407, %s1407
                  %s1597 = sphi %s1433, %s1433
                $region81: #{tpu_custom_call.1} parent=70 // loop_header_branch
                  %1594 = sbr.rel (%p1592) target = $region85
                $region82: #{tpu_custom_call.1} parent=70 // loop_body
                  %v1598 = vld [vmem:[%s1596] sm:%s1589]
                  %1599 = vst [vmem:[%s1597] sm:%s1589] %v1598
                  %v1600 = vld [vmem:[%s1596 + $0x4] sm:%s1589]
                  %1601 = vst [vmem:[%s1597 + $0x4] sm:%s1589] %v1600
                  %v1602 = vld [vmem:[%s1596 + $0x8] sm:%s1589]
                  %1603 = vst [vmem:[%s1597 + $0x8] sm:%s1589] %v1602
                  %v1604 = vld [vmem:[%s1596 + $0xc] sm:%s1589]
                  %1605 = vst [vmem:[%s1597 + $0xc] sm:%s1589] %v1604
                  %v1606 = vld [vmem:[%s1596 + $0x10] sm:%s1589]
                  %1607 = vst [vmem:[%s1597 + $0x10] sm:%s1589] %v1606
                  %v1608 = vld [vmem:[%s1596 + $0x14] sm:%s1589]
                  %1609 = vst [vmem:[%s1597 + $0x14] sm:%s1589] %v1608
                  %v1610 = vld [vmem:[%s1596 + $0x18] sm:%s1589]
                  %1611 = vst [vmem:[%s1597 + $0x18] sm:%s1589] %v1610
                  %v1612 = vld [vmem:[%s1596 + $0x1c] sm:%s1589]
                  %1613 = vst [vmem:[%s1597 + $0x1c] sm:%s1589] %v1612
                  %v1614 = vld [vmem:[%s1596 + $0x20] sm:%s1589]
                  %1615 = vst [vmem:[%s1597 + $0x20] sm:%s1589] %v1614
                  %v1616 = vld [vmem:[%s1596 + $0x24] sm:%s1589]
                  %1617 = vst [vmem:[%s1597 + $0x24] sm:%s1589] %v1616
                  %v1618 = vld [vmem:[%s1596 + $0x28] sm:%s1589]
                  %1619 = vst [vmem:[%s1597 + $0x28] sm:%s1589] %v1618
                  %v1620 = vld [vmem:[%s1596 + $0x2c] sm:%s1589]
                  %1621 = vst [vmem:[%s1597 + $0x2c] sm:%s1589] %v1620
                  %v1622 = vld [vmem:[%s1596 + $0x30] sm:%s1589]
                  %1623 = vst [vmem:[%s1597 + $0x30] sm:%s1589] %v1622
                  %v1624 = vld [vmem:[%s1596 + $0x34] sm:%s1589]
                  %1625 = vst [vmem:[%s1597 + $0x34] sm:%s1589] %v1624
                  %v1626 = vld [vmem:[%s1596 + $0x38] sm:%s1589]
                  %1627 = vst [vmem:[%s1597 + $0x38] sm:%s1589] %v1626
                  %v1628 = vld [vmem:[%s1596 + $0x3c] sm:%s1589]
                  %1629 = vst [vmem:[%s1597 + $0x3c] sm:%s1589] %v1628
                  %v1630 = vld [vmem:[%s1596 + $0x40] sm:%s1589]
                  %1631 = vst [vmem:[%s1597 + $0x80] sm:%s1589] %v1630
                  %v1632 = vld [vmem:[%s1596 + $0x44] sm:%s1589]
                  %1633 = vst [vmem:[%s1597 + $0x84] sm:%s1589] %v1632
                  %v1634 = vld [vmem:[%s1596 + $0x48] sm:%s1589]
                  %1635 = vst [vmem:[%s1597 + $0x88] sm:%s1589] %v1634
                  %v1636 = vld [vmem:[%s1596 + $0x4c] sm:%s1589]
                  %1637 = vst [vmem:[%s1597 + $0x8c] sm:%s1589] %v1636
                  %v1638 = vld [vmem:[%s1596 + $0x50] sm:%s1589]
                  %1639 = vst [vmem:[%s1597 + $0x90] sm:%s1589] %v1638
                  %v1640 = vld [vmem:[%s1596 + $0x54] sm:%s1589]
                  %1641 = vst [vmem:[%s1597 + $0x94] sm:%s1589] %v1640
                  %v1642 = vld [vmem:[%s1596 + $0x58] sm:%s1589]
                  %1643 = vst [vmem:[%s1597 + $0x98] sm:%s1589] %v1642
                  %v1644 = vld [vmem:[%s1596 + $0x5c] sm:%s1589]
                  %1645 = vst [vmem:[%s1597 + $0x9c] sm:%s1589] %v1644
                  %v1646 = vld [vmem:[%s1596 + $0x60] sm:%s1589]
                  %1647 = vst [vmem:[%s1597 + $0xa0] sm:%s1589] %v1646
                  %v1648 = vld [vmem:[%s1596 + $0x64] sm:%s1589]
                  %1649 = vst [vmem:[%s1597 + $0xa4] sm:%s1589] %v1648
                  %v1650 = vld [vmem:[%s1596 + $0x68] sm:%s1589]
                  %1651 = vst [vmem:[%s1597 + $0xa8] sm:%s1589] %v1650
                  %v1652 = vld [vmem:[%s1596 + $0x6c] sm:%s1589]
                  %1653 = vst [vmem:[%s1597 + $0xac] sm:%s1589] %v1652
                  %v1654 = vld [vmem:[%s1596 + $0x70] sm:%s1589]
                  %1655 = vst [vmem:[%s1597 + $0xb0] sm:%s1589] %v1654
                  %v1656 = vld [vmem:[%s1596 + $0x74] sm:%s1589]
                  %1657 = vst [vmem:[%s1597 + $0xb4] sm:%s1589] %v1656
                  %v1658 = vld [vmem:[%s1596 + $0x78] sm:%s1589]
                  %1659 = vst [vmem:[%s1597 + $0xb8] sm:%s1589] %v1658
                  %v1660 = vld [vmem:[%s1596 + $0x7c] sm:%s1589]
                  %1661 = vst [vmem:[%s1597 + $0xbc] sm:%s1589] %v1660
                  %v1662 = vld [vmem:[%s1596 + $0x80] sm:%s1589]
                  %1663 = vst [vmem:[%s1597 + $0x100] sm:%s1589] %v1662
                  %v1664 = vld [vmem:[%s1596 + $0x84] sm:%s1589]
                  %1665 = vst [vmem:[%s1597 + $0x104] sm:%s1589] %v1664
                  %v1666 = vld [vmem:[%s1596 + $0x88] sm:%s1589]
                  %1667 = vst [vmem:[%s1597 + $0x108] sm:%s1589] %v1666
                  %v1668 = vld [vmem:[%s1596 + $0x8c] sm:%s1589]
                  %1669 = vst [vmem:[%s1597 + $0x10c] sm:%s1589] %v1668
                  %v1670 = vld [vmem:[%s1596 + $0x90] sm:%s1589]
                  %1671 = vst [vmem:[%s1597 + $0x110] sm:%s1589] %v1670
                  %v1672 = vld [vmem:[%s1596 + $0x94] sm:%s1589]
                  %1673 = vst [vmem:[%s1597 + $0x114] sm:%s1589] %v1672
                  %v1674 = vld [vmem:[%s1596 + $0x98] sm:%s1589]
                  %1675 = vst [vmem:[%s1597 + $0x118] sm:%s1589] %v1674
                  %v1676 = vld [vmem:[%s1596 + $0x9c] sm:%s1589]
                  %1677 = vst [vmem:[%s1597 + $0x11c] sm:%s1589] %v1676
                  %v1678 = vld [vmem:[%s1596 + $0xa0] sm:%s1589]
                  %1679 = vst [vmem:[%s1597 + $0x120] sm:%s1589] %v1678
                  %v1680 = vld [vmem:[%s1596 + $0xa4] sm:%s1589]
                  %1681 = vst [vmem:[%s1597 + $0x124] sm:%s1589] %v1680
                  %v1682 = vld [vmem:[%s1596 + $0xa8] sm:%s1589]
                  %1683 = vst [vmem:[%s1597 + $0x128] sm:%s1589] %v1682
                  %v1684 = vld [vmem:[%s1596 + $0xac] sm:%s1589]
                  %1685 = vst [vmem:[%s1597 + $0x12c] sm:%s1589] %v1684
                  %v1686 = vld [vmem:[%s1596 + $0xb0] sm:%s1589]
                  %1687 = vst [vmem:[%s1597 + $0x130] sm:%s1589] %v1686
                  %v1688 = vld [vmem:[%s1596 + $0xb4] sm:%s1589]
                  %1689 = vst [vmem:[%s1597 + $0x134] sm:%s1589] %v1688
                  %v1690 = vld [vmem:[%s1596 + $0xb8] sm:%s1589]
                  %1691 = vst [vmem:[%s1597 + $0x138] sm:%s1589] %v1690
                  %v1692 = vld [vmem:[%s1596 + $0xbc] sm:%s1589]
                  %1693 = vst [vmem:[%s1597 + $0x13c] sm:%s1589] %v1692
                  %v1694 = vld [vmem:[%s1596 + $0xc0] sm:%s1589]
                  %1695 = vst [vmem:[%s1597 + $0x180] sm:%s1589] %v1694
                  %v1696 = vld [vmem:[%s1596 + $0xc4] sm:%s1589]
                  %1697 = vst [vmem:[%s1597 + $0x184] sm:%s1589] %v1696
                  %v1698 = vld [vmem:[%s1596 + $0xc8] sm:%s1589]
                  %1699 = vst [vmem:[%s1597 + $0x188] sm:%s1589] %v1698
                  %v1700 = vld [vmem:[%s1596 + $0xcc] sm:%s1589]
                  %1701 = vst [vmem:[%s1597 + $0x18c] sm:%s1589] %v1700
                  %v1702 = vld [vmem:[%s1596 + $0xd0] sm:%s1589]
                  %1703 = vst [vmem:[%s1597 + $0x190] sm:%s1589] %v1702
                  %v1704 = vld [vmem:[%s1596 + $0xd4] sm:%s1589]
                  %1705 = vst [vmem:[%s1597 + $0x194] sm:%s1589] %v1704
                  %v1706 = vld [vmem:[%s1596 + $0xd8] sm:%s1589]
                  %1707 = vst [vmem:[%s1597 + $0x198] sm:%s1589] %v1706
                  %v1708 = vld [vmem:[%s1596 + $0xdc] sm:%s1589]
                  %1709 = vst [vmem:[%s1597 + $0x19c] sm:%s1589] %v1708
                  %v1710 = vld [vmem:[%s1596 + $0xe0] sm:%s1589]
                  %1711 = vst [vmem:[%s1597 + $0x1a0] sm:%s1589] %v1710
                  %v1712 = vld [vmem:[%s1596 + $0xe4] sm:%s1589]
                  %1713 = vst [vmem:[%s1597 + $0x1a4] sm:%s1589] %v1712
                  %v1714 = vld [vmem:[%s1596 + $0xe8] sm:%s1589]
                  %1715 = vst [vmem:[%s1597 + $0x1a8] sm:%s1589] %v1714
                  %v1716 = vld [vmem:[%s1596 + $0xec] sm:%s1589]
                  %1717 = vst [vmem:[%s1597 + $0x1ac] sm:%s1589] %v1716
                  %v1718 = vld [vmem:[%s1596 + $0xf0] sm:%s1589]
                  %1719 = vst [vmem:[%s1597 + $0x1b0] sm:%s1589] %v1718
                  %v1720 = vld [vmem:[%s1596 + $0xf4] sm:%s1589]
                  %1721 = vst [vmem:[%s1597 + $0x1b4] sm:%s1589] %v1720
                  %v1722 = vld [vmem:[%s1596 + $0xf8] sm:%s1589]
                  %1723 = vst [vmem:[%s1597 + $0x1b8] sm:%s1589] %v1722
                  %v1724 = vld [vmem:[%s1596 + $0xfc] sm:%s1589]
                  %1725 = vst [vmem:[%s1597 + $0x1bc] sm:%s1589] %v1724
                $region83: #{tpu_custom_call.1} parent=70 // loop_footer
                  %s1595 = sadd.s32 1, %s1591
                $region84: #{tpu_custom_call.1} parent=70 // loop_footer_branch
                  %1590 = sbr.rel target = $region80
                $region85: #{tpu_custom_call.1} parent=70 // loop_exit
                  _
              $region71: #{tpu_custom_call.1} parent=55 // pred_fallthru
                _
            $region56: #{tpu_custom_call.1} parent=51 // pred_fallthru
              _
            // Predicated region
            $region57: #{tpu_custom_call.1} parent=51 // pred_check
              _
            $region58: #{tpu_custom_call.1} parent=51 // pred_check_branch
              %1439 = sbr.rel (0) target = $region60
            $region59: #{tpu_custom_call.1} parent=51 // pred_region
              %s1441 = ssub.s32 16, 1
              loop: start=0, step=1, limit=1
              $region61: #{tpu_custom_call.1} parent=59 // loop_pre_header
                _
              $region62: #{tpu_custom_call.1} parent=59 // loop_header
                %s1443 = sphi 0, %s1447
                %p1444 = scmp.ge.s32.totalorder %s1443, 1
                %s1448 = sphi %s1407, %s1407
                %s1449 = sphi %s1433, %s1433
              $region63: #{tpu_custom_call.1} parent=59 // loop_header_branch
                %1446 = sbr.rel (%p1444) target = $region67
              $region64: #{tpu_custom_call.1} parent=59 // loop_body
                %v1450 = vld [vmem:[%s1448] sm:%s1441]
                %1451 = vst [vmem:[%s1449] sm:%s1441] %v1450
                %v1452 = vld [vmem:[%s1448 + $0x4] sm:%s1441]
                %1453 = vst [vmem:[%s1449 + $0x4] sm:%s1441] %v1452
                %v1454 = vld [vmem:[%s1448 + $0x8] sm:%s1441]
                %1455 = vst [vmem:[%s1449 + $0x8] sm:%s1441] %v1454
                %v1456 = vld [vmem:[%s1448 + $0xc] sm:%s1441]
                %1457 = vst [vmem:[%s1449 + $0xc] sm:%s1441] %v1456
                %v1458 = vld [vmem:[%s1448 + $0x10] sm:%s1441]
                %1459 = vst [vmem:[%s1449 + $0x10] sm:%s1441] %v1458
                %v1460 = vld [vmem:[%s1448 + $0x14] sm:%s1441]
                %1461 = vst [vmem:[%s1449 + $0x14] sm:%s1441] %v1460
                %v1462 = vld [vmem:[%s1448 + $0x18] sm:%s1441]
                %1463 = vst [vmem:[%s1449 + $0x18] sm:%s1441] %v1462
                %v1464 = vld [vmem:[%s1448 + $0x1c] sm:%s1441]
                %1465 = vst [vmem:[%s1449 + $0x1c] sm:%s1441] %v1464
                %v1466 = vld [vmem:[%s1448 + $0x20] sm:%s1441]
                %1467 = vst [vmem:[%s1449 + $0x20] sm:%s1441] %v1466
                %v1468 = vld [vmem:[%s1448 + $0x24] sm:%s1441]
                %1469 = vst [vmem:[%s1449 + $0x24] sm:%s1441] %v1468
                %v1470 = vld [vmem:[%s1448 + $0x28] sm:%s1441]
                %1471 = vst [vmem:[%s1449 + $0x28] sm:%s1441] %v1470
                %v1472 = vld [vmem:[%s1448 + $0x2c] sm:%s1441]
                %1473 = vst [vmem:[%s1449 + $0x2c] sm:%s1441] %v1472
                %v1474 = vld [vmem:[%s1448 + $0x30] sm:%s1441]
                %1475 = vst [vmem:[%s1449 + $0x30] sm:%s1441] %v1474
                %v1476 = vld [vmem:[%s1448 + $0x34] sm:%s1441]
                %1477 = vst [vmem:[%s1449 + $0x34] sm:%s1441] %v1476
                %v1478 = vld [vmem:[%s1448 + $0x38] sm:%s1441]
                %1479 = vst [vmem:[%s1449 + $0x38] sm:%s1441] %v1478
                %v1480 = vld [vmem:[%s1448 + $0x3c] sm:%s1441]
                %1481 = vst [vmem:[%s1449 + $0x3c] sm:%s1441] %v1480
                %v1482 = vld [vmem:[%s1448 + $0x40] sm:%s1441]
                %1483 = vst [vmem:[%s1449 + $0x80] sm:%s1441] %v1482
                %v1484 = vld [vmem:[%s1448 + $0x44] sm:%s1441]
                %1485 = vst [vmem:[%s1449 + $0x84] sm:%s1441] %v1484
                %v1486 = vld [vmem:[%s1448 + $0x48] sm:%s1441]
                %1487 = vst [vmem:[%s1449 + $0x88] sm:%s1441] %v1486
                %v1488 = vld [vmem:[%s1448 + $0x4c] sm:%s1441]
                %1489 = vst [vmem:[%s1449 + $0x8c] sm:%s1441] %v1488
                %v1490 = vld [vmem:[%s1448 + $0x50] sm:%s1441]
                %1491 = vst [vmem:[%s1449 + $0x90] sm:%s1441] %v1490
                %v1492 = vld [vmem:[%s1448 + $0x54] sm:%s1441]
                %1493 = vst [vmem:[%s1449 + $0x94] sm:%s1441] %v1492
                %v1494 = vld [vmem:[%s1448 + $0x58] sm:%s1441]
                %1495 = vst [vmem:[%s1449 + $0x98] sm:%s1441] %v1494
                %v1496 = vld [vmem:[%s1448 + $0x5c] sm:%s1441]
                %1497 = vst [vmem:[%s1449 + $0x9c] sm:%s1441] %v1496
                %v1498 = vld [vmem:[%s1448 + $0x60] sm:%s1441]
                %1499 = vst [vmem:[%s1449 + $0xa0] sm:%s1441] %v1498
                %v1500 = vld [vmem:[%s1448 + $0x64] sm:%s1441]
                %1501 = vst [vmem:[%s1449 + $0xa4] sm:%s1441] %v1500
                %v1502 = vld [vmem:[%s1448 + $0x68] sm:%s1441]
                %1503 = vst [vmem:[%s1449 + $0xa8] sm:%s1441] %v1502
                %v1504 = vld [vmem:[%s1448 + $0x6c] sm:%s1441]
                %1505 = vst [vmem:[%s1449 + $0xac] sm:%s1441] %v1504
                %v1506 = vld [vmem:[%s1448 + $0x70] sm:%s1441]
                %1507 = vst [vmem:[%s1449 + $0xb0] sm:%s1441] %v1506
                %v1508 = vld [vmem:[%s1448 + $0x74] sm:%s1441]
                %1509 = vst [vmem:[%s1449 + $0xb4] sm:%s1441] %v1508
                %v1510 = vld [vmem:[%s1448 + $0x78] sm:%s1441]
                %1511 = vst [vmem:[%s1449 + $0xb8] sm:%s1441] %v1510
                %v1512 = vld [vmem:[%s1448 + $0x7c] sm:%s1441]
                %1513 = vst [vmem:[%s1449 + $0xbc] sm:%s1441] %v1512
                %v1514 = vld [vmem:[%s1448 + $0x80] sm:%s1441]
                %1515 = vst [vmem:[%s1449 + $0x100] sm:%s1441] %v1514
                %v1516 = vld [vmem:[%s1448 + $0x84] sm:%s1441]
                %1517 = vst [vmem:[%s1449 + $0x104] sm:%s1441] %v1516
                %v1518 = vld [vmem:[%s1448 + $0x88] sm:%s1441]
                %1519 = vst [vmem:[%s1449 + $0x108] sm:%s1441] %v1518
                %v1520 = vld [vmem:[%s1448 + $0x8c] sm:%s1441]
                %1521 = vst [vmem:[%s1449 + $0x10c] sm:%s1441] %v1520
                %v1522 = vld [vmem:[%s1448 + $0x90] sm:%s1441]
                %1523 = vst [vmem:[%s1449 + $0x110] sm:%s1441] %v1522
                %v1524 = vld [vmem:[%s1448 + $0x94] sm:%s1441]
                %1525 = vst [vmem:[%s1449 + $0x114] sm:%s1441] %v1524
                %v1526 = vld [vmem:[%s1448 + $0x98] sm:%s1441]
                %1527 = vst [vmem:[%s1449 + $0x118] sm:%s1441] %v1526
                %v1528 = vld [vmem:[%s1448 + $0x9c] sm:%s1441]
                %1529 = vst [vmem:[%s1449 + $0x11c] sm:%s1441] %v1528
                %v1530 = vld [vmem:[%s1448 + $0xa0] sm:%s1441]
                %1531 = vst [vmem:[%s1449 + $0x120] sm:%s1441] %v1530
                %v1532 = vld [vmem:[%s1448 + $0xa4] sm:%s1441]
                %1533 = vst [vmem:[%s1449 + $0x124] sm:%s1441] %v1532
                %v1534 = vld [vmem:[%s1448 + $0xa8] sm:%s1441]
                %1535 = vst [vmem:[%s1449 + $0x128] sm:%s1441] %v1534
                %v1536 = vld [vmem:[%s1448 + $0xac] sm:%s1441]
                %1537 = vst [vmem:[%s1449 + $0x12c] sm:%s1441] %v1536
                %v1538 = vld [vmem:[%s1448 + $0xb0] sm:%s1441]
                %1539 = vst [vmem:[%s1449 + $0x130] sm:%s1441] %v1538
                %v1540 = vld [vmem:[%s1448 + $0xb4] sm:%s1441]
                %1541 = vst [vmem:[%s1449 + $0x134] sm:%s1441] %v1540
                %v1542 = vld [vmem:[%s1448 + $0xb8] sm:%s1441]
                %1543 = vst [vmem:[%s1449 + $0x138] sm:%s1441] %v1542
                %v1544 = vld [vmem:[%s1448 + $0xbc] sm:%s1441]
                %1545 = vst [vmem:[%s1449 + $0x13c] sm:%s1441] %v1544
                %v1546 = vld [vmem:[%s1448 + $0xc0] sm:%s1441]
                %1547 = vst [vmem:[%s1449 + $0x180] sm:%s1441] %v1546
                %v1548 = vld [vmem:[%s1448 + $0xc4] sm:%s1441]
                %1549 = vst [vmem:[%s1449 + $0x184] sm:%s1441] %v1548
                %v1550 = vld [vmem:[%s1448 + $0xc8] sm:%s1441]
                %1551 = vst [vmem:[%s1449 + $0x188] sm:%s1441] %v1550
                %v1552 = vld [vmem:[%s1448 + $0xcc] sm:%s1441]
                %1553 = vst [vmem:[%s1449 + $0x18c] sm:%s1441] %v1552
                %v1554 = vld [vmem:[%s1448 + $0xd0] sm:%s1441]
                %1555 = vst [vmem:[%s1449 + $0x190] sm:%s1441] %v1554
                %v1556 = vld [vmem:[%s1448 + $0xd4] sm:%s1441]
                %1557 = vst [vmem:[%s1449 + $0x194] sm:%s1441] %v1556
                %v1558 = vld [vmem:[%s1448 + $0xd8] sm:%s1441]
                %1559 = vst [vmem:[%s1449 + $0x198] sm:%s1441] %v1558
                %v1560 = vld [vmem:[%s1448 + $0xdc] sm:%s1441]
                %1561 = vst [vmem:[%s1449 + $0x19c] sm:%s1441] %v1560
                %v1562 = vld [vmem:[%s1448 + $0xe0] sm:%s1441]
                %1563 = vst [vmem:[%s1449 + $0x1a0] sm:%s1441] %v1562
                %v1564 = vld [vmem:[%s1448 + $0xe4] sm:%s1441]
                %1565 = vst [vmem:[%s1449 + $0x1a4] sm:%s1441] %v1564
                %v1566 = vld [vmem:[%s1448 + $0xe8] sm:%s1441]
                %1567 = vst [vmem:[%s1449 + $0x1a8] sm:%s1441] %v1566
                %v1568 = vld [vmem:[%s1448 + $0xec] sm:%s1441]
                %1569 = vst [vmem:[%s1449 + $0x1ac] sm:%s1441] %v1568
                %v1570 = vld [vmem:[%s1448 + $0xf0] sm:%s1441]
                %1571 = vst [vmem:[%s1449 + $0x1b0] sm:%s1441] %v1570
                %v1572 = vld [vmem:[%s1448 + $0xf4] sm:%s1441]
                %1573 = vst [vmem:[%s1449 + $0x1b4] sm:%s1441] %v1572
                %v1574 = vld [vmem:[%s1448 + $0xf8] sm:%s1441]
                %1575 = vst [vmem:[%s1449 + $0x1b8] sm:%s1441] %v1574
                %v1576 = vld [vmem:[%s1448 + $0xfc] sm:%s1441]
                %1577 = vst [vmem:[%s1449 + $0x1bc] sm:%s1441] %v1576
              $region65: #{tpu_custom_call.1} parent=59 // loop_footer
                %s1447 = sadd.s32 1, %s1443
              $region66: #{tpu_custom_call.1} parent=59 // loop_footer_branch
                %1442 = sbr.rel target = $region62
              $region67: #{tpu_custom_call.1} parent=59 // loop_exit
                _
            $region60: #{tpu_custom_call.1} parent=51 // pred_fallthru
              _
          $region52: #{tpu_custom_call.1} parent=47 // pred_fallthru
            _
          %1726 = vnop
        $region48: #{tpu_custom_call.1} parent=39 // pred_fallthru
          _
      $region40: #{tpu_custom_call.1} parent=5 // pred_fallthru
        _
      %p1727 = scmp.le.s32.totalorder 2, %s16
      // Predicated region
      $region86: #{tpu_custom_call.1} parent=5 // pred_check
        %p1728 = pneg %p1727
      $region87: #{tpu_custom_call.1} parent=5 // pred_check_branch
        %1730 = sbr.rel (%p1728) target = $region89
      $region88: #{tpu_custom_call.1} parent=5 // pred_region
        %s1731 = ssub.s32 %s16, 2
        // Predicated region
        $region90: #{tpu_custom_call.1} parent=88 // pred_check
          %p1732 = pneg %p171
        $region91: #{tpu_custom_call.1} parent=88 // pred_check_branch
          %1734 = sbr.rel (%p1732) target = $region93
        $region92: #{tpu_custom_call.1} parent=88 // pred_region
          %s1735 = sand.u32 %s156, 1
          %s1736 = scalar_lea.sflag [#allocation3], %s1735
          %s1737 = sand.u32 %s156, 1
          %s1738 = smul.addr %s1737, 16
          %s1739 = scalar_lea.vmem [#allocation2], %s1738
          %1741 = dma.done %s1736, 256
        $region93: #{tpu_custom_call.1} parent=88 // pred_fallthru
          _
        // Predicated region
        $region94: #{tpu_custom_call.1} parent=88 // pred_check
          %p1742 = pneg %p199
        $region95: #{tpu_custom_call.1} parent=88 // pred_check_branch
          %1744 = sbr.rel (%p1742) target = $region97
        $region96: #{tpu_custom_call.1} parent=88 // pred_region
          %s1745 = sand.u32 %s184, 1
          %s1746 = sand.u32 %s184, 1
          %s1747 = smul.addr %s1746, 256
          %s1748 = scalar_lea.vmem [#allocation4], %s1747
        $region97: #{tpu_custom_call.1} parent=88 // pred_fallthru
          _
      $region89: #{tpu_custom_call.1} parent=5 // pred_fallthru
        _
    $region6: #{tpu_custom_call.1} parent=1 // loop_footer
      %s20 = sadd.s32 1, %s16
    $region7: #{tpu_custom_call.1} parent=1 // loop_footer_branch
      %15 = sbr.rel target = $region3
    $region8: #{tpu_custom_call.1} parent=1 // loop_exit
      _
    %1749 = vsyncpa [#allocation3], 1
    %s1750 = scalar_lea.sflag [#allocation3], 1
    %1751 = vsyncpa %s1750, 1

</llo_original>
